<compile_context>
chip_gen: v7x
topology: tpu7x:2x2x1
jax: 0.10.0
libtpu: 0.0.40
codegen_flags: <defaults>
</compile_context>

<pallas_src>
import functools

import jax
import jax.numpy as jnp
from jax.experimental import pallas as pl
from jax.experimental.pallas import tpu as pltpu

C = 32                     # hidden width
L = 4                      # positional-encoding octaves
ENC = 2 * (2 * L + 1)      # 18
IN_DIM = ENC + 2           # 20
OUT_DIM = 3


def _silu(h):
    # SiLU with a tanh-based sigmoid: one EUP op/element instead of exp + divide.
    return h * (0.5 * (jnp.tanh(0.5 * h) + 1.0))


def _neubtf_kernel(dirs_ref, w1t_ref, b1_ref, w2t_ref, b2_ref, w3t_ref, b3_ref,
                   out_ref, x_ref):
    """One (features, tile_n) column block.

    dirs_ref : (4, tn)   rows = [wo.x, wo.y, wi.x, wi.y]
    w1t_ref  : (32, 20)  layer-1 weight, (out, in)
    b1_ref   : (32, 1)
    w2t_ref  : (32, 32)  b2_ref: (32, 1)
    w3t_ref  : (3, 32)   b3_ref: (3, 1)
    out_ref  : (3, tn)
    x_ref    : (20, tn)  VMEM scratch holding the encoded MLP input
    """
    dirs = dirs_ref[...]
    wo = dirs[0:2, :]

    # Positional encoding: one sin + one cos on the EUP, higher octaves via
    # double-angle recurrences on the VPU.
    s0 = jnp.sin(wo)
    c0 = jnp.cos(wo)
    s1 = 2.0 * s0 * c0
    c1 = 1.0 - 2.0 * s0 * s0
    s2 = 2.0 * s1 * c1
    c2 = 1.0 - 2.0 * s1 * s1
    s3 = 2.0 * s2 * c2
    c3 = 1.0 - 2.0 * s2 * s2

    # x = [wo, sin(2^0 wo), cos(2^0 wo), ..., sin(2^3 wo), cos(2^3 wo), wi]
    # assembled by direct row writes (sublane slices) into the scratch —
    # no lane-axis concatenation, single K=20 matmul for layer 1.
    x_ref[0:2, :] = wo
    x_ref[2:4, :] = s0
    x_ref[4:6, :] = c0
    x_ref[6:8, :] = s1
    x_ref[8:10, :] = c1
    x_ref[10:12, :] = s2
    x_ref[12:14, :] = c2
    x_ref[14:16, :] = s3
    x_ref[16:18, :] = c3
    x_ref[18:20, :] = dirs[2:4, :]          # wi

    # Layer 1: (32,20) @ (20,tn) + b, SiLU
    h = jnp.dot(w1t_ref[...], x_ref[...], preferred_element_type=jnp.float32)
    h = _silu(h + b1_ref[...])
    # Layer 2: (32,32) @ (32,tn) + b, SiLU
    h = jnp.dot(w2t_ref[...], h, preferred_element_type=jnp.float32)
    h = _silu(h + b2_ref[...])
    # Output projection + exp: (3,32) @ (32,tn) + b
    y = jnp.dot(w3t_ref[...], h, preferred_element_type=jnp.float32) + b3_ref[...]
    out_ref[...] = jnp.exp(y)


@functools.partial(jax.jit, static_argnames=("tile_n",))
def neubtf_forward(uv, wo, wi, params, tile_n=2048):
    """NeuBTF forward. uv unused (as in the PyTorch module). wo/wi: (N,2) -> (N,3)."""
    del uv
    w1, b1, w2, b2, w3, b3 = params          # w: (in, out), b: (1, out)
    n = wo.shape[0]
    n_pad = pl.cdiv(n, tile_n) * tile_n

    # Feature-major layout: N on lanes, features on sublanes.
    dirs = jnp.concatenate([wo, wi], axis=-1).T.astype(jnp.float32)   # (4, N)
    if n_pad != n:
        dirs = jnp.pad(dirs, ((0, 0), (0, n_pad - n)))   # padded rows are harmless

    w1t, w2t, w3t = w1.T, w2.T, w3.T          # (out, in)
    b1t, b2t, b3t = b1.T, b2.T, b3.T          # (out, 1)

    full = lambda a: pl.BlockSpec(a.shape, lambda i: (0, 0))
    grid_spec = pltpu.PrefetchScalarGridSpec(
        num_scalar_prefetch=0,
        grid=(n_pad // tile_n,),
        in_specs=[
            pl.BlockSpec((4, tile_n), lambda i: (0, i)),          # dirs
            full(w1t), full(b1t),
            full(w2t), full(b2t),
            full(w3t), full(b3t),
        ],
        out_specs=pl.BlockSpec((OUT_DIM, tile_n), lambda i: (0, i)),
        scratch_shapes=[pltpu.VMEM((IN_DIM, tile_n), jnp.float32)],
    )

    flops = 2 * n_pad * (IN_DIM * C + C * C + C * OUT_DIM)
    transcendentals = n_pad * (4 + 2 * C + OUT_DIM)        # sin/cos + 2 tanh layers + exp
    bytes_accessed = n_pad * (4 + OUT_DIM) * 4 + 8 * 1024  # dirs + out + weights

    out_t = pl.pallas_call(
        _neubtf_kernel,
        out_shape=jax.ShapeDtypeStruct((OUT_DIM, n_pad), jnp.float32),
        grid_spec=grid_spec,
        compiler_params=pltpu.CompilerParams(
            dimension_semantics=("parallel",)),
        cost_estimate=pl.CostEstimate(
            flops=flops, transcendentals=transcendentals,
            bytes_accessed=bytes_accessed),
    )(dirs, w1t, b1t, w2t, b2t, w3t, b3t)

    return out_t[:, :n].T                     # back to point-major (N, 3)


def init_params(key):
    """Deterministic nn.Linear-style init for the 3-layer MLP (w: (in,out), b: (1,out))."""
    ks = jax.random.split(key, 6)

    def linear(kw, kb, fan_in, fan_out):
        bound = 1.0 / jnp.sqrt(fan_in)
        w = jax.random.uniform(kw, (fan_in, fan_out), jnp.float32, -bound, bound)
        b = jax.random.uniform(kb, (1, fan_out), jnp.float32, -bound, bound)
        return w, b

    w1, b1 = linear(ks[0], ks[1], IN_DIM, C)
    w2, b2 = linear(ks[2], ks[3], C, C)
    w3, b3 = linear(ks[4], ks[5], C, OUT_DIM)
    return (w1, b1, w2, b2, w3, b3)


def _posenc_reference(wo):
    feats = [wo]
    for l in range(L):
        f = (2.0 ** l) * wo
        feats.append(jnp.sin(f))
        feats.append(jnp.cos(f))
    return jnp.concatenate(feats, axis=-1)


def neubtf_reference(uv, wo, wi, params):
    """Pure-JAX reference (mirrors the PyTorch module)."""
    del uv
    w1, b1, w2, b2, w3, b3 = params
    x = jnp.concatenate([_posenc_reference(wo), wi], axis=-1)
    h = x @ w1 + b1
    h = h * jax.nn.sigmoid(h)
    h = h @ w2 + b2
    h = h * jax.nn.sigmoid(h)
    return jnp.exp(h @ w3 + b3)


if __name__ == "__main__":
    key = jax.random.PRNGKey(0)
    kp, kuv, kwo, kwi = jax.random.split(key, 4)
    params = init_params(kp)

    # Main check: tile-aligned N, grid of 4 parallel steps.
    N = 8192
    uv = jax.random.uniform(kuv, (N, 2), jnp.float32)
    wo = jax.random.uniform(kwo, (N, 2), jnp.float32, -1.0, 1.0)
    wi = jax.random.uniform(kwi, (N, 2), jnp.float32, -1.0, 1.0)

    out = jax.block_until_ready(neubtf_forward(uv, wo, wi, params, tile_n=2048))
    ref = neubtf_reference(uv, wo, wi, params)
    assert out.shape == (N, 3) and out.dtype == jnp.float32
    assert jnp.allclose(out, ref, rtol=1e-4, atol=1e-5), "mismatch vs reference"

    # Ragged-N check (exercises the padding path).
    N2 = 1000
    out2 = jax.block_until_ready(
        neubtf_forward(uv[:N2], wo[:N2], wi[:N2], params, tile_n=2048))
    assert out2.shape == (N2, 3)
    assert jnp.allclose(out2, ref[:N2], rtol=1e-4, atol=1e-5), "ragged mismatch"

    print("KERNEL_OK")
</pallas_src>

<mosaic_0001>
module attributes {stable_mosaic.version = 11 : i64} {
  func.func @_neubtf_kernel(%arg0: i32, %arg1: memref<4x2048xf32, #tpu.memory_space<vmem>>, %arg2: memref<32x20xf32, #tpu.memory_space<vmem>>, %arg3: memref<32x1xf32, #tpu.memory_space<vmem>>, %arg4: memref<32x32xf32, #tpu.memory_space<vmem>>, %arg5: memref<32x1xf32, #tpu.memory_space<vmem>>, %arg6: memref<3x32xf32, #tpu.memory_space<vmem>>, %arg7: memref<3x1xf32, #tpu.memory_space<vmem>>, %arg8: memref<3x2048xf32, #tpu.memory_space<vmem>>, %arg9: memref<20x2048xf32, #tpu.memory_space<vmem>>) attributes {dimension_semantics = [#tpu.dimension_semantics<parallel>], iteration_bounds = array<i64: 4>, scalar_prefetch = 0 : i64, scratch_operands = 1 : i64, tpu.core_type = #tpu.core_type<tc>, window_params = [{transform_indices = @transform_0, window_bounds = array<i64: 4, 2048>}, {pipeline_mode = #tpu.pipeline_mode<synchronous>, transform_indices = @transform_1, window_bounds = array<i64: 32, 20>}, {pipeline_mode = #tpu.pipeline_mode<synchronous>, transform_indices = @transform_2, window_bounds = array<i64: 32, 1>}, {pipeline_mode = #tpu.pipeline_mode<synchronous>, transform_indices = @transform_3, window_bounds = array<i64: 32, 32>}, {pipeline_mode = #tpu.pipeline_mode<synchronous>, transform_indices = @transform_4, window_bounds = array<i64: 32, 1>}, {pipeline_mode = #tpu.pipeline_mode<synchronous>, transform_indices = @transform_5, window_bounds = array<i64: 3, 32>}, {pipeline_mode = #tpu.pipeline_mode<synchronous>, transform_indices = @transform_6, window_bounds = array<i64: 3, 1>}, {transform_indices = @transform_7, window_bounds = array<i64: 3, 2048>}]} {
    %c0 = arith.constant 0 : index
    %c0_0 = arith.constant 0 : index
    %0 = vector.load %arg1[%c0, %c0_0] : memref<4x2048xf32, #tpu.memory_space<vmem>>, vector<4x2048xf32>
    %1 = vector.extract_strided_slice %0 {offsets = [0, 0], sizes = [2, 2048], strides = [1, 1]} : vector<4x2048xf32> to vector<2x2048xf32>
    %2 = math.sin %1 : vector<2x2048xf32>
    %3 = math.cos %1 : vector<2x2048xf32>
    %cst = arith.constant 2.000000e+00 : f32
    %4 = vector.broadcast %cst : f32 to vector<2x2048xf32>
    %5 = arith.mulf %4, %2 : vector<2x2048xf32>
    %6 = arith.mulf %5, %3 : vector<2x2048xf32>
    %cst_1 = arith.constant 2.000000e+00 : f32
    %7 = vector.broadcast %cst_1 : f32 to vector<2x2048xf32>
    %8 = arith.mulf %7, %2 : vector<2x2048xf32>
    %9 = arith.mulf %8, %2 : vector<2x2048xf32>
    %cst_2 = arith.constant 1.000000e+00 : f32
    %10 = vector.broadcast %cst_2 : f32 to vector<2x2048xf32>
    %11 = arith.subf %10, %9 : vector<2x2048xf32>
    %cst_3 = arith.constant 2.000000e+00 : f32
    %12 = vector.broadcast %cst_3 : f32 to vector<2x2048xf32>
    %13 = arith.mulf %12, %6 : vector<2x2048xf32>
    %14 = arith.mulf %13, %11 : vector<2x2048xf32>
    %cst_4 = arith.constant 2.000000e+00 : f32
    %15 = vector.broadcast %cst_4 : f32 to vector<2x2048xf32>
    %16 = arith.mulf %15, %6 : vector<2x2048xf32>
    %17 = arith.mulf %16, %6 : vector<2x2048xf32>
    %cst_5 = arith.constant 1.000000e+00 : f32
    %18 = vector.broadcast %cst_5 : f32 to vector<2x2048xf32>
    %19 = arith.subf %18, %17 : vector<2x2048xf32>
    %cst_6 = arith.constant 2.000000e+00 : f32
    %20 = vector.broadcast %cst_6 : f32 to vector<2x2048xf32>
    %21 = arith.mulf %20, %14 : vector<2x2048xf32>
    %22 = arith.mulf %21, %19 : vector<2x2048xf32>
    %cst_7 = arith.constant 2.000000e+00 : f32
    %23 = vector.broadcast %cst_7 : f32 to vector<2x2048xf32>
    %24 = arith.mulf %23, %14 : vector<2x2048xf32>
    %25 = arith.mulf %24, %14 : vector<2x2048xf32>
    %cst_8 = arith.constant 1.000000e+00 : f32
    %26 = vector.broadcast %cst_8 : f32 to vector<2x2048xf32>
    %27 = arith.subf %26, %25 : vector<2x2048xf32>
    %c0_9 = arith.constant 0 : index
    %c0_10 = arith.constant 0 : index
    %28 = vector.load %arg9[%c0_9, %c0_10] : memref<20x2048xf32, #tpu.memory_space<vmem>>, vector<2x2048xf32>
    tpu.vector_store %arg9[%c0_9, %c0_10], %1 {strides = array<i32>} : memref<20x2048xf32, #tpu.memory_space<vmem>>, vector<2x2048xf32>,
    %c2 = arith.constant 2 : index
    %c0_11 = arith.constant 0 : index
    %29 = vector.load %arg9[%c2, %c0_11] : memref<20x2048xf32, #tpu.memory_space<vmem>>, vector<2x2048xf32>
    tpu.vector_store %arg9[%c2, %c0_11], %2 {strides = array<i32>} : memref<20x2048xf32, #tpu.memory_space<vmem>>, vector<2x2048xf32>,
    %c4 = arith.constant 4 : index
    %c0_12 = arith.constant 0 : index
    %30 = vector.load %arg9[%c4, %c0_12] : memref<20x2048xf32, #tpu.memory_space<vmem>>, vector<2x2048xf32>
    tpu.vector_store %arg9[%c4, %c0_12], %3 {strides = array<i32>} : memref<20x2048xf32, #tpu.memory_space<vmem>>, vector<2x2048xf32>,
    %c6 = arith.constant 6 : index
    %c0_13 = arith.constant 0 : index
    %31 = vector.load %arg9[%c6, %c0_13] : memref<20x2048xf32, #tpu.memory_space<vmem>>, vector<2x2048xf32>
    tpu.vector_store %arg9[%c6, %c0_13], %6 {strides = array<i32>} : memref<20x2048xf32, #tpu.memory_space<vmem>>, vector<2x2048xf32>,
    %c8 = arith.constant 8 : index
    %c0_14 = arith.constant 0 : index
    %32 = vector.load %arg9[%c8, %c0_14] : memref<20x2048xf32, #tpu.memory_space<vmem>>, vector<2x2048xf32>
    tpu.vector_store %arg9[%c8, %c0_14], %11 {strides = array<i32>} : memref<20x2048xf32, #tpu.memory_space<vmem>>, vector<2x2048xf32>,
    %c10 = arith.constant 10 : index
    %c0_15 = arith.constant 0 : index
    %33 = vector.load %arg9[%c10, %c0_15] : memref<20x2048xf32, #tpu.memory_space<vmem>>, vector<2x2048xf32>
    tpu.vector_store %arg9[%c10, %c0_15], %14 {strides = array<i32>} : memref<20x2048xf32, #tpu.memory_space<vmem>>, vector<2x2048xf32>,
    %c12 = arith.constant 12 : index
    %c0_16 = arith.constant 0 : index
    %34 = vector.load %arg9[%c12, %c0_16] : memref<20x2048xf32, #tpu.memory_space<vmem>>, vector<2x2048xf32>
    tpu.vector_store %arg9[%c12, %c0_16], %19 {strides = array<i32>} : memref<20x2048xf32, #tpu.memory_space<vmem>>, vector<2x2048xf32>,
    %c14 = arith.constant 14 : index
    %c0_17 = arith.constant 0 : index
    %35 = vector.load %arg9[%c14, %c0_17] : memref<20x2048xf32, #tpu.memory_space<vmem>>, vector<2x2048xf32>
    tpu.vector_store %arg9[%c14, %c0_17], %22 {strides = array<i32>} : memref<20x2048xf32, #tpu.memory_space<vmem>>, vector<2x2048xf32>,
    %c16 = arith.constant 16 : index
    %c0_18 = arith.constant 0 : index
    %36 = vector.load %arg9[%c16, %c0_18] : memref<20x2048xf32, #tpu.memory_space<vmem>>, vector<2x2048xf32>
    tpu.vector_store %arg9[%c16, %c0_18], %27 {strides = array<i32>} : memref<20x2048xf32, #tpu.memory_space<vmem>>, vector<2x2048xf32>,
    %37 = vector.extract_strided_slice %0 {offsets = [2, 0], sizes = [2, 2048], strides = [1, 1]} : vector<4x2048xf32> to vector<2x2048xf32>
    %c18 = arith.constant 18 : index
    %c0_19 = arith.constant 0 : index
    %38 = vector.load %arg9[%c18, %c0_19] : memref<20x2048xf32, #tpu.memory_space<vmem>>, vector<2x2048xf32>
    tpu.vector_store %arg9[%c18, %c0_19], %37 {strides = array<i32>} : memref<20x2048xf32, #tpu.memory_space<vmem>>, vector<2x2048xf32>,
    %c0_20 = arith.constant 0 : index
    %c0_21 = arith.constant 0 : index
    %39 = vector.load %arg2[%c0_20, %c0_21] : memref<32x20xf32, #tpu.memory_space<vmem>>, vector<32x20xf32>
    %c0_22 = arith.constant 0 : index
    %c0_23 = arith.constant 0 : index
    %40 = vector.load %arg9[%c0_22, %c0_23] : memref<20x2048xf32, #tpu.memory_space<vmem>>, vector<20x2048xf32>
    %cst_24 = arith.constant dense<0.000000e+00> : vector<32x2048xf32>
    %41 = tpu.matmul %39, %40, %cst_24 {dimension_numbers = #tpu.dot_dimension_numbers<[1], [0], [0], [1], [0, 0, 1, 1], [], []>} : vector<32x20xf32>, vector<20x2048xf32>, vector<32x2048xf32> -> vector<32x2048xf32>
    %c0_25 = arith.constant 0 : index
    %c0_26 = arith.constant 0 : index
    %42 = vector.load %arg3[%c0_25, %c0_26] : memref<32x1xf32, #tpu.memory_space<vmem>>, vector<32x1xf32>
    %43 = vector.broadcast %42 : vector<32x1xf32> to vector<32x2048xf32>
    %44 = arith.addf %41, %43 : vector<32x2048xf32>
    %cst_27 = arith.constant 5.000000e-01 : f32
    %45 = vector.broadcast %cst_27 : f32 to vector<32x2048xf32>
    %46 = arith.mulf %45, %44 : vector<32x2048xf32>
    %47 = math.tanh %46 : vector<32x2048xf32>
    %cst_28 = arith.constant 1.000000e+00 : f32
    %48 = vector.broadcast %cst_28 : f32 to vector<32x2048xf32>
    %49 = arith.addf %47, %48 : vector<32x2048xf32>
    %cst_29 = arith.constant 5.000000e-01 : f32
    %50 = vector.broadcast %cst_29 : f32 to vector<32x2048xf32>
    %51 = arith.mulf %50, %49 : vector<32x2048xf32>
    %52 = arith.mulf %44, %51 : vector<32x2048xf32>
    %c0_30 = arith.constant 0 : index
    %c0_31 = arith.constant 0 : index
    %53 = vector.load %arg4[%c0_30, %c0_31] : memref<32x32xf32, #tpu.memory_space<vmem>>, vector<32x32xf32>
    %cst_32 = arith.constant dense<0.000000e+00> : vector<32x2048xf32>
    %54 = tpu.matmul %53, %52, %cst_32 {dimension_numbers = #tpu.dot_dimension_numbers<[1], [0], [0], [1], [0, 0, 1, 1], [], []>} : vector<32x32xf32>, vector<32x2048xf32>, vector<32x2048xf32> -> vector<32x2048xf32>
    %c0_33 = arith.constant 0 : index
    %c0_34 = arith.constant 0 : index
    %55 = vector.load %arg5[%c0_33, %c0_34] : memref<32x1xf32, #tpu.memory_space<vmem>>, vector<32x1xf32>
    %56 = vector.broadcast %55 : vector<32x1xf32> to vector<32x2048xf32>
    %57 = arith.addf %54, %56 : vector<32x2048xf32>
    %cst_35 = arith.constant 5.000000e-01 : f32
    %58 = vector.broadcast %cst_35 : f32 to vector<32x2048xf32>
    %59 = arith.mulf %58, %57 : vector<32x2048xf32>
    %60 = math.tanh %59 : vector<32x2048xf32>
    %cst_36 = arith.constant 1.000000e+00 : f32
    %61 = vector.broadcast %cst_36 : f32 to vector<32x2048xf32>
    %62 = arith.addf %60, %61 : vector<32x2048xf32>
    %cst_37 = arith.constant 5.000000e-01 : f32
    %63 = vector.broadcast %cst_37 : f32 to vector<32x2048xf32>
    %64 = arith.mulf %63, %62 : vector<32x2048xf32>
    %65 = arith.mulf %57, %64 : vector<32x2048xf32>
    %c0_38 = arith.constant 0 : index
    %c0_39 = arith.constant 0 : index
    %66 = vector.load %arg6[%c0_38, %c0_39] : memref<3x32xf32, #tpu.memory_space<vmem>>, vector<3x32xf32>
    %cst_40 = arith.constant dense<0.000000e+00> : vector<3x2048xf32>
    %67 = tpu.matmul %66, %65, %cst_40 {dimension_numbers = #tpu.dot_dimension_numbers<[1], [0], [0], [1], [0, 0, 1, 1], [], []>} : vector<3x32xf32>, vector<32x2048xf32>, vector<3x2048xf32> -> vector<3x2048xf32>
    %c0_41 = arith.constant 0 : index
    %c0_42 = arith.constant 0 : index
    %68 = vector.load %arg7[%c0_41, %c0_42] : memref<3x1xf32, #tpu.memory_space<vmem>>, vector<3x1xf32>
    %69 = vector.broadcast %68 : vector<3x1xf32> to vector<3x2048xf32>
    %70 = arith.addf %67, %69 : vector<3x2048xf32>
    %71 = math.exp %70 : vector<3x2048xf32>
    %c0_43 = arith.constant 0 : index
    %c0_44 = arith.constant 0 : index
    %72 = vector.load %arg8[%c0_43, %c0_44] : memref<3x2048xf32, #tpu.memory_space<vmem>>, vector<3x2048xf32>
    tpu.vector_store %arg8[%c0_43, %c0_44], %71 {strides = array<i32>} : memref<3x2048xf32, #tpu.memory_space<vmem>>, vector<3x2048xf32>,
    return
  }
  func.func @transform_0(%arg0: i32) -> (i32, i32) {
    %c0_i32 = arith.constant 0 : i32
    %c0_i32_0 = arith.constant 0 : i32
    return %c0_i32, %arg0 : i32, i32
  }
  func.func @transform_1(%arg0: i32) -> (i32, i32) {
    %c0_i32 = arith.constant 0 : i32
    %c0_i32_0 = arith.constant 0 : i32
    %c0_i32_1 = arith.constant 0 : i32
    return %c0_i32, %c0_i32_0 : i32, i32
  }
  func.func @transform_2(%arg0: i32) -> (i32, i32) {
    %c0_i32 = arith.constant 0 : i32
    %c0_i32_0 = arith.constant 0 : i32
    %c0_i32_1 = arith.constant 0 : i32
    return %c0_i32, %c0_i32_0 : i32, i32
  }
  func.func @transform_3(%arg0: i32) -> (i32, i32) {
    %c0_i32 = arith.constant 0 : i32
    %c0_i32_0 = arith.constant 0 : i32
    %c0_i32_1 = arith.constant 0 : i32
    return %c0_i32, %c0_i32_0 : i32, i32
  }
  func.func @transform_4(%arg0: i32) -> (i32, i32) {
    %c0_i32 = arith.constant 0 : i32
    %c0_i32_0 = arith.constant 0 : i32
    %c0_i32_1 = arith.constant 0 : i32
    return %c0_i32, %c0_i32_0 : i32, i32
  }
  func.func @transform_5(%arg0: i32) -> (i32, i32) {
    %c0_i32 = arith.constant 0 : i32
    %c0_i32_0 = arith.constant 0 : i32
    %c0_i32_1 = arith.constant 0 : i32
    return %c0_i32, %c0_i32_0 : i32, i32
  }
  func.func @transform_6(%arg0: i32) -> (i32, i32) {
    %c0_i32 = arith.constant 0 : i32
    %c0_i32_0 = arith.constant 0 : i32
    %c0_i32_1 = arith.constant 0 : i32
    return %c0_i32, %c0_i32_0 : i32, i32
  }
  func.func @transform_7(%arg0: i32) -> (i32, i32) {
    %c0_i32 = arith.constant 0 : i32
    %c0_i32_0 = arith.constant 0 : i32
    return %c0_i32, %arg0 : i32, i32
  }
}

</mosaic_0001>

<llo_original>
// kernel: neubtf_forward.1
$region0: #{neubtf_forward.1}
  #allocation0 [shape = 'u32[]', space=smem, size = 0x4, offset = 0x4, fixed_abs, tag = 'smem constant byte address 0x4 - core index']
  #allocation1 [shape = 'u32[144,128]{1,0:T(1,128)}', space=vmem, size = 0x12000, scoped, tag = 'internal scratch']
  #allocation2 [shape = 'f32[20,2048]{1,0:T(8,128)}', space=vmem, size = 0x30000, scoped, tag = 'scratch operand']
  %s0 = inlined_call_operand.vmem [shape: f32[4,8192], index: 0, kind: input, shape index: {}]
  %s1 = inlined_call_operand.vmem [shape: f32[32,20], index: 1, kind: input, shape index: {}]
  %s2 = inlined_call_operand.vmem [shape: f32[32,1], index: 2, kind: input, shape index: {}]
  %s3 = inlined_call_operand.vmem [shape: f32[32,32], index: 3, kind: input, shape index: {}]
  %s4 = inlined_call_operand.vmem [shape: f32[32,1], index: 4, kind: input, shape index: {}]
  %s5 = inlined_call_operand.vmem [shape: f32[3,32], index: 5, kind: input, shape index: {}]
  %s6 = inlined_call_operand.vmem [shape: f32[3,1], index: 6, kind: input, shape index: {}]
  %s7 = inlined_call_operand.hbm [shape: f32[3,8192], index: 7, kind: output, shape index: {}]
  %s8 = sld [smem:[#allocation0]]
  $region61: #{neubtf_forward.1} parent=0
    _
  %s10 = ssub.s32 1, %s8
  %s11 = scalar_select 0, %s10, %s8
  $region1: #{neubtf_forward.1} parent=0
    #allocation3 [shape = 'u8[65536]{0}', space=vmem, size = 0x10000, scoped, tag = 'output window, operand 0']
    #allocation4 [shape = 's32[2]{0}', space=sflag, size = 0x8, scoped, tag = 'scoped memory for neubtf_forward.1']
    %12 = vsyncpa [#allocation4], 0
    %s13 = scalar_lea.sflag [#allocation4], 1
    %14 = vsyncpa %s13, 0
    loop: start=0, step=1, limit=6
    $region2: #{neubtf_forward.1} parent=1 // loop_pre_header
      _
    $region3: #{neubtf_forward.1} parent=1 // loop_header
      %s16 = sphi 0, %s20
      %p17 = scmp.ge.s32.totalorder %s16, 6
      %s26 = sphi 0, %s28
      %s29 = sphi 0, %s26
      %s30 = sphi 0, %s29
      %s46 = sphi 0, %s30
      %s50 = sphi 0, %s50
      %s52 = sphi 0, %s50
      %s53 = sphi 0, %s52
      %s67 = sphi 0, %s53
      %s71 = sphi 0, %s71
      %s73 = sphi 0, %s71
      %s74 = sphi 0, %s73
      %s88 = sphi 0, %s74
      %s92 = sphi 0, %s92
      %s94 = sphi 0, %s92
      %s95 = sphi 0, %s94
      %s109 = sphi 0, %s95
      %s113 = sphi 0, %s113
      %s115 = sphi 0, %s113
      %s116 = sphi 0, %s115
      %s130 = sphi 0, %s116
      %s134 = sphi 0, %s134
      %s136 = sphi 0, %s134
      %s137 = sphi 0, %s136
      %s151 = sphi 0, %s137
      %s155 = sphi 0, %s155
      %s157 = sphi 0, %s155
      %s158 = sphi 0, %s157
      %s172 = sphi 0, %s158
      %s178 = sphi 0, %s180
      %s181 = sphi 0, %s178
      %s182 = sphi 0, %s181
      %s198 = sphi 0, %s182
    $region4: #{neubtf_forward.1} parent=1 // loop_header_branch
      %19 = sbr.rel (%p17) target = $region8
    $region5: #{neubtf_forward.1} parent=1 // loop_body
      %s21 = ssub.s32 %s16, 1
      %s22 = ssub.s32 %s16, 2
      %s23 = sadd.s32 %s16, 1
      %s24 = ssub.s32 %s16, %s23
      %p25 = scmp.eq.s32.totalorder %s24, 0
      %s27 = sadd.s32 %s26, 1
      %s28 = scalar_select %p25, %s26, %s27
      %p31 = pneg %p25
      %p32 = scmp.eq.s32.totalorder %s16, 3
      %p33 = por %p31, %p32
      %p34 = scmp.ne.s32.totalorder %s26, %s29
      %p35 = scmp.eq.s32.totalorder %s16, 0
      %p36 = por %p34, %p35
      %p37 = scmp.ne.s32.totalorder %s26, %s29
      %p38 = scmp.eq.s32.totalorder %s21, 3
      %p39 = por %p37, %p38
      %p40 = scmp.ne.s32.totalorder %s29, %s30
      %p41 = scmp.eq.s32.totalorder %s21, 0
      %p42 = por %p40, %p41
      %p43 = scmp.ne.s32.totalorder %s29, %s30
      %p44 = scmp.eq.s32.totalorder %s22, 3
      %p45 = por %p43, %p44
      %p47 = scmp.ne.s32.totalorder %s30, %s46
      %p48 = scmp.eq.s32.totalorder %s22, 0
      %p49 = por %p47, %p48
      %s51 = sadd.s32 %s50, 1
      %p54 = scmp.eq.s32.totalorder %s16, 3
      %p55 = scmp.ne.s32.totalorder %s50, %s52
      %p56 = scmp.eq.s32.totalorder %s16, 0
      %p57 = por %p55, %p56
      %p58 = scmp.ne.s32.totalorder %s50, %s52
      %p59 = scmp.eq.s32.totalorder %s21, 3
      %p60 = por %p58, %p59
      %p61 = scmp.ne.s32.totalorder %s52, %s53
      %p62 = scmp.eq.s32.totalorder %s21, 0
      %p63 = por %p61, %p62
      %p64 = scmp.ne.s32.totalorder %s52, %s53
      %p65 = scmp.eq.s32.totalorder %s22, 3
      %p66 = por %p64, %p65
      %p68 = scmp.ne.s32.totalorder %s53, %s67
      %p69 = scmp.eq.s32.totalorder %s22, 0
      %p70 = por %p68, %p69
      %s72 = sadd.s32 %s71, 1
      %p75 = scmp.eq.s32.totalorder %s16, 3
      %p76 = scmp.ne.s32.totalorder %s71, %s73
      %p77 = scmp.eq.s32.totalorder %s16, 0
      %p78 = por %p76, %p77
      %p79 = scmp.ne.s32.totalorder %s71, %s73
      %p80 = scmp.eq.s32.totalorder %s21, 3
      %p81 = por %p79, %p80
      %p82 = scmp.ne.s32.totalorder %s73, %s74
      %p83 = scmp.eq.s32.totalorder %s21, 0
      %p84 = por %p82, %p83
      %p85 = scmp.ne.s32.totalorder %s73, %s74
      %p86 = scmp.eq.s32.totalorder %s22, 3
      %p87 = por %p85, %p86
      %p89 = scmp.ne.s32.totalorder %s74, %s88
      %p90 = scmp.eq.s32.totalorder %s22, 0
      %p91 = por %p89, %p90
      %s93 = sadd.s32 %s92, 1
      %p96 = scmp.eq.s32.totalorder %s16, 3
      %p97 = scmp.ne.s32.totalorder %s92, %s94
      %p98 = scmp.eq.s32.totalorder %s16, 0
      %p99 = por %p97, %p98
      %p100 = scmp.ne.s32.totalorder %s92, %s94
      %p101 = scmp.eq.s32.totalorder %s21, 3
      %p102 = por %p100, %p101
      %p103 = scmp.ne.s32.totalorder %s94, %s95
      %p104 = scmp.eq.s32.totalorder %s21, 0
      %p105 = por %p103, %p104
      %p106 = scmp.ne.s32.totalorder %s94, %s95
      %p107 = scmp.eq.s32.totalorder %s22, 3
      %p108 = por %p106, %p107
      %p110 = scmp.ne.s32.totalorder %s95, %s109
      %p111 = scmp.eq.s32.totalorder %s22, 0
      %p112 = por %p110, %p111
      %s114 = sadd.s32 %s113, 1
      %p117 = scmp.eq.s32.totalorder %s16, 3
      %p118 = scmp.ne.s32.totalorder %s113, %s115
      %p119 = scmp.eq.s32.totalorder %s16, 0
      %p120 = por %p118, %p119
      %p121 = scmp.ne.s32.totalorder %s113, %s115
      %p122 = scmp.eq.s32.totalorder %s21, 3
      %p123 = por %p121, %p122
      %p124 = scmp.ne.s32.totalorder %s115, %s116
      %p125 = scmp.eq.s32.totalorder %s21, 0
      %p126 = por %p124, %p125
      %p127 = scmp.ne.s32.totalorder %s115, %s116
      %p128 = scmp.eq.s32.totalorder %s22, 3
      %p129 = por %p127, %p128
      %p131 = scmp.ne.s32.totalorder %s116, %s130
      %p132 = scmp.eq.s32.totalorder %s22, 0
      %p133 = por %p131, %p132
      %s135 = sadd.s32 %s134, 1
      %p138 = scmp.eq.s32.totalorder %s16, 3
      %p139 = scmp.ne.s32.totalorder %s134, %s136
      %p140 = scmp.eq.s32.totalorder %s16, 0
      %p141 = por %p139, %p140
      %p142 = scmp.ne.s32.totalorder %s134, %s136
      %p143 = scmp.eq.s32.totalorder %s21, 3
      %p144 = por %p142, %p143
      %p145 = scmp.ne.s32.totalorder %s136, %s137
      %p146 = scmp.eq.s32.totalorder %s21, 0
      %p147 = por %p145, %p146
      %p148 = scmp.ne.s32.totalorder %s136, %s137
      %p149 = scmp.eq.s32.totalorder %s22, 3
      %p150 = por %p148, %p149
      %p152 = scmp.ne.s32.totalorder %s137, %s151
      %p153 = scmp.eq.s32.totalorder %s22, 0
      %p154 = por %p152, %p153
      %s156 = sadd.s32 %s155, 1
      %p159 = scmp.eq.s32.totalorder %s16, 3
      %p160 = scmp.ne.s32.totalorder %s155, %s157
      %p161 = scmp.eq.s32.totalorder %s16, 0
      %p162 = por %p160, %p161
      %p163 = scmp.ne.s32.totalorder %s155, %s157
      %p164 = scmp.eq.s32.totalorder %s21, 3
      %p165 = por %p163, %p164
      %p166 = scmp.ne.s32.totalorder %s157, %s158
      %p167 = scmp.eq.s32.totalorder %s21, 0
      %p168 = por %p166, %p167
      %p169 = scmp.ne.s32.totalorder %s157, %s158
      %p170 = scmp.eq.s32.totalorder %s22, 3
      %p171 = por %p169, %p170
      %p173 = scmp.ne.s32.totalorder %s158, %s172
      %p174 = scmp.eq.s32.totalorder %s22, 0
      %p175 = por %p173, %p174
      %s176 = ssub.s32 %s16, %s23
      %p177 = scmp.eq.s32.totalorder %s176, 0
      %s179 = sadd.s32 %s178, 1
      %s180 = scalar_select %p177, %s178, %s179
      %p183 = pneg %p177
      %p184 = scmp.eq.s32.totalorder %s16, 3
      %p185 = por %p183, %p184
      %p186 = scmp.ne.s32.totalorder %s178, %s181
      %p187 = scmp.eq.s32.totalorder %s16, 0
      %p188 = por %p186, %p187
      %p189 = scmp.ne.s32.totalorder %s178, %s181
      %p190 = scmp.eq.s32.totalorder %s21, 3
      %p191 = por %p189, %p190
      %p192 = scmp.ne.s32.totalorder %s181, %s182
      %p193 = scmp.eq.s32.totalorder %s21, 0
      %p194 = por %p192, %p193
      %p195 = scmp.ne.s32.totalorder %s181, %s182
      %p196 = scmp.eq.s32.totalorder %s22, 3
      %p197 = por %p195, %p196
      %p199 = scmp.ne.s32.totalorder %s182, %s198
      %p200 = scmp.eq.s32.totalorder %s22, 0
      %p201 = por %p199, %p200
      %p202 = scmp.le.s32.totalorder 1, %s16
      %p203 = scmp.lt.s32.totalorder %s16, 5
      %p204 = pnand %p202, %p203
      %p205 = pneg %p204
      // Predicated region
      $region9: #{neubtf_forward.1} parent=5 // pred_check
        _
      $region10: #{neubtf_forward.1} parent=5 // pred_check_branch
        %207 = sbr.rel (%p204) target = $region12
      $region11: #{neubtf_forward.1} parent=5 // pred_region
        %s208 = ssub.s32 %s16, 1
        // Predicated region
        $region13: #{neubtf_forward.1} parent=11 // pred_check
          %p209 = pneg %p63
        $region14: #{neubtf_forward.1} parent=11 // pred_check_branch
          %211 = sbr.rel (%p209) target = $region16
        $region15: #{neubtf_forward.1} parent=11 // pred_region
          _
        $region16: #{neubtf_forward.1} parent=11 // pred_fallthru
          _
        // Predicated region
        $region17: #{neubtf_forward.1} parent=11 // pred_check
          %p212 = pneg %p84
        $region18: #{neubtf_forward.1} parent=11 // pred_check_branch
          %214 = sbr.rel (%p212) target = $region20
        $region19: #{neubtf_forward.1} parent=11 // pred_region
          _
        $region20: #{neubtf_forward.1} parent=11 // pred_fallthru
          _
        // Predicated region
        $region21: #{neubtf_forward.1} parent=11 // pred_check
          %p215 = pneg %p105
        $region22: #{neubtf_forward.1} parent=11 // pred_check_branch
          %217 = sbr.rel (%p215) target = $region24
        $region23: #{neubtf_forward.1} parent=11 // pred_region
          _
        $region24: #{neubtf_forward.1} parent=11 // pred_fallthru
          _
        // Predicated region
        $region25: #{neubtf_forward.1} parent=11 // pred_check
          %p218 = pneg %p126
        $region26: #{neubtf_forward.1} parent=11 // pred_check_branch
          %220 = sbr.rel (%p218) target = $region28
        $region27: #{neubtf_forward.1} parent=11 // pred_region
          _
        $region28: #{neubtf_forward.1} parent=11 // pred_fallthru
          _
        // Predicated region
        $region29: #{neubtf_forward.1} parent=11 // pred_check
          %p221 = pneg %p147
        $region30: #{neubtf_forward.1} parent=11 // pred_check_branch
          %223 = sbr.rel (%p221) target = $region32
        $region31: #{neubtf_forward.1} parent=11 // pred_region
          _
        $region32: #{neubtf_forward.1} parent=11 // pred_fallthru
          _
        // Predicated region
        $region33: #{neubtf_forward.1} parent=11 // pred_check
          %p224 = pneg %p168
        $region34: #{neubtf_forward.1} parent=11 // pred_check_branch
          %226 = sbr.rel (%p224) target = $region36
        $region35: #{neubtf_forward.1} parent=11 // pred_region
          _
        $region36: #{neubtf_forward.1} parent=11 // pred_fallthru
          _
      $region12: #{neubtf_forward.1} parent=5 // pred_fallthru
        _
      %p227 = scmp.lt.s32.totalorder %s16, 4
      // Predicated region
      $region37: #{neubtf_forward.1} parent=5 // pred_check
        %p228 = pneg %p227
      $region38: #{neubtf_forward.1} parent=5 // pred_check_branch
        %230 = sbr.rel (%p228) target = $region40
      $region39: #{neubtf_forward.1} parent=5 // pred_region
        // Predicated region
        $region41: #{neubtf_forward.1} parent=39 // pred_check
          %p231 = pneg %p36
        $region42: #{neubtf_forward.1} parent=39 // pred_check_branch
          %233 = sbr.rel (%p231) target = $region44
        $region43: #{neubtf_forward.1} parent=39 // pred_region
          %s234 = smul.u32 16, %s16
          %p235 = scmp.lt.s32.totalorder %s234, 63
          %s236 = scalar_select %p235, %s234, 63
          %s237 = smul.addr %s236, 4
          %s238 = scalar_lea.vmem %s0, %s237
          %s239 = smul.u32 16, %s16
        $region44: #{neubtf_forward.1} parent=39 // pred_fallthru
          _
      $region40: #{neubtf_forward.1} parent=5 // pred_fallthru
        _
      %p240 = scmp.le.s32.totalorder 1, %s16
      %p241 = scmp.lt.s32.totalorder %s16, 5
      %p242 = pnand %p240, %p241
      %p243 = pneg %p242
      // Predicated region
      $region45: #{neubtf_forward.1} parent=5 // pred_check
        _
      $region46: #{neubtf_forward.1} parent=5 // pred_check_branch
        %245 = sbr.rel (%p242) target = $region48
      $region47: #{neubtf_forward.1} parent=5 // pred_region
        %s246 = ssub.s32 %s16, 1
        %s247 = smul.u32 16, %s21
        %p248 = scmp.lt.s32.totalorder %s247, 63
        %s249 = scalar_select %p248, %s247, 63
        %s250 = smul.addr %s249, 4
        %s251 = scalar_lea.vmem %s0, %s250
        %p252 = pneg %p42
        %p253 = pneg %p39
        %p254 = pneg %p63
        %p255 = pneg %p60
        %p256 = pneg %p84
        %p257 = pneg %p81
        %p258 = pneg %p105
        %p259 = pneg %p102
        %p260 = pneg %p126
        %p261 = pneg %p123
        %p262 = pneg %p147
        %p263 = pneg %p144
        %p264 = pneg %p168
        %p265 = pneg %p165
        %p266 = pneg %p194
        %p267 = pneg %p191
        %s268 = sand.u32 %s181, 1
        %s269 = scalar_lea.sflag [#allocation4], %s268
        %s270 = sand.u32 %s181, 1
        %s271 = smul.addr %s270, 64
        %s272 = scalar_lea.vmem [#allocation3], %s271
        %s273 = smul.u32 16, %s21
        %p274 = scmp.lt.s32.totalorder %s273, 63
        %s275 = scalar_select %p274, %s273, 63
        %s276 = smul.addr %s275, 4
        %s277 = scalar_lea.vmem %s0, %s276
        %s278 = smul.u32 16, %s21
        %s279 = smul.u32 16, %s21
        %v280 = vld [vmem:[%s277] sm:$0xff]
        %v281 = vld [vmem:[%s277 + $0x8] sm:$0xff]
        %v282 = vld [vmem:[%s277 + $0x10] sm:$0xff]
        %v283 = vld [vmem:[%s277 + $0x18] sm:$0xff]
        %v284 = vld [vmem:[%s277 + $0x20] sm:$0xff]
        %v285 = vld [vmem:[%s277 + $0x28] sm:$0xff]
        %v286 = vld [vmem:[%s277 + $0x30] sm:$0xff]
        %v287 = vld [vmem:[%s277 + $0x38] sm:$0xff]
        %v288 = vand.u32 2147483647, %v280
        %vm289 = vcmp.le.f32.partialorder %v288, 0.7853982
        %vm290 = vcmp.lt.s32.totalorder %v280, 0
        %v291 = vand.u32 %v280, 2139095040
        %v292 = vshrl.u32 %v291, 23
        %v293 = vsub.s32 %v292, 127
        %v294 = vand.u32 2147483647, %v280
        %v295 = vand.u32 %v294, 8388607
        %v296 = vor.u32 %v295, 8388608
        %v297 = vsub.s32 0, %v296
        %v298 = vadd.s32 %v293, 1
        %vm299 = vcmp.gt.s32.totalorder %v298, 0
        %v300 = vsel %vm299, %v298, 0
        %v301 = vshrl.u32 %v300, 5
        %v302 = vand.u32 %v300, 31
        %v303 = vsub.s32 32, %v302
        %v304 = vshrl.u32 683565275, %v303
        %v305 = vshll.u32 683565275, %v302
        %v306 = vshrl.u32 2475754826, %v303
        %v307 = vor.u32 %v305, %v306
        %v308 = vshll.u32 2475754826, %v302
        %v309 = vshrl.u32 2131351028, %v303
        %v310 = vor.u32 %v308, %v309
        %v311 = vshll.u32 2131351028, %v302
        %v312 = vshrl.u32 2102212464, %v303
        %v313 = vor.u32 %v311, %v312
        %v314 = vshll.u32 2102212464, %v302
        %v315 = vshrl.u32 920167782, %v303
        %v316 = vor.u32 %v314, %v315
        %v317 = vshll.u32 920167782, %v302
        %v318 = vshrl.u32 1326507024, %v303
        %v319 = vor.u32 %v317, %v318
        %vm320 = vcmp.lt.s32.totalorder %v301, 1
        %vm321 = vcmp.lt.s32.totalorder %v301, 2
        %vm322 = vcmp.lt.s32.totalorder %v301, 3
        %vm323 = vcmp.lt.s32.totalorder %v301, 4
        %v324 = vsel %vm320, %v304, %v307
        %v325 = vsel %vm323, %v313, 2102212464
        %v326 = vsel %vm322, %v310, %v325
        %v327 = vsel %vm321, %v324, %v326
        %v328 = vsel %vm320, %v307, %v310
        %v329 = vsel %vm323, %v316, 920167782
        %v330 = vsel %vm322, %v313, %v329
        %v331 = vsel %vm321, %v328, %v330
        %v332 = vsel %vm320, %v310, %v313
        %v333 = vsel %vm323, %v319, 1326507024
        %v334 = vsel %vm322, %v316, %v333
        %v335 = vsel %vm321, %v332, %v334
        %v336 = vshll.u32 %v296, 8
        %v337 = vmul.u32.u64.compose %v336, %v335
        %v338 = vextract.low.u32 %v337
        %v339 = vextract.high.u32 %v337
        %v340 = vmul.u32.u64.compose %v336, %v331
        %v341 = vextract.low.u32 %v340
        %v342 = vextract.high.u32 %v340
        %v343 = vmul.u32 %v336, %v327
        %v344 = vadd.s32 %v339, %v341
        %vm345 = vc.u32 %v339, %v341
        %v346 = vadd.s32 %v342, 1
        %v347 = vsel %vm345, %v346, %v342
        %v348 = vadd.s32 %v343, %v347
        %v349 = vadd.s32 %v348, 536870912
        %v350 = vshrl.u32 %v349, 30
        %v351 = vshll.u32 %v350, 30
        %v352 = vsub.s32 %v348, %v351
        %vm353 = vcmp.lt.s32.totalorder %v352, 0
        %v354 = vsub.s32 0, %v352
        %v355 = vsel %vm353, %v354, %v352
        %v356 = vclz %v355
        %v357 = vsub.s32 %v356, 2
        %vm358 = vcmp.gt.s32.totalorder 0, %v357
        %v359 = vsel %vm358, 0, %v357
        %v360 = vsub.s32 32, %v359
        %v361 = vshll.u32 %v352, %v359
        %v362 = vshrl.u32 %v344, %v360
        %v363 = vor.u32 %v361, %v362
        %v364 = vsub.s32 4294967266, %v359
        %v365 = vadd.s32 %v364, 127
        %v366 = vshll.u32 %v365, 23
        %v367 = vor.u32 4788187, %v366
        %v368 = vand.u32 2147483647, %v367
        %v370 = vcvt.s32.f32 %v363
        %v371 = vmul.f32 %v370, %v368
        %v372 = vxor.u32 %v371, 2147483648
        %v373 = vsel %vm290, %v372, %v371
        %v374 = vsub.s32 4, %v350
        %v375 = vsel %vm290, %v374, %v350
        %v376 = vsel %vm289, %v280, %v373
        %v377 = vsel %vm289, 0, %v375
        %v378 = vcosq.f32.pop %v376
        %v379 = vsinq.f32.pop %v376
        %vm380 = vweird.f32 %v280
        %v381 = vadd.s32 %v377, 3
        %v382 = vand.u32 %v381, 3
        %vm383 = vcmp.lt.s32.totalorder %v382, 2
        %vm384 = vcmp.eq.s32.totalorder %v382, 0
        %v385 = vxor.u32 %v379, 2147483648
        %v386 = vsel %vm384, %v378, %v385
        %vm387 = vcmp.eq.s32.totalorder %v382, 2
        %v388 = vxor.u32 %v378, 2147483648
        %v389 = vsel %vm387, %v388, %v379
        %v390 = vsel %vm383, %v386, %v389
        %v391 = vsel %vm380, nan, %v390
        %v392 = vand.u32 2147483647, %v281
        %vm393 = vcmp.le.f32.partialorder %v392, 0.7853982
        %vm394 = vcmp.lt.s32.totalorder %v281, 0
        %v395 = vand.u32 %v281, 2139095040
        %v396 = vshrl.u32 %v395, 23
        %v397 = vsub.s32 %v396, 127
        %v398 = vand.u32 2147483647, %v281
        %v399 = vand.u32 %v398, 8388607
        %v400 = vor.u32 %v399, 8388608
        %v401 = vsub.s32 0, %v400
        %v402 = vadd.s32 %v397, 1
        %vm403 = vcmp.gt.s32.totalorder %v402, 0
        %v404 = vsel %vm403, %v402, 0
        %v405 = vshrl.u32 %v404, 5
        %v406 = vand.u32 %v404, 31
        %v407 = vsub.s32 32, %v406
        %v408 = vshrl.u32 683565275, %v407
        %v409 = vshll.u32 683565275, %v406
        %v410 = vshrl.u32 2475754826, %v407
        %v411 = vor.u32 %v409, %v410
        %v412 = vshll.u32 2475754826, %v406
        %v413 = vshrl.u32 2131351028, %v407
        %v414 = vor.u32 %v412, %v413
        %v415 = vshll.u32 2131351028, %v406
        %v416 = vshrl.u32 2102212464, %v407
        %v417 = vor.u32 %v415, %v416
        %v418 = vshll.u32 2102212464, %v406
        %v419 = vshrl.u32 920167782, %v407
        %v420 = vor.u32 %v418, %v419
        %v421 = vshll.u32 920167782, %v406
        %v422 = vshrl.u32 1326507024, %v407
        %v423 = vor.u32 %v421, %v422
        %vm424 = vcmp.lt.s32.totalorder %v405, 1
        %vm425 = vcmp.lt.s32.totalorder %v405, 2
        %vm426 = vcmp.lt.s32.totalorder %v405, 3
        %vm427 = vcmp.lt.s32.totalorder %v405, 4
        %v428 = vsel %vm424, %v408, %v411
        %v429 = vsel %vm427, %v417, 2102212464
        %v430 = vsel %vm426, %v414, %v429
        %v431 = vsel %vm425, %v428, %v430
        %v432 = vsel %vm424, %v411, %v414
        %v433 = vsel %vm427, %v420, 920167782
        %v434 = vsel %vm426, %v417, %v433
        %v435 = vsel %vm425, %v432, %v434
        %v436 = vsel %vm424, %v414, %v417
        %v437 = vsel %vm427, %v423, 1326507024
        %v438 = vsel %vm426, %v420, %v437
        %v439 = vsel %vm425, %v436, %v438
        %v440 = vshll.u32 %v400, 8
        %v441 = vmul.u32.u64.compose %v440, %v439
        %v442 = vextract.low.u32 %v441
        %v443 = vextract.high.u32 %v441
        %v444 = vmul.u32.u64.compose %v440, %v435
        %v445 = vextract.low.u32 %v444
        %v446 = vextract.high.u32 %v444
        %v447 = vmul.u32 %v440, %v431
        %v448 = vadd.s32 %v443, %v445
        %vm449 = vc.u32 %v443, %v445
        %v450 = vadd.s32 %v446, 1
        %v451 = vsel %vm449, %v450, %v446
        %v452 = vadd.s32 %v447, %v451
        %v453 = vadd.s32 %v452, 536870912
        %v454 = vshrl.u32 %v453, 30
        %v455 = vshll.u32 %v454, 30
        %v456 = vsub.s32 %v452, %v455
        %vm457 = vcmp.lt.s32.totalorder %v456, 0
        %v458 = vsub.s32 0, %v456
        %v459 = vsel %vm457, %v458, %v456
        %v460 = vclz %v459
        %v461 = vsub.s32 %v460, 2
        %vm462 = vcmp.gt.s32.totalorder 0, %v461
        %v463 = vsel %vm462, 0, %v461
        %v464 = vsub.s32 32, %v463
        %v465 = vshll.u32 %v456, %v463
        %v466 = vshrl.u32 %v448, %v464
        %v467 = vor.u32 %v465, %v466
        %v468 = vsub.s32 4294967266, %v463
        %v469 = vadd.s32 %v468, 127
        %v470 = vshll.u32 %v469, 23
        %v471 = vor.u32 4788187, %v470
        %v472 = vand.u32 2147483647, %v471
        %v474 = vcvt.s32.f32 %v467
        %v475 = vmul.f32 %v474, %v472
        %v476 = vxor.u32 %v475, 2147483648
        %v477 = vsel %vm394, %v476, %v475
        %v478 = vsub.s32 4, %v454
        %v479 = vsel %vm394, %v478, %v454
        %v480 = vsel %vm393, %v281, %v477
        %v481 = vsel %vm393, 0, %v479
        %v482 = vcosq.f32.pop %v480
        %v483 = vsinq.f32.pop %v480
        %vm484 = vweird.f32 %v281
        %v485 = vadd.s32 %v481, 3
        %v486 = vand.u32 %v485, 3
        %vm487 = vcmp.lt.s32.totalorder %v486, 2
        %vm488 = vcmp.eq.s32.totalorder %v486, 0
        %v489 = vxor.u32 %v483, 2147483648
        %v490 = vsel %vm488, %v482, %v489
        %vm491 = vcmp.eq.s32.totalorder %v486, 2
        %v492 = vxor.u32 %v482, 2147483648
        %v493 = vsel %vm491, %v492, %v483
        %v494 = vsel %vm487, %v490, %v493
        %v495 = vsel %vm484, nan, %v494
        %v496 = vand.u32 2147483647, %v282
        %vm497 = vcmp.le.f32.partialorder %v496, 0.7853982
        %vm498 = vcmp.lt.s32.totalorder %v282, 0
        %v499 = vand.u32 %v282, 2139095040
        %v500 = vshrl.u32 %v499, 23
        %v501 = vsub.s32 %v500, 127
        %v502 = vand.u32 2147483647, %v282
        %v503 = vand.u32 %v502, 8388607
        %v504 = vor.u32 %v503, 8388608
        %v505 = vsub.s32 0, %v504
        %v506 = vadd.s32 %v501, 1
        %vm507 = vcmp.gt.s32.totalorder %v506, 0
        %v508 = vsel %vm507, %v506, 0
        %v509 = vshrl.u32 %v508, 5
        %v510 = vand.u32 %v508, 31
        %v511 = vsub.s32 32, %v510
        %v512 = vshrl.u32 683565275, %v511
        %v513 = vshll.u32 683565275, %v510
        %v514 = vshrl.u32 2475754826, %v511
        %v515 = vor.u32 %v513, %v514
        %v516 = vshll.u32 2475754826, %v510
        %v517 = vshrl.u32 2131351028, %v511
        %v518 = vor.u32 %v516, %v517
        %v519 = vshll.u32 2131351028, %v510
        %v520 = vshrl.u32 2102212464, %v511
        %v521 = vor.u32 %v519, %v520
        %v522 = vshll.u32 2102212464, %v510
        %v523 = vshrl.u32 920167782, %v511
        %v524 = vor.u32 %v522, %v523
        %v525 = vshll.u32 920167782, %v510
        %v526 = vshrl.u32 1326507024, %v511
        %v527 = vor.u32 %v525, %v526
        %vm528 = vcmp.lt.s32.totalorder %v509, 1
        %vm529 = vcmp.lt.s32.totalorder %v509, 2
        %vm530 = vcmp.lt.s32.totalorder %v509, 3
        %vm531 = vcmp.lt.s32.totalorder %v509, 4
        %v532 = vsel %vm528, %v512, %v515
        %v533 = vsel %vm531, %v521, 2102212464
        %v534 = vsel %vm530, %v518, %v533
        %v535 = vsel %vm529, %v532, %v534
        %v536 = vsel %vm528, %v515, %v518
        %v537 = vsel %vm531, %v524, 920167782
        %v538 = vsel %vm530, %v521, %v537
        %v539 = vsel %vm529, %v536, %v538
        %v540 = vsel %vm528, %v518, %v521
        %v541 = vsel %vm531, %v527, 1326507024
        %v542 = vsel %vm530, %v524, %v541
        %v543 = vsel %vm529, %v540, %v542
        %v544 = vshll.u32 %v504, 8
        %v545 = vmul.u32.u64.compose %v544, %v543
        %v546 = vextract.low.u32 %v545
        %v547 = vextract.high.u32 %v545
        %v548 = vmul.u32.u64.compose %v544, %v539
        %v549 = vextract.low.u32 %v548
        %v550 = vextract.high.u32 %v548
        %v551 = vmul.u32 %v544, %v535
        %v552 = vadd.s32 %v547, %v549
        %vm553 = vc.u32 %v547, %v549
        %v554 = vadd.s32 %v550, 1
        %v555 = vsel %vm553, %v554, %v550
        %v556 = vadd.s32 %v551, %v555
        %v557 = vadd.s32 %v556, 536870912
        %v558 = vshrl.u32 %v557, 30
        %v559 = vshll.u32 %v558, 30
        %v560 = vsub.s32 %v556, %v559
        %vm561 = vcmp.lt.s32.totalorder %v560, 0
        %v562 = vsub.s32 0, %v560
        %v563 = vsel %vm561, %v562, %v560
        %v564 = vclz %v563
        %v565 = vsub.s32 %v564, 2
        %vm566 = vcmp.gt.s32.totalorder 0, %v565
        %v567 = vsel %vm566, 0, %v565
        %v568 = vsub.s32 32, %v567
        %v569 = vshll.u32 %v560, %v567
        %v570 = vshrl.u32 %v552, %v568
        %v571 = vor.u32 %v569, %v570
        %v572 = vsub.s32 4294967266, %v567
        %v573 = vadd.s32 %v572, 127
        %v574 = vshll.u32 %v573, 23
        %v575 = vor.u32 4788187, %v574
        %v576 = vand.u32 2147483647, %v575
        %v578 = vcvt.s32.f32 %v571
        %v579 = vmul.f32 %v578, %v576
        %v580 = vxor.u32 %v579, 2147483648
        %v581 = vsel %vm498, %v580, %v579
        %v582 = vsub.s32 4, %v558
        %v583 = vsel %vm498, %v582, %v558
        %v584 = vsel %vm497, %v282, %v581
        %v585 = vsel %vm497, 0, %v583
        %v586 = vcosq.f32.pop %v584
        %v587 = vsinq.f32.pop %v584
        %vm588 = vweird.f32 %v282
        %v589 = vadd.s32 %v585, 3
        %v590 = vand.u32 %v589, 3
        %vm591 = vcmp.lt.s32.totalorder %v590, 2
        %vm592 = vcmp.eq.s32.totalorder %v590, 0
        %v593 = vxor.u32 %v587, 2147483648
        %v594 = vsel %vm592, %v586, %v593
        %vm595 = vcmp.eq.s32.totalorder %v590, 2
        %v596 = vxor.u32 %v586, 2147483648
        %v597 = vsel %vm595, %v596, %v587
        %v598 = vsel %vm591, %v594, %v597
        %v599 = vsel %vm588, nan, %v598
        %v600 = vand.u32 2147483647, %v283
        %vm601 = vcmp.le.f32.partialorder %v600, 0.7853982
        %vm602 = vcmp.lt.s32.totalorder %v283, 0
        %v603 = vand.u32 %v283, 2139095040
        %v604 = vshrl.u32 %v603, 23
        %v605 = vsub.s32 %v604, 127
        %v606 = vand.u32 2147483647, %v283
        %v607 = vand.u32 %v606, 8388607
        %v608 = vor.u32 %v607, 8388608
        %v609 = vsub.s32 0, %v608
        %v610 = vadd.s32 %v605, 1
        %vm611 = vcmp.gt.s32.totalorder %v610, 0
        %v612 = vsel %vm611, %v610, 0
        %v613 = vshrl.u32 %v612, 5
        %v614 = vand.u32 %v612, 31
        %v615 = vsub.s32 32, %v614
        %v616 = vshrl.u32 683565275, %v615
        %v617 = vshll.u32 683565275, %v614
        %v618 = vshrl.u32 2475754826, %v615
        %v619 = vor.u32 %v617, %v618
        %v620 = vshll.u32 2475754826, %v614
        %v621 = vshrl.u32 2131351028, %v615
        %v622 = vor.u32 %v620, %v621
        %v623 = vshll.u32 2131351028, %v614
        %v624 = vshrl.u32 2102212464, %v615
        %v625 = vor.u32 %v623, %v624
        %v626 = vshll.u32 2102212464, %v614
        %v627 = vshrl.u32 920167782, %v615
        %v628 = vor.u32 %v626, %v627
        %v629 = vshll.u32 920167782, %v614
        %v630 = vshrl.u32 1326507024, %v615
        %v631 = vor.u32 %v629, %v630
        %vm632 = vcmp.lt.s32.totalorder %v613, 1
        %vm633 = vcmp.lt.s32.totalorder %v613, 2
        %vm634 = vcmp.lt.s32.totalorder %v613, 3
        %vm635 = vcmp.lt.s32.totalorder %v613, 4
        %v636 = vsel %vm632, %v616, %v619
        %v637 = vsel %vm635, %v625, 2102212464
        %v638 = vsel %vm634, %v622, %v637
        %v639 = vsel %vm633, %v636, %v638
        %v640 = vsel %vm632, %v619, %v622
        %v641 = vsel %vm635, %v628, 920167782
        %v642 = vsel %vm634, %v625, %v641
        %v643 = vsel %vm633, %v640, %v642
        %v644 = vsel %vm632, %v622, %v625
        %v645 = vsel %vm635, %v631, 1326507024
        %v646 = vsel %vm634, %v628, %v645
        %v647 = vsel %vm633, %v644, %v646
        %v648 = vshll.u32 %v608, 8
        %v649 = vmul.u32.u64.compose %v648, %v647
        %v650 = vextract.low.u32 %v649
        %v651 = vextract.high.u32 %v649
        %v652 = vmul.u32.u64.compose %v648, %v643
        %v653 = vextract.low.u32 %v652
        %v654 = vextract.high.u32 %v652
        %v655 = vmul.u32 %v648, %v639
        %v656 = vadd.s32 %v651, %v653
        %vm657 = vc.u32 %v651, %v653
        %v658 = vadd.s32 %v654, 1
        %v659 = vsel %vm657, %v658, %v654
        %v660 = vadd.s32 %v655, %v659
        %v661 = vadd.s32 %v660, 536870912
        %v662 = vshrl.u32 %v661, 30
        %v663 = vshll.u32 %v662, 30
        %v664 = vsub.s32 %v660, %v663
        %vm665 = vcmp.lt.s32.totalorder %v664, 0
        %v666 = vsub.s32 0, %v664
        %v667 = vsel %vm665, %v666, %v664
        %v668 = vclz %v667
        %v669 = vsub.s32 %v668, 2
        %vm670 = vcmp.gt.s32.totalorder 0, %v669
        %v671 = vsel %vm670, 0, %v669
        %v672 = vsub.s32 32, %v671
        %v673 = vshll.u32 %v664, %v671
        %v674 = vshrl.u32 %v656, %v672
        %v675 = vor.u32 %v673, %v674
        %v676 = vsub.s32 4294967266, %v671
        %v677 = vadd.s32 %v676, 127
        %v678 = vshll.u32 %v677, 23
        %v679 = vor.u32 4788187, %v678
        %v680 = vand.u32 2147483647, %v679
        %v682 = vcvt.s32.f32 %v675
        %v683 = vmul.f32 %v682, %v680
        %v684 = vxor.u32 %v683, 2147483648
        %v685 = vsel %vm602, %v684, %v683
        %v686 = vsub.s32 4, %v662
        %v687 = vsel %vm602, %v686, %v662
        %v688 = vsel %vm601, %v283, %v685
        %v689 = vsel %vm601, 0, %v687
        %v690 = vcosq.f32.pop %v688
        %v691 = vsinq.f32.pop %v688
        %vm692 = vweird.f32 %v283
        %v693 = vadd.s32 %v689, 3
        %v694 = vand.u32 %v693, 3
        %vm695 = vcmp.lt.s32.totalorder %v694, 2
        %vm696 = vcmp.eq.s32.totalorder %v694, 0
        %v697 = vxor.u32 %v691, 2147483648
        %v698 = vsel %vm696, %v690, %v697
        %vm699 = vcmp.eq.s32.totalorder %v694, 2
        %v700 = vxor.u32 %v690, 2147483648
        %v701 = vsel %vm699, %v700, %v691
        %v702 = vsel %vm695, %v698, %v701
        %v703 = vsel %vm692, nan, %v702
        %v704 = vand.u32 2147483647, %v284
        %vm705 = vcmp.le.f32.partialorder %v704, 0.7853982
        %vm706 = vcmp.lt.s32.totalorder %v284, 0
        %v707 = vand.u32 %v284, 2139095040
        %v708 = vshrl.u32 %v707, 23
        %v709 = vsub.s32 %v708, 127
        %v710 = vand.u32 2147483647, %v284
        %v711 = vand.u32 %v710, 8388607
        %v712 = vor.u32 %v711, 8388608
        %v713 = vsub.s32 0, %v712
        %v714 = vadd.s32 %v709, 1
        %vm715 = vcmp.gt.s32.totalorder %v714, 0
        %v716 = vsel %vm715, %v714, 0
        %v717 = vshrl.u32 %v716, 5
        %v718 = vand.u32 %v716, 31
        %v719 = vsub.s32 32, %v718
        %v720 = vshrl.u32 683565275, %v719
        %v721 = vshll.u32 683565275, %v718
        %v722 = vshrl.u32 2475754826, %v719
        %v723 = vor.u32 %v721, %v722
        %v724 = vshll.u32 2475754826, %v718
        %v725 = vshrl.u32 2131351028, %v719
        %v726 = vor.u32 %v724, %v725
        %v727 = vshll.u32 2131351028, %v718
        %v728 = vshrl.u32 2102212464, %v719
        %v729 = vor.u32 %v727, %v728
        %v730 = vshll.u32 2102212464, %v718
        %v731 = vshrl.u32 920167782, %v719
        %v732 = vor.u32 %v730, %v731
        %v733 = vshll.u32 920167782, %v718
        %v734 = vshrl.u32 1326507024, %v719
        %v735 = vor.u32 %v733, %v734
        %vm736 = vcmp.lt.s32.totalorder %v717, 1
        %vm737 = vcmp.lt.s32.totalorder %v717, 2
        %vm738 = vcmp.lt.s32.totalorder %v717, 3
        %vm739 = vcmp.lt.s32.totalorder %v717, 4
        %v740 = vsel %vm736, %v720, %v723
        %v741 = vsel %vm739, %v729, 2102212464
        %v742 = vsel %vm738, %v726, %v741
        %v743 = vsel %vm737, %v740, %v742
        %v744 = vsel %vm736, %v723, %v726
        %v745 = vsel %vm739, %v732, 920167782
        %v746 = vsel %vm738, %v729, %v745
        %v747 = vsel %vm737, %v744, %v746
        %v748 = vsel %vm736, %v726, %v729
        %v749 = vsel %vm739, %v735, 1326507024
        %v750 = vsel %vm738, %v732, %v749
        %v751 = vsel %vm737, %v748, %v750
        %v752 = vshll.u32 %v712, 8
        %v753 = vmul.u32.u64.compose %v752, %v751
        %v754 = vextract.low.u32 %v753
        %v755 = vextract.high.u32 %v753
        %v756 = vmul.u32.u64.compose %v752, %v747
        %v757 = vextract.low.u32 %v756
        %v758 = vextract.high.u32 %v756
        %v759 = vmul.u32 %v752, %v743
        %v760 = vadd.s32 %v755, %v757
        %vm761 = vc.u32 %v755, %v757
        %v762 = vadd.s32 %v758, 1
        %v763 = vsel %vm761, %v762, %v758
        %v764 = vadd.s32 %v759, %v763
        %v765 = vadd.s32 %v764, 536870912
        %v766 = vshrl.u32 %v765, 30
        %v767 = vshll.u32 %v766, 30
        %v768 = vsub.s32 %v764, %v767
        %vm769 = vcmp.lt.s32.totalorder %v768, 0
        %v770 = vsub.s32 0, %v768
        %v771 = vsel %vm769, %v770, %v768
        %v772 = vclz %v771
        %v773 = vsub.s32 %v772, 2
        %vm774 = vcmp.gt.s32.totalorder 0, %v773
        %v775 = vsel %vm774, 0, %v773
        %v776 = vsub.s32 32, %v775
        %v777 = vshll.u32 %v768, %v775
        %v778 = vshrl.u32 %v760, %v776
        %v779 = vor.u32 %v777, %v778
        %v780 = vsub.s32 4294967266, %v775
        %v781 = vadd.s32 %v780, 127
        %v782 = vshll.u32 %v781, 23
        %v783 = vor.u32 4788187, %v782
        %v784 = vand.u32 2147483647, %v783
        %v786 = vcvt.s32.f32 %v779
        %v787 = vmul.f32 %v786, %v784
        %v788 = vxor.u32 %v787, 2147483648
        %v789 = vsel %vm706, %v788, %v787
        %v790 = vsub.s32 4, %v766
        %v791 = vsel %vm706, %v790, %v766
        %v792 = vsel %vm705, %v284, %v789
        %v793 = vsel %vm705, 0, %v791
        %v794 = vcosq.f32.pop %v792
        %v795 = vsinq.f32.pop %v792
        %vm796 = vweird.f32 %v284
        %v797 = vadd.s32 %v793, 3
        %v798 = vand.u32 %v797, 3
        %vm799 = vcmp.lt.s32.totalorder %v798, 2
        %vm800 = vcmp.eq.s32.totalorder %v798, 0
        %v801 = vxor.u32 %v795, 2147483648
        %v802 = vsel %vm800, %v794, %v801
        %vm803 = vcmp.eq.s32.totalorder %v798, 2
        %v804 = vxor.u32 %v794, 2147483648
        %v805 = vsel %vm803, %v804, %v795
        %v806 = vsel %vm799, %v802, %v805
        %v807 = vsel %vm796, nan, %v806
        %v808 = vand.u32 2147483647, %v285
        %vm809 = vcmp.le.f32.partialorder %v808, 0.7853982
        %vm810 = vcmp.lt.s32.totalorder %v285, 0
        %v811 = vand.u32 %v285, 2139095040
        %v812 = vshrl.u32 %v811, 23
        %v813 = vsub.s32 %v812, 127
        %v814 = vand.u32 2147483647, %v285
        %v815 = vand.u32 %v814, 8388607
        %v816 = vor.u32 %v815, 8388608
        %v817 = vsub.s32 0, %v816
        %v818 = vadd.s32 %v813, 1
        %vm819 = vcmp.gt.s32.totalorder %v818, 0
        %v820 = vsel %vm819, %v818, 0
        %v821 = vshrl.u32 %v820, 5
        %v822 = vand.u32 %v820, 31
        %v823 = vsub.s32 32, %v822
        %v824 = vshrl.u32 683565275, %v823
        %v825 = vshll.u32 683565275, %v822
        %v826 = vshrl.u32 2475754826, %v823
        %v827 = vor.u32 %v825, %v826
        %v828 = vshll.u32 2475754826, %v822
        %v829 = vshrl.u32 2131351028, %v823
        %v830 = vor.u32 %v828, %v829
        %v831 = vshll.u32 2131351028, %v822
        %v832 = vshrl.u32 2102212464, %v823
        %v833 = vor.u32 %v831, %v832
        %v834 = vshll.u32 2102212464, %v822
        %v835 = vshrl.u32 920167782, %v823
        %v836 = vor.u32 %v834, %v835
        %v837 = vshll.u32 920167782, %v822
        %v838 = vshrl.u32 1326507024, %v823
        %v839 = vor.u32 %v837, %v838
        %vm840 = vcmp.lt.s32.totalorder %v821, 1
        %vm841 = vcmp.lt.s32.totalorder %v821, 2
        %vm842 = vcmp.lt.s32.totalorder %v821, 3
        %vm843 = vcmp.lt.s32.totalorder %v821, 4
        %v844 = vsel %vm840, %v824, %v827
        %v845 = vsel %vm843, %v833, 2102212464
        %v846 = vsel %vm842, %v830, %v845
        %v847 = vsel %vm841, %v844, %v846
        %v848 = vsel %vm840, %v827, %v830
        %v849 = vsel %vm843, %v836, 920167782
        %v850 = vsel %vm842, %v833, %v849
        %v851 = vsel %vm841, %v848, %v850
        %v852 = vsel %vm840, %v830, %v833
        %v853 = vsel %vm843, %v839, 1326507024
        %v854 = vsel %vm842, %v836, %v853
        %v855 = vsel %vm841, %v852, %v854
        %v856 = vshll.u32 %v816, 8
        %v857 = vmul.u32.u64.compose %v856, %v855
        %v858 = vextract.low.u32 %v857
        %v859 = vextract.high.u32 %v857
        %v860 = vmul.u32.u64.compose %v856, %v851
        %v861 = vextract.low.u32 %v860
        %v862 = vextract.high.u32 %v860
        %v863 = vmul.u32 %v856, %v847
        %v864 = vadd.s32 %v859, %v861
        %vm865 = vc.u32 %v859, %v861
        %v866 = vadd.s32 %v862, 1
        %v867 = vsel %vm865, %v866, %v862
        %v868 = vadd.s32 %v863, %v867
        %v869 = vadd.s32 %v868, 536870912
        %v870 = vshrl.u32 %v869, 30
        %v871 = vshll.u32 %v870, 30
        %v872 = vsub.s32 %v868, %v871
        %vm873 = vcmp.lt.s32.totalorder %v872, 0
        %v874 = vsub.s32 0, %v872
        %v875 = vsel %vm873, %v874, %v872
        %v876 = vclz %v875
        %v877 = vsub.s32 %v876, 2
        %vm878 = vcmp.gt.s32.totalorder 0, %v877
        %v879 = vsel %vm878, 0, %v877
        %v880 = vsub.s32 32, %v879
        %v881 = vshll.u32 %v872, %v879
        %v882 = vshrl.u32 %v864, %v880
        %v883 = vor.u32 %v881, %v882
        %v884 = vsub.s32 4294967266, %v879
        %v885 = vadd.s32 %v884, 127
        %v886 = vshll.u32 %v885, 23
        %v887 = vor.u32 4788187, %v886
        %v888 = vand.u32 2147483647, %v887
        %v890 = vcvt.s32.f32 %v883
        %v891 = vmul.f32 %v890, %v888
        %v892 = vxor.u32 %v891, 2147483648
        %v893 = vsel %vm810, %v892, %v891
        %v894 = vsub.s32 4, %v870
        %v895 = vsel %vm810, %v894, %v870
        %v896 = vsel %vm809, %v285, %v893
        %v897 = vsel %vm809, 0, %v895
        %v898 = vcosq.f32.pop %v896
        %v899 = vsinq.f32.pop %v896
        %vm900 = vweird.f32 %v285
        %v901 = vadd.s32 %v897, 3
        %v902 = vand.u32 %v901, 3
        %vm903 = vcmp.lt.s32.totalorder %v902, 2
        %vm904 = vcmp.eq.s32.totalorder %v902, 0
        %v905 = vxor.u32 %v899, 2147483648
        %v906 = vsel %vm904, %v898, %v905
        %vm907 = vcmp.eq.s32.totalorder %v902, 2
        %v908 = vxor.u32 %v898, 2147483648
        %v909 = vsel %vm907, %v908, %v899
        %v910 = vsel %vm903, %v906, %v909
        %v911 = vsel %vm900, nan, %v910
        %v912 = vand.u32 2147483647, %v286
        %vm913 = vcmp.le.f32.partialorder %v912, 0.7853982
        %vm914 = vcmp.lt.s32.totalorder %v286, 0
        %v915 = vand.u32 %v286, 2139095040
        %v916 = vshrl.u32 %v915, 23
        %v917 = vsub.s32 %v916, 127
        %v918 = vand.u32 2147483647, %v286
        %v919 = vand.u32 %v918, 8388607
        %v920 = vor.u32 %v919, 8388608
        %v921 = vsub.s32 0, %v920
        %v922 = vadd.s32 %v917, 1
        %vm923 = vcmp.gt.s32.totalorder %v922, 0
        %v924 = vsel %vm923, %v922, 0
        %v925 = vshrl.u32 %v924, 5
        %v926 = vand.u32 %v924, 31
        %v927 = vsub.s32 32, %v926
        %v928 = vshrl.u32 683565275, %v927
        %v929 = vshll.u32 683565275, %v926
        %v930 = vshrl.u32 2475754826, %v927
        %v931 = vor.u32 %v929, %v930
        %v932 = vshll.u32 2475754826, %v926
        %v933 = vshrl.u32 2131351028, %v927
        %v934 = vor.u32 %v932, %v933
        %v935 = vshll.u32 2131351028, %v926
        %v936 = vshrl.u32 2102212464, %v927
        %v937 = vor.u32 %v935, %v936
        %v938 = vshll.u32 2102212464, %v926
        %v939 = vshrl.u32 920167782, %v927
        %v940 = vor.u32 %v938, %v939
        %v941 = vshll.u32 920167782, %v926
        %v942 = vshrl.u32 1326507024, %v927
        %v943 = vor.u32 %v941, %v942
        %vm944 = vcmp.lt.s32.totalorder %v925, 1
        %vm945 = vcmp.lt.s32.totalorder %v925, 2
        %vm946 = vcmp.lt.s32.totalorder %v925, 3
        %vm947 = vcmp.lt.s32.totalorder %v925, 4
        %v948 = vsel %vm944, %v928, %v931
        %v949 = vsel %vm947, %v937, 2102212464
        %v950 = vsel %vm946, %v934, %v949
        %v951 = vsel %vm945, %v948, %v950
        %v952 = vsel %vm944, %v931, %v934
        %v953 = vsel %vm947, %v940, 920167782
        %v954 = vsel %vm946, %v937, %v953
        %v955 = vsel %vm945, %v952, %v954
        %v956 = vsel %vm944, %v934, %v937
        %v957 = vsel %vm947, %v943, 1326507024
        %v958 = vsel %vm946, %v940, %v957
        %v959 = vsel %vm945, %v956, %v958
        %v960 = vshll.u32 %v920, 8
        %v961 = vmul.u32.u64.compose %v960, %v959
        %v962 = vextract.low.u32 %v961
        %v963 = vextract.high.u32 %v961
        %v964 = vmul.u32.u64.compose %v960, %v955
        %v965 = vextract.low.u32 %v964
        %v966 = vextract.high.u32 %v964
        %v967 = vmul.u32 %v960, %v951
        %v968 = vadd.s32 %v963, %v965
        %vm969 = vc.u32 %v963, %v965
        %v970 = vadd.s32 %v966, 1
        %v971 = vsel %vm969, %v970, %v966
        %v972 = vadd.s32 %v967, %v971
        %v973 = vadd.s32 %v972, 536870912
        %v974 = vshrl.u32 %v973, 30
        %v975 = vshll.u32 %v974, 30
        %v976 = vsub.s32 %v972, %v975
        %vm977 = vcmp.lt.s32.totalorder %v976, 0
        %v978 = vsub.s32 0, %v976
        %v979 = vsel %vm977, %v978, %v976
        %v980 = vclz %v979
        %v981 = vsub.s32 %v980, 2
        %vm982 = vcmp.gt.s32.totalorder 0, %v981
        %v983 = vsel %vm982, 0, %v981
        %v984 = vsub.s32 32, %v983
        %v985 = vshll.u32 %v976, %v983
        %v986 = vshrl.u32 %v968, %v984
        %v987 = vor.u32 %v985, %v986
        %v988 = vsub.s32 4294967266, %v983
        %v989 = vadd.s32 %v988, 127
        %v990 = vshll.u32 %v989, 23
        %v991 = vor.u32 4788187, %v990
        %v992 = vand.u32 2147483647, %v991
        %v994 = vcvt.s32.f32 %v987
        %v995 = vmul.f32 %v994, %v992
        %v996 = vxor.u32 %v995, 2147483648
        %v997 = vsel %vm914, %v996, %v995
        %v998 = vsub.s32 4, %v974
        %v999 = vsel %vm914, %v998, %v974
        %v1000 = vsel %vm913, %v286, %v997
        %v1001 = vsel %vm913, 0, %v999
        %v1002 = vcosq.f32.pop %v1000
        %v1003 = vsinq.f32.pop %v1000
        %vm1004 = vweird.f32 %v286
        %v1005 = vadd.s32 %v1001, 3
        %v1006 = vand.u32 %v1005, 3
        %vm1007 = vcmp.lt.s32.totalorder %v1006, 2
        %vm1008 = vcmp.eq.s32.totalorder %v1006, 0
        %v1009 = vxor.u32 %v1003, 2147483648
        %v1010 = vsel %vm1008, %v1002, %v1009
        %vm1011 = vcmp.eq.s32.totalorder %v1006, 2
        %v1012 = vxor.u32 %v1002, 2147483648
        %v1013 = vsel %vm1011, %v1012, %v1003
        %v1014 = vsel %vm1007, %v1010, %v1013
        %v1015 = vsel %vm1004, nan, %v1014
        %v1016 = vand.u32 2147483647, %v287
        %vm1017 = vcmp.le.f32.partialorder %v1016, 0.7853982
        %vm1018 = vcmp.lt.s32.totalorder %v287, 0
        %v1019 = vand.u32 %v287, 2139095040
        %v1020 = vshrl.u32 %v1019, 23
        %v1021 = vsub.s32 %v1020, 127
        %v1022 = vand.u32 2147483647, %v287
        %v1023 = vand.u32 %v1022, 8388607
        %v1024 = vor.u32 %v1023, 8388608
        %v1025 = vsub.s32 0, %v1024
        %v1026 = vadd.s32 %v1021, 1
        %vm1027 = vcmp.gt.s32.totalorder %v1026, 0
        %v1028 = vsel %vm1027, %v1026, 0
        %v1029 = vshrl.u32 %v1028, 5
        %v1030 = vand.u32 %v1028, 31
        %v1031 = vsub.s32 32, %v1030
        %v1032 = vshrl.u32 683565275, %v1031
        %v1033 = vshll.u32 683565275, %v1030
        %v1034 = vshrl.u32 2475754826, %v1031
        %v1035 = vor.u32 %v1033, %v1034
        %v1036 = vshll.u32 2475754826, %v1030
        %v1037 = vshrl.u32 2131351028, %v1031
        %v1038 = vor.u32 %v1036, %v1037
        %v1039 = vshll.u32 2131351028, %v1030
        %v1040 = vshrl.u32 2102212464, %v1031
        %v1041 = vor.u32 %v1039, %v1040
        %v1042 = vshll.u32 2102212464, %v1030
        %v1043 = vshrl.u32 920167782, %v1031
        %v1044 = vor.u32 %v1042, %v1043
        %v1045 = vshll.u32 920167782, %v1030
        %v1046 = vshrl.u32 1326507024, %v1031
        %v1047 = vor.u32 %v1045, %v1046
        %vm1048 = vcmp.lt.s32.totalorder %v1029, 1
        %vm1049 = vcmp.lt.s32.totalorder %v1029, 2
        %vm1050 = vcmp.lt.s32.totalorder %v1029, 3
        %vm1051 = vcmp.lt.s32.totalorder %v1029, 4
        %v1052 = vsel %vm1048, %v1032, %v1035
        %v1053 = vsel %vm1051, %v1041, 2102212464
        %v1054 = vsel %vm1050, %v1038, %v1053
        %v1055 = vsel %vm1049, %v1052, %v1054
        %v1056 = vsel %vm1048, %v1035, %v1038
        %v1057 = vsel %vm1051, %v1044, 920167782
        %v1058 = vsel %vm1050, %v1041, %v1057
        %v1059 = vsel %vm1049, %v1056, %v1058
        %v1060 = vsel %vm1048, %v1038, %v1041
        %v1061 = vsel %vm1051, %v1047, 1326507024
        %v1062 = vsel %vm1050, %v1044, %v1061
        %v1063 = vsel %vm1049, %v1060, %v1062
        %v1064 = vshll.u32 %v1024, 8
        %v1065 = vmul.u32.u64.compose %v1064, %v1063
        %v1066 = vextract.low.u32 %v1065
        %v1067 = vextract.high.u32 %v1065
        %v1068 = vmul.u32.u64.compose %v1064, %v1059
        %v1069 = vextract.low.u32 %v1068
        %v1070 = vextract.high.u32 %v1068
        %v1071 = vmul.u32 %v1064, %v1055
        %v1072 = vadd.s32 %v1067, %v1069
        %vm1073 = vc.u32 %v1067, %v1069
        %v1074 = vadd.s32 %v1070, 1
        %v1075 = vsel %vm1073, %v1074, %v1070
        %v1076 = vadd.s32 %v1071, %v1075
        %v1077 = vadd.s32 %v1076, 536870912
        %v1078 = vshrl.u32 %v1077, 30
        %v1079 = vshll.u32 %v1078, 30
        %v1080 = vsub.s32 %v1076, %v1079
        %vm1081 = vcmp.lt.s32.totalorder %v1080, 0
        %v1082 = vsub.s32 0, %v1080
        %v1083 = vsel %vm1081, %v1082, %v1080
        %v1084 = vclz %v1083
        %v1085 = vsub.s32 %v1084, 2
        %vm1086 = vcmp.gt.s32.totalorder 0, %v1085
        %v1087 = vsel %vm1086, 0, %v1085
        %v1088 = vsub.s32 32, %v1087
        %v1089 = vshll.u32 %v1080, %v1087
        %v1090 = vshrl.u32 %v1072, %v1088
        %v1091 = vor.u32 %v1089, %v1090
        %v1092 = vsub.s32 4294967266, %v1087
        %v1093 = vadd.s32 %v1092, 127
        %v1094 = vshll.u32 %v1093, 23
        %v1095 = vor.u32 4788187, %v1094
        %v1096 = vand.u32 2147483647, %v1095
        %v1098 = vcvt.s32.f32 %v1091
        %v1099 = vmul.f32 %v1098, %v1096
        %v1100 = vxor.u32 %v1099, 2147483648
        %v1101 = vsel %vm1018, %v1100, %v1099
        %v1102 = vsub.s32 4, %v1078
        %v1103 = vsel %vm1018, %v1102, %v1078
        %v1104 = vsel %vm1017, %v287, %v1101
        %v1105 = vsel %vm1017, 0, %v1103
        %v1106 = vcosq.f32.pop %v1104
        %v1107 = vsinq.f32.pop %v1104
        %vm1108 = vweird.f32 %v287
        %v1109 = vadd.s32 %v1105, 3
        %v1110 = vand.u32 %v1109, 3
        %vm1111 = vcmp.lt.s32.totalorder %v1110, 2
        %vm1112 = vcmp.eq.s32.totalorder %v1110, 0
        %v1113 = vxor.u32 %v1107, 2147483648
        %v1114 = vsel %vm1112, %v1106, %v1113
        %vm1115 = vcmp.eq.s32.totalorder %v1110, 2
        %v1116 = vxor.u32 %v1106, 2147483648
        %v1117 = vsel %vm1115, %v1116, %v1107
        %v1118 = vsel %vm1111, %v1114, %v1117
        %v1119 = vsel %vm1108, nan, %v1118
        %v1120 = vand.u32 2147483647, %v280
        %vm1121 = vcmp.le.f32.partialorder %v1120, 0.7853982
        %vm1122 = vcmp.lt.s32.totalorder %v280, 0
        %v1123 = vand.u32 %v280, 2139095040
        %v1124 = vshrl.u32 %v1123, 23
        %v1125 = vsub.s32 %v1124, 127
        %v1126 = vand.u32 2147483647, %v280
        %v1127 = vand.u32 %v1126, 8388607
        %v1128 = vor.u32 %v1127, 8388608
        %v1129 = vsub.s32 0, %v1128
        %v1130 = vadd.s32 %v1125, 1
        %vm1131 = vcmp.gt.s32.totalorder %v1130, 0
        %v1132 = vsel %vm1131, %v1130, 0
        %v1133 = vshrl.u32 %v1132, 5
        %v1134 = vand.u32 %v1132, 31
        %v1135 = vsub.s32 32, %v1134
        %v1136 = vshrl.u32 683565275, %v1135
        %v1137 = vshll.u32 683565275, %v1134
        %v1138 = vshrl.u32 2475754826, %v1135
        %v1139 = vor.u32 %v1137, %v1138
        %v1140 = vshll.u32 2475754826, %v1134
        %v1141 = vshrl.u32 2131351028, %v1135
        %v1142 = vor.u32 %v1140, %v1141
        %v1143 = vshll.u32 2131351028, %v1134
        %v1144 = vshrl.u32 2102212464, %v1135
        %v1145 = vor.u32 %v1143, %v1144
        %v1146 = vshll.u32 2102212464, %v1134
        %v1147 = vshrl.u32 920167782, %v1135
        %v1148 = vor.u32 %v1146, %v1147
        %v1149 = vshll.u32 920167782, %v1134
        %v1150 = vshrl.u32 1326507024, %v1135
        %v1151 = vor.u32 %v1149, %v1150
        %vm1152 = vcmp.lt.s32.totalorder %v1133, 1
        %vm1153 = vcmp.lt.s32.totalorder %v1133, 2
        %vm1154 = vcmp.lt.s32.totalorder %v1133, 3
        %vm1155 = vcmp.lt.s32.totalorder %v1133, 4
        %v1156 = vsel %vm1152, %v1136, %v1139
        %v1157 = vsel %vm1155, %v1145, 2102212464
        %v1158 = vsel %vm1154, %v1142, %v1157
        %v1159 = vsel %vm1153, %v1156, %v1158
        %v1160 = vsel %vm1152, %v1139, %v1142
        %v1161 = vsel %vm1155, %v1148, 920167782
        %v1162 = vsel %vm1154, %v1145, %v1161
        %v1163 = vsel %vm1153, %v1160, %v1162
        %v1164 = vsel %vm1152, %v1142, %v1145
        %v1165 = vsel %vm1155, %v1151, 1326507024
        %v1166 = vsel %vm1154, %v1148, %v1165
        %v1167 = vsel %vm1153, %v1164, %v1166
        %v1168 = vshll.u32 %v1128, 8
        %v1169 = vmul.u32.u64.compose %v1168, %v1167
        %v1170 = vextract.low.u32 %v1169
        %v1171 = vextract.high.u32 %v1169
        %v1172 = vmul.u32.u64.compose %v1168, %v1163
        %v1173 = vextract.low.u32 %v1172
        %v1174 = vextract.high.u32 %v1172
        %v1175 = vmul.u32 %v1168, %v1159
        %v1176 = vadd.s32 %v1171, %v1173
        %vm1177 = vc.u32 %v1171, %v1173
        %v1178 = vadd.s32 %v1174, 1
        %v1179 = vsel %vm1177, %v1178, %v1174
        %v1180 = vadd.s32 %v1175, %v1179
        %v1181 = vadd.s32 %v1180, 536870912
        %v1182 = vshrl.u32 %v1181, 30
        %v1183 = vshll.u32 %v1182, 30
        %v1184 = vsub.s32 %v1180, %v1183
        %vm1185 = vcmp.lt.s32.totalorder %v1184, 0
        %v1186 = vsub.s32 0, %v1184
        %v1187 = vsel %vm1185, %v1186, %v1184
        %v1188 = vclz %v1187
        %v1189 = vsub.s32 %v1188, 2
        %vm1190 = vcmp.gt.s32.totalorder 0, %v1189
        %v1191 = vsel %vm1190, 0, %v1189
        %v1192 = vsub.s32 32, %v1191
        %v1193 = vshll.u32 %v1184, %v1191
        %v1194 = vshrl.u32 %v1176, %v1192
        %v1195 = vor.u32 %v1193, %v1194
        %v1196 = vsub.s32 4294967266, %v1191
        %v1197 = vadd.s32 %v1196, 127
        %v1198 = vshll.u32 %v1197, 23
        %v1199 = vor.u32 4788187, %v1198
        %v1200 = vand.u32 2147483647, %v1199
        %v1202 = vcvt.s32.f32 %v1195
        %v1203 = vmul.f32 %v1202, %v1200
        %v1204 = vxor.u32 %v1203, 2147483648
        %v1205 = vsel %vm1122, %v1204, %v1203
        %v1206 = vsub.s32 4, %v1182
        %v1207 = vsel %vm1122, %v1206, %v1182
        %v1208 = vsel %vm1121, %v280, %v1205
        %v1209 = vsel %vm1121, 0, %v1207
        %v1210 = vcosq.f32.pop %v1208
        %v1211 = vsinq.f32.pop %v1208
        %vm1212 = vweird.f32 %v280
        %v1213 = vand.u32 %v1209, 3
        %vm1214 = vcmp.lt.s32.totalorder %v1213, 2
        %vm1215 = vcmp.eq.s32.totalorder %v1213, 0
        %v1216 = vxor.u32 %v1211, 2147483648
        %v1217 = vsel %vm1215, %v1210, %v1216
        %vm1218 = vcmp.eq.s32.totalorder %v1213, 2
        %v1219 = vxor.u32 %v1210, 2147483648
        %v1220 = vsel %vm1218, %v1219, %v1211
        %v1221 = vsel %vm1214, %v1217, %v1220
        %v1222 = vsel %vm1212, nan, %v1221
        %v1223 = vand.u32 2147483647, %v281
        %vm1224 = vcmp.le.f32.partialorder %v1223, 0.7853982
        %vm1225 = vcmp.lt.s32.totalorder %v281, 0
        %v1226 = vand.u32 %v281, 2139095040
        %v1227 = vshrl.u32 %v1226, 23
        %v1228 = vsub.s32 %v1227, 127
        %v1229 = vand.u32 2147483647, %v281
        %v1230 = vand.u32 %v1229, 8388607
        %v1231 = vor.u32 %v1230, 8388608
        %v1232 = vsub.s32 0, %v1231
        %v1233 = vadd.s32 %v1228, 1
        %vm1234 = vcmp.gt.s32.totalorder %v1233, 0
        %v1235 = vsel %vm1234, %v1233, 0
        %v1236 = vshrl.u32 %v1235, 5
        %v1237 = vand.u32 %v1235, 31
        %v1238 = vsub.s32 32, %v1237
        %v1239 = vshrl.u32 683565275, %v1238
        %v1240 = vshll.u32 683565275, %v1237
        %v1241 = vshrl.u32 2475754826, %v1238
        %v1242 = vor.u32 %v1240, %v1241
        %v1243 = vshll.u32 2475754826, %v1237
        %v1244 = vshrl.u32 2131351028, %v1238
        %v1245 = vor.u32 %v1243, %v1244
        %v1246 = vshll.u32 2131351028, %v1237
        %v1247 = vshrl.u32 2102212464, %v1238
        %v1248 = vor.u32 %v1246, %v1247
        %v1249 = vshll.u32 2102212464, %v1237
        %v1250 = vshrl.u32 920167782, %v1238
        %v1251 = vor.u32 %v1249, %v1250
        %v1252 = vshll.u32 920167782, %v1237
        %v1253 = vshrl.u32 1326507024, %v1238
        %v1254 = vor.u32 %v1252, %v1253
        %vm1255 = vcmp.lt.s32.totalorder %v1236, 1
        %vm1256 = vcmp.lt.s32.totalorder %v1236, 2
        %vm1257 = vcmp.lt.s32.totalorder %v1236, 3
        %vm1258 = vcmp.lt.s32.totalorder %v1236, 4
        %v1259 = vsel %vm1255, %v1239, %v1242
        %v1260 = vsel %vm1258, %v1248, 2102212464
        %v1261 = vsel %vm1257, %v1245, %v1260
        %v1262 = vsel %vm1256, %v1259, %v1261
        %v1263 = vsel %vm1255, %v1242, %v1245
        %v1264 = vsel %vm1258, %v1251, 920167782
        %v1265 = vsel %vm1257, %v1248, %v1264
        %v1266 = vsel %vm1256, %v1263, %v1265
        %v1267 = vsel %vm1255, %v1245, %v1248
        %v1268 = vsel %vm1258, %v1254, 1326507024
        %v1269 = vsel %vm1257, %v1251, %v1268
        %v1270 = vsel %vm1256, %v1267, %v1269
        %v1271 = vshll.u32 %v1231, 8
        %v1272 = vmul.u32.u64.compose %v1271, %v1270
        %v1273 = vextract.low.u32 %v1272
        %v1274 = vextract.high.u32 %v1272
        %v1275 = vmul.u32.u64.compose %v1271, %v1266
        %v1276 = vextract.low.u32 %v1275
        %v1277 = vextract.high.u32 %v1275
        %v1278 = vmul.u32 %v1271, %v1262
        %v1279 = vadd.s32 %v1274, %v1276
        %vm1280 = vc.u32 %v1274, %v1276
        %v1281 = vadd.s32 %v1277, 1
        %v1282 = vsel %vm1280, %v1281, %v1277
        %v1283 = vadd.s32 %v1278, %v1282
        %v1284 = vadd.s32 %v1283, 536870912
        %v1285 = vshrl.u32 %v1284, 30
        %v1286 = vshll.u32 %v1285, 30
        %v1287 = vsub.s32 %v1283, %v1286
        %vm1288 = vcmp.lt.s32.totalorder %v1287, 0
        %v1289 = vsub.s32 0, %v1287
        %v1290 = vsel %vm1288, %v1289, %v1287
        %v1291 = vclz %v1290
        %v1292 = vsub.s32 %v1291, 2
        %vm1293 = vcmp.gt.s32.totalorder 0, %v1292
        %v1294 = vsel %vm1293, 0, %v1292
        %v1295 = vsub.s32 32, %v1294
        %v1296 = vshll.u32 %v1287, %v1294
        %v1297 = vshrl.u32 %v1279, %v1295
        %v1298 = vor.u32 %v1296, %v1297
        %v1299 = vsub.s32 4294967266, %v1294
        %v1300 = vadd.s32 %v1299, 127
        %v1301 = vshll.u32 %v1300, 23
        %v1302 = vor.u32 4788187, %v1301
        %v1303 = vand.u32 2147483647, %v1302
        %v1305 = vcvt.s32.f32 %v1298
        %v1306 = vmul.f32 %v1305, %v1303
        %v1307 = vxor.u32 %v1306, 2147483648
        %v1308 = vsel %vm1225, %v1307, %v1306
        %v1309 = vsub.s32 4, %v1285
        %v1310 = vsel %vm1225, %v1309, %v1285
        %v1311 = vsel %vm1224, %v281, %v1308
        %v1312 = vsel %vm1224, 0, %v1310
        %v1313 = vcosq.f32.pop %v1311
        %v1314 = vsinq.f32.pop %v1311
        %vm1315 = vweird.f32 %v281
        %v1316 = vand.u32 %v1312, 3
        %vm1317 = vcmp.lt.s32.totalorder %v1316, 2
        %vm1318 = vcmp.eq.s32.totalorder %v1316, 0
        %v1319 = vxor.u32 %v1314, 2147483648
        %v1320 = vsel %vm1318, %v1313, %v1319
        %vm1321 = vcmp.eq.s32.totalorder %v1316, 2
        %v1322 = vxor.u32 %v1313, 2147483648
        %v1323 = vsel %vm1321, %v1322, %v1314
        %v1324 = vsel %vm1317, %v1320, %v1323
        %v1325 = vsel %vm1315, nan, %v1324
        %v1326 = vand.u32 2147483647, %v282
        %vm1327 = vcmp.le.f32.partialorder %v1326, 0.7853982
        %vm1328 = vcmp.lt.s32.totalorder %v282, 0
        %v1329 = vand.u32 %v282, 2139095040
        %v1330 = vshrl.u32 %v1329, 23
        %v1331 = vsub.s32 %v1330, 127
        %v1332 = vand.u32 2147483647, %v282
        %v1333 = vand.u32 %v1332, 8388607
        %v1334 = vor.u32 %v1333, 8388608
        %v1335 = vsub.s32 0, %v1334
        %v1336 = vadd.s32 %v1331, 1
        %vm1337 = vcmp.gt.s32.totalorder %v1336, 0
        %v1338 = vsel %vm1337, %v1336, 0
        %v1339 = vshrl.u32 %v1338, 5
        %v1340 = vand.u32 %v1338, 31
        %v1341 = vsub.s32 32, %v1340
        %v1342 = vshrl.u32 683565275, %v1341
        %v1343 = vshll.u32 683565275, %v1340
        %v1344 = vshrl.u32 2475754826, %v1341
        %v1345 = vor.u32 %v1343, %v1344
        %v1346 = vshll.u32 2475754826, %v1340
        %v1347 = vshrl.u32 2131351028, %v1341
        %v1348 = vor.u32 %v1346, %v1347
        %v1349 = vshll.u32 2131351028, %v1340
        %v1350 = vshrl.u32 2102212464, %v1341
        %v1351 = vor.u32 %v1349, %v1350
        %v1352 = vshll.u32 2102212464, %v1340
        %v1353 = vshrl.u32 920167782, %v1341
        %v1354 = vor.u32 %v1352, %v1353
        %v1355 = vshll.u32 920167782, %v1340
        %v1356 = vshrl.u32 1326507024, %v1341
        %v1357 = vor.u32 %v1355, %v1356
        %vm1358 = vcmp.lt.s32.totalorder %v1339, 1
        %vm1359 = vcmp.lt.s32.totalorder %v1339, 2
        %vm1360 = vcmp.lt.s32.totalorder %v1339, 3
        %vm1361 = vcmp.lt.s32.totalorder %v1339, 4
        %v1362 = vsel %vm1358, %v1342, %v1345
        %v1363 = vsel %vm1361, %v1351, 2102212464
        %v1364 = vsel %vm1360, %v1348, %v1363
        %v1365 = vsel %vm1359, %v1362, %v1364
        %v1366 = vsel %vm1358, %v1345, %v1348
        %v1367 = vsel %vm1361, %v1354, 920167782
        %v1368 = vsel %vm1360, %v1351, %v1367
        %v1369 = vsel %vm1359, %v1366, %v1368
        %v1370 = vsel %vm1358, %v1348, %v1351
        %v1371 = vsel %vm1361, %v1357, 1326507024
        %v1372 = vsel %vm1360, %v1354, %v1371
        %v1373 = vsel %vm1359, %v1370, %v1372
        %v1374 = vshll.u32 %v1334, 8
        %v1375 = vmul.u32.u64.compose %v1374, %v1373
        %v1376 = vextract.low.u32 %v1375
        %v1377 = vextract.high.u32 %v1375
        %v1378 = vmul.u32.u64.compose %v1374, %v1369
        %v1379 = vextract.low.u32 %v1378
        %v1380 = vextract.high.u32 %v1378
        %v1381 = vmul.u32 %v1374, %v1365
        %v1382 = vadd.s32 %v1377, %v1379
        %vm1383 = vc.u32 %v1377, %v1379
        %v1384 = vadd.s32 %v1380, 1
        %v1385 = vsel %vm1383, %v1384, %v1380
        %v1386 = vadd.s32 %v1381, %v1385
        %v1387 = vadd.s32 %v1386, 536870912
        %v1388 = vshrl.u32 %v1387, 30
        %v1389 = vshll.u32 %v1388, 30
        %v1390 = vsub.s32 %v1386, %v1389
        %vm1391 = vcmp.lt.s32.totalorder %v1390, 0
        %v1392 = vsub.s32 0, %v1390
        %v1393 = vsel %vm1391, %v1392, %v1390
        %v1394 = vclz %v1393
        %v1395 = vsub.s32 %v1394, 2
        %vm1396 = vcmp.gt.s32.totalorder 0, %v1395
        %v1397 = vsel %vm1396, 0, %v1395
        %v1398 = vsub.s32 32, %v1397
        %v1399 = vshll.u32 %v1390, %v1397
        %v1400 = vshrl.u32 %v1382, %v1398
        %v1401 = vor.u32 %v1399, %v1400
        %v1402 = vsub.s32 4294967266, %v1397
        %v1403 = vadd.s32 %v1402, 127
        %v1404 = vshll.u32 %v1403, 23
        %v1405 = vor.u32 4788187, %v1404
        %v1406 = vand.u32 2147483647, %v1405
        %v1408 = vcvt.s32.f32 %v1401
        %v1409 = vmul.f32 %v1408, %v1406
        %v1410 = vxor.u32 %v1409, 2147483648
        %v1411 = vsel %vm1328, %v1410, %v1409
        %v1412 = vsub.s32 4, %v1388
        %v1413 = vsel %vm1328, %v1412, %v1388
        %v1414 = vsel %vm1327, %v282, %v1411
        %v1415 = vsel %vm1327, 0, %v1413
        %v1416 = vcosq.f32.pop %v1414
        %v1417 = vsinq.f32.pop %v1414
        %vm1418 = vweird.f32 %v282
        %v1419 = vand.u32 %v1415, 3
        %vm1420 = vcmp.lt.s32.totalorder %v1419, 2
        %vm1421 = vcmp.eq.s32.totalorder %v1419, 0
        %v1422 = vxor.u32 %v1417, 2147483648
        %v1423 = vsel %vm1421, %v1416, %v1422
        %vm1424 = vcmp.eq.s32.totalorder %v1419, 2
        %v1425 = vxor.u32 %v1416, 2147483648
        %v1426 = vsel %vm1424, %v1425, %v1417
        %v1427 = vsel %vm1420, %v1423, %v1426
        %v1428 = vsel %vm1418, nan, %v1427
        %v1429 = vand.u32 2147483647, %v283
        %vm1430 = vcmp.le.f32.partialorder %v1429, 0.7853982
        %vm1431 = vcmp.lt.s32.totalorder %v283, 0
        %v1432 = vand.u32 %v283, 2139095040
        %v1433 = vshrl.u32 %v1432, 23
        %v1434 = vsub.s32 %v1433, 127
        %v1435 = vand.u32 2147483647, %v283
        %v1436 = vand.u32 %v1435, 8388607
        %v1437 = vor.u32 %v1436, 8388608
        %v1438 = vsub.s32 0, %v1437
        %v1439 = vadd.s32 %v1434, 1
        %vm1440 = vcmp.gt.s32.totalorder %v1439, 0
        %v1441 = vsel %vm1440, %v1439, 0
        %v1442 = vshrl.u32 %v1441, 5
        %v1443 = vand.u32 %v1441, 31
        %v1444 = vsub.s32 32, %v1443
        %v1445 = vshrl.u32 683565275, %v1444
        %v1446 = vshll.u32 683565275, %v1443
        %v1447 = vshrl.u32 2475754826, %v1444
        %v1448 = vor.u32 %v1446, %v1447
        %v1449 = vshll.u32 2475754826, %v1443
        %v1450 = vshrl.u32 2131351028, %v1444
        %v1451 = vor.u32 %v1449, %v1450
        %v1452 = vshll.u32 2131351028, %v1443
        %v1453 = vshrl.u32 2102212464, %v1444
        %v1454 = vor.u32 %v1452, %v1453
        %v1455 = vshll.u32 2102212464, %v1443
        %v1456 = vshrl.u32 920167782, %v1444
        %v1457 = vor.u32 %v1455, %v1456
        %v1458 = vshll.u32 920167782, %v1443
        %v1459 = vshrl.u32 1326507024, %v1444
        %v1460 = vor.u32 %v1458, %v1459
        %vm1461 = vcmp.lt.s32.totalorder %v1442, 1
        %vm1462 = vcmp.lt.s32.totalorder %v1442, 2
        %vm1463 = vcmp.lt.s32.totalorder %v1442, 3
        %vm1464 = vcmp.lt.s32.totalorder %v1442, 4
        %v1465 = vsel %vm1461, %v1445, %v1448
        %v1466 = vsel %vm1464, %v1454, 2102212464
        %v1467 = vsel %vm1463, %v1451, %v1466
        %v1468 = vsel %vm1462, %v1465, %v1467
        %v1469 = vsel %vm1461, %v1448, %v1451
        %v1470 = vsel %vm1464, %v1457, 920167782
        %v1471 = vsel %vm1463, %v1454, %v1470
        %v1472 = vsel %vm1462, %v1469, %v1471
        %v1473 = vsel %vm1461, %v1451, %v1454
        %v1474 = vsel %vm1464, %v1460, 1326507024
        %v1475 = vsel %vm1463, %v1457, %v1474
        %v1476 = vsel %vm1462, %v1473, %v1475
        %v1477 = vshll.u32 %v1437, 8
        %v1478 = vmul.u32.u64.compose %v1477, %v1476
        %v1479 = vextract.low.u32 %v1478
        %v1480 = vextract.high.u32 %v1478
        %v1481 = vmul.u32.u64.compose %v1477, %v1472
        %v1482 = vextract.low.u32 %v1481
        %v1483 = vextract.high.u32 %v1481
        %v1484 = vmul.u32 %v1477, %v1468
        %v1485 = vadd.s32 %v1480, %v1482
        %vm1486 = vc.u32 %v1480, %v1482
        %v1487 = vadd.s32 %v1483, 1
        %v1488 = vsel %vm1486, %v1487, %v1483
        %v1489 = vadd.s32 %v1484, %v1488
        %v1490 = vadd.s32 %v1489, 536870912
        %v1491 = vshrl.u32 %v1490, 30
        %v1492 = vshll.u32 %v1491, 30
        %v1493 = vsub.s32 %v1489, %v1492
        %vm1494 = vcmp.lt.s32.totalorder %v1493, 0
        %v1495 = vsub.s32 0, %v1493
        %v1496 = vsel %vm1494, %v1495, %v1493
        %v1497 = vclz %v1496
        %v1498 = vsub.s32 %v1497, 2
        %vm1499 = vcmp.gt.s32.totalorder 0, %v1498
        %v1500 = vsel %vm1499, 0, %v1498
        %v1501 = vsub.s32 32, %v1500
        %v1502 = vshll.u32 %v1493, %v1500
        %v1503 = vshrl.u32 %v1485, %v1501
        %v1504 = vor.u32 %v1502, %v1503
        %v1505 = vsub.s32 4294967266, %v1500
        %v1506 = vadd.s32 %v1505, 127
        %v1507 = vshll.u32 %v1506, 23
        %v1508 = vor.u32 4788187, %v1507
        %v1509 = vand.u32 2147483647, %v1508
        %v1511 = vcvt.s32.f32 %v1504
        %v1512 = vmul.f32 %v1511, %v1509
        %v1513 = vxor.u32 %v1512, 2147483648
        %v1514 = vsel %vm1431, %v1513, %v1512
        %v1515 = vsub.s32 4, %v1491
        %v1516 = vsel %vm1431, %v1515, %v1491
        %v1517 = vsel %vm1430, %v283, %v1514
        %v1518 = vsel %vm1430, 0, %v1516
        %v1519 = vcosq.f32.pop %v1517
        %v1520 = vsinq.f32.pop %v1517
        %vm1521 = vweird.f32 %v283
        %v1522 = vand.u32 %v1518, 3
        %vm1523 = vcmp.lt.s32.totalorder %v1522, 2
        %vm1524 = vcmp.eq.s32.totalorder %v1522, 0
        %v1525 = vxor.u32 %v1520, 2147483648
        %v1526 = vsel %vm1524, %v1519, %v1525
        %vm1527 = vcmp.eq.s32.totalorder %v1522, 2
        %v1528 = vxor.u32 %v1519, 2147483648
        %v1529 = vsel %vm1527, %v1528, %v1520
        %v1530 = vsel %vm1523, %v1526, %v1529
        %v1531 = vsel %vm1521, nan, %v1530
        %v1532 = vand.u32 2147483647, %v284
        %vm1533 = vcmp.le.f32.partialorder %v1532, 0.7853982
        %vm1534 = vcmp.lt.s32.totalorder %v284, 0
        %v1535 = vand.u32 %v284, 2139095040
        %v1536 = vshrl.u32 %v1535, 23
        %v1537 = vsub.s32 %v1536, 127
        %v1538 = vand.u32 2147483647, %v284
        %v1539 = vand.u32 %v1538, 8388607
        %v1540 = vor.u32 %v1539, 8388608
        %v1541 = vsub.s32 0, %v1540
        %v1542 = vadd.s32 %v1537, 1
        %vm1543 = vcmp.gt.s32.totalorder %v1542, 0
        %v1544 = vsel %vm1543, %v1542, 0
        %v1545 = vshrl.u32 %v1544, 5
        %v1546 = vand.u32 %v1544, 31
        %v1547 = vsub.s32 32, %v1546
        %v1548 = vshrl.u32 683565275, %v1547
        %v1549 = vshll.u32 683565275, %v1546
        %v1550 = vshrl.u32 2475754826, %v1547
        %v1551 = vor.u32 %v1549, %v1550
        %v1552 = vshll.u32 2475754826, %v1546
        %v1553 = vshrl.u32 2131351028, %v1547
        %v1554 = vor.u32 %v1552, %v1553
        %v1555 = vshll.u32 2131351028, %v1546
        %v1556 = vshrl.u32 2102212464, %v1547
        %v1557 = vor.u32 %v1555, %v1556
        %v1558 = vshll.u32 2102212464, %v1546
        %v1559 = vshrl.u32 920167782, %v1547
        %v1560 = vor.u32 %v1558, %v1559
        %v1561 = vshll.u32 920167782, %v1546
        %v1562 = vshrl.u32 1326507024, %v1547
        %v1563 = vor.u32 %v1561, %v1562
        %vm1564 = vcmp.lt.s32.totalorder %v1545, 1
        %vm1565 = vcmp.lt.s32.totalorder %v1545, 2
        %vm1566 = vcmp.lt.s32.totalorder %v1545, 3
        %vm1567 = vcmp.lt.s32.totalorder %v1545, 4
        %v1568 = vsel %vm1564, %v1548, %v1551
        %v1569 = vsel %vm1567, %v1557, 2102212464
        %v1570 = vsel %vm1566, %v1554, %v1569
        %v1571 = vsel %vm1565, %v1568, %v1570
        %v1572 = vsel %vm1564, %v1551, %v1554
        %v1573 = vsel %vm1567, %v1560, 920167782
        %v1574 = vsel %vm1566, %v1557, %v1573
        %v1575 = vsel %vm1565, %v1572, %v1574
        %v1576 = vsel %vm1564, %v1554, %v1557
        %v1577 = vsel %vm1567, %v1563, 1326507024
        %v1578 = vsel %vm1566, %v1560, %v1577
        %v1579 = vsel %vm1565, %v1576, %v1578
        %v1580 = vshll.u32 %v1540, 8
        %v1581 = vmul.u32.u64.compose %v1580, %v1579
        %v1582 = vextract.low.u32 %v1581
        %v1583 = vextract.high.u32 %v1581
        %v1584 = vmul.u32.u64.compose %v1580, %v1575
        %v1585 = vextract.low.u32 %v1584
        %v1586 = vextract.high.u32 %v1584
        %v1587 = vmul.u32 %v1580, %v1571
        %v1588 = vadd.s32 %v1583, %v1585
        %vm1589 = vc.u32 %v1583, %v1585
        %v1590 = vadd.s32 %v1586, 1
        %v1591 = vsel %vm1589, %v1590, %v1586
        %v1592 = vadd.s32 %v1587, %v1591
        %v1593 = vadd.s32 %v1592, 536870912
        %v1594 = vshrl.u32 %v1593, 30
        %v1595 = vshll.u32 %v1594, 30
        %v1596 = vsub.s32 %v1592, %v1595
        %vm1597 = vcmp.lt.s32.totalorder %v1596, 0
        %v1598 = vsub.s32 0, %v1596
        %v1599 = vsel %vm1597, %v1598, %v1596
        %v1600 = vclz %v1599
        %v1601 = vsub.s32 %v1600, 2
        %vm1602 = vcmp.gt.s32.totalorder 0, %v1601
        %v1603 = vsel %vm1602, 0, %v1601
        %v1604 = vsub.s32 32, %v1603
        %v1605 = vshll.u32 %v1596, %v1603
        %v1606 = vshrl.u32 %v1588, %v1604
        %v1607 = vor.u32 %v1605, %v1606
        %v1608 = vsub.s32 4294967266, %v1603
        %v1609 = vadd.s32 %v1608, 127
        %v1610 = vshll.u32 %v1609, 23
        %v1611 = vor.u32 4788187, %v1610
        %v1612 = vand.u32 2147483647, %v1611
        %v1614 = vcvt.s32.f32 %v1607
        %v1615 = vmul.f32 %v1614, %v1612
        %v1616 = vxor.u32 %v1615, 2147483648
        %v1617 = vsel %vm1534, %v1616, %v1615
        %v1618 = vsub.s32 4, %v1594
        %v1619 = vsel %vm1534, %v1618, %v1594
        %v1620 = vsel %vm1533, %v284, %v1617
        %v1621 = vsel %vm1533, 0, %v1619
        %v1622 = vcosq.f32.pop %v1620
        %v1623 = vsinq.f32.pop %v1620
        %vm1624 = vweird.f32 %v284
        %v1625 = vand.u32 %v1621, 3
        %vm1626 = vcmp.lt.s32.totalorder %v1625, 2
        %vm1627 = vcmp.eq.s32.totalorder %v1625, 0
        %v1628 = vxor.u32 %v1623, 2147483648
        %v1629 = vsel %vm1627, %v1622, %v1628
        %vm1630 = vcmp.eq.s32.totalorder %v1625, 2
        %v1631 = vxor.u32 %v1622, 2147483648
        %v1632 = vsel %vm1630, %v1631, %v1623
        %v1633 = vsel %vm1626, %v1629, %v1632
        %v1634 = vsel %vm1624, nan, %v1633
        %v1635 = vand.u32 2147483647, %v285
        %vm1636 = vcmp.le.f32.partialorder %v1635, 0.7853982
        %vm1637 = vcmp.lt.s32.totalorder %v285, 0
        %v1638 = vand.u32 %v285, 2139095040
        %v1639 = vshrl.u32 %v1638, 23
        %v1640 = vsub.s32 %v1639, 127
        %v1641 = vand.u32 2147483647, %v285
        %v1642 = vand.u32 %v1641, 8388607
        %v1643 = vor.u32 %v1642, 8388608
        %v1644 = vsub.s32 0, %v1643
        %v1645 = vadd.s32 %v1640, 1
        %vm1646 = vcmp.gt.s32.totalorder %v1645, 0
        %v1647 = vsel %vm1646, %v1645, 0
        %v1648 = vshrl.u32 %v1647, 5
        %v1649 = vand.u32 %v1647, 31
        %v1650 = vsub.s32 32, %v1649
        %v1651 = vshrl.u32 683565275, %v1650
        %v1652 = vshll.u32 683565275, %v1649
        %v1653 = vshrl.u32 2475754826, %v1650
        %v1654 = vor.u32 %v1652, %v1653
        %v1655 = vshll.u32 2475754826, %v1649
        %v1656 = vshrl.u32 2131351028, %v1650
        %v1657 = vor.u32 %v1655, %v1656
        %v1658 = vshll.u32 2131351028, %v1649
        %v1659 = vshrl.u32 2102212464, %v1650
        %v1660 = vor.u32 %v1658, %v1659
        %v1661 = vshll.u32 2102212464, %v1649
        %v1662 = vshrl.u32 920167782, %v1650
        %v1663 = vor.u32 %v1661, %v1662
        %v1664 = vshll.u32 920167782, %v1649
        %v1665 = vshrl.u32 1326507024, %v1650
        %v1666 = vor.u32 %v1664, %v1665
        %vm1667 = vcmp.lt.s32.totalorder %v1648, 1
        %vm1668 = vcmp.lt.s32.totalorder %v1648, 2
        %vm1669 = vcmp.lt.s32.totalorder %v1648, 3
        %vm1670 = vcmp.lt.s32.totalorder %v1648, 4
        %v1671 = vsel %vm1667, %v1651, %v1654
        %v1672 = vsel %vm1670, %v1660, 2102212464
        %v1673 = vsel %vm1669, %v1657, %v1672
        %v1674 = vsel %vm1668, %v1671, %v1673
        %v1675 = vsel %vm1667, %v1654, %v1657
        %v1676 = vsel %vm1670, %v1663, 920167782
        %v1677 = vsel %vm1669, %v1660, %v1676
        %v1678 = vsel %vm1668, %v1675, %v1677
        %v1679 = vsel %vm1667, %v1657, %v1660
        %v1680 = vsel %vm1670, %v1666, 1326507024
        %v1681 = vsel %vm1669, %v1663, %v1680
        %v1682 = vsel %vm1668, %v1679, %v1681
        %v1683 = vshll.u32 %v1643, 8
        %v1684 = vmul.u32.u64.compose %v1683, %v1682
        %v1685 = vextract.low.u32 %v1684
        %v1686 = vextract.high.u32 %v1684
        %v1687 = vmul.u32.u64.compose %v1683, %v1678
        %v1688 = vextract.low.u32 %v1687
        %v1689 = vextract.high.u32 %v1687
        %v1690 = vmul.u32 %v1683, %v1674
        %v1691 = vadd.s32 %v1686, %v1688
        %vm1692 = vc.u32 %v1686, %v1688
        %v1693 = vadd.s32 %v1689, 1
        %v1694 = vsel %vm1692, %v1693, %v1689
        %v1695 = vadd.s32 %v1690, %v1694
        %v1696 = vadd.s32 %v1695, 536870912
        %v1697 = vshrl.u32 %v1696, 30
        %v1698 = vshll.u32 %v1697, 30
        %v1699 = vsub.s32 %v1695, %v1698
        %vm1700 = vcmp.lt.s32.totalorder %v1699, 0
        %v1701 = vsub.s32 0, %v1699
        %v1702 = vsel %vm1700, %v1701, %v1699
        %v1703 = vclz %v1702
        %v1704 = vsub.s32 %v1703, 2
        %vm1705 = vcmp.gt.s32.totalorder 0, %v1704
        %v1706 = vsel %vm1705, 0, %v1704
        %v1707 = vsub.s32 32, %v1706
        %v1708 = vshll.u32 %v1699, %v1706
        %v1709 = vshrl.u32 %v1691, %v1707
        %v1710 = vor.u32 %v1708, %v1709
        %v1711 = vsub.s32 4294967266, %v1706
        %v1712 = vadd.s32 %v1711, 127
        %v1713 = vshll.u32 %v1712, 23
        %v1714 = vor.u32 4788187, %v1713
        %v1715 = vand.u32 2147483647, %v1714
        %v1717 = vcvt.s32.f32 %v1710
        %v1718 = vmul.f32 %v1717, %v1715
        %v1719 = vxor.u32 %v1718, 2147483648
        %v1720 = vsel %vm1637, %v1719, %v1718
        %v1721 = vsub.s32 4, %v1697
        %v1722 = vsel %vm1637, %v1721, %v1697
        %v1723 = vsel %vm1636, %v285, %v1720
        %v1724 = vsel %vm1636, 0, %v1722
        %v1725 = vcosq.f32.pop %v1723
        %v1726 = vsinq.f32.pop %v1723
        %vm1727 = vweird.f32 %v285
        %v1728 = vand.u32 %v1724, 3
        %vm1729 = vcmp.lt.s32.totalorder %v1728, 2
        %vm1730 = vcmp.eq.s32.totalorder %v1728, 0
        %v1731 = vxor.u32 %v1726, 2147483648
        %v1732 = vsel %vm1730, %v1725, %v1731
        %vm1733 = vcmp.eq.s32.totalorder %v1728, 2
        %v1734 = vxor.u32 %v1725, 2147483648
        %v1735 = vsel %vm1733, %v1734, %v1726
        %v1736 = vsel %vm1729, %v1732, %v1735
        %v1737 = vsel %vm1727, nan, %v1736
        %v1738 = vand.u32 2147483647, %v286
        %vm1739 = vcmp.le.f32.partialorder %v1738, 0.7853982
        %vm1740 = vcmp.lt.s32.totalorder %v286, 0
        %v1741 = vand.u32 %v286, 2139095040
        %v1742 = vshrl.u32 %v1741, 23
        %v1743 = vsub.s32 %v1742, 127
        %v1744 = vand.u32 2147483647, %v286
        %v1745 = vand.u32 %v1744, 8388607
        %v1746 = vor.u32 %v1745, 8388608
        %v1747 = vsub.s32 0, %v1746
        %v1748 = vadd.s32 %v1743, 1
        %vm1749 = vcmp.gt.s32.totalorder %v1748, 0
        %v1750 = vsel %vm1749, %v1748, 0
        %v1751 = vshrl.u32 %v1750, 5
        %v1752 = vand.u32 %v1750, 31
        %v1753 = vsub.s32 32, %v1752
        %v1754 = vshrl.u32 683565275, %v1753
        %v1755 = vshll.u32 683565275, %v1752
        %v1756 = vshrl.u32 2475754826, %v1753
        %v1757 = vor.u32 %v1755, %v1756
        %v1758 = vshll.u32 2475754826, %v1752
        %v1759 = vshrl.u32 2131351028, %v1753
        %v1760 = vor.u32 %v1758, %v1759
        %v1761 = vshll.u32 2131351028, %v1752
        %v1762 = vshrl.u32 2102212464, %v1753
        %v1763 = vor.u32 %v1761, %v1762
        %v1764 = vshll.u32 2102212464, %v1752
        %v1765 = vshrl.u32 920167782, %v1753
        %v1766 = vor.u32 %v1764, %v1765
        %v1767 = vshll.u32 920167782, %v1752
        %v1768 = vshrl.u32 1326507024, %v1753
        %v1769 = vor.u32 %v1767, %v1768
        %vm1770 = vcmp.lt.s32.totalorder %v1751, 1
        %vm1771 = vcmp.lt.s32.totalorder %v1751, 2
        %vm1772 = vcmp.lt.s32.totalorder %v1751, 3
        %vm1773 = vcmp.lt.s32.totalorder %v1751, 4
        %v1774 = vsel %vm1770, %v1754, %v1757
        %v1775 = vsel %vm1773, %v1763, 2102212464
        %v1776 = vsel %vm1772, %v1760, %v1775
        %v1777 = vsel %vm1771, %v1774, %v1776
        %v1778 = vsel %vm1770, %v1757, %v1760
        %v1779 = vsel %vm1773, %v1766, 920167782
        %v1780 = vsel %vm1772, %v1763, %v1779
        %v1781 = vsel %vm1771, %v1778, %v1780
        %v1782 = vsel %vm1770, %v1760, %v1763
        %v1783 = vsel %vm1773, %v1769, 1326507024
        %v1784 = vsel %vm1772, %v1766, %v1783
        %v1785 = vsel %vm1771, %v1782, %v1784
        %v1786 = vshll.u32 %v1746, 8
        %v1787 = vmul.u32.u64.compose %v1786, %v1785
        %v1788 = vextract.low.u32 %v1787
        %v1789 = vextract.high.u32 %v1787
        %v1790 = vmul.u32.u64.compose %v1786, %v1781
        %v1791 = vextract.low.u32 %v1790
        %v1792 = vextract.high.u32 %v1790
        %v1793 = vmul.u32 %v1786, %v1777
        %v1794 = vadd.s32 %v1789, %v1791
        %vm1795 = vc.u32 %v1789, %v1791
        %v1796 = vadd.s32 %v1792, 1
        %v1797 = vsel %vm1795, %v1796, %v1792
        %v1798 = vadd.s32 %v1793, %v1797
        %v1799 = vadd.s32 %v1798, 536870912
        %v1800 = vshrl.u32 %v1799, 30
        %v1801 = vshll.u32 %v1800, 30
        %v1802 = vsub.s32 %v1798, %v1801
        %vm1803 = vcmp.lt.s32.totalorder %v1802, 0
        %v1804 = vsub.s32 0, %v1802
        %v1805 = vsel %vm1803, %v1804, %v1802
        %v1806 = vclz %v1805
        %v1807 = vsub.s32 %v1806, 2
        %vm1808 = vcmp.gt.s32.totalorder 0, %v1807
        %v1809 = vsel %vm1808, 0, %v1807
        %v1810 = vsub.s32 32, %v1809
        %v1811 = vshll.u32 %v1802, %v1809
        %v1812 = vshrl.u32 %v1794, %v1810
        %v1813 = vor.u32 %v1811, %v1812
        %v1814 = vsub.s32 4294967266, %v1809
        %v1815 = vadd.s32 %v1814, 127
        %v1816 = vshll.u32 %v1815, 23
        %v1817 = vor.u32 4788187, %v1816
        %v1818 = vand.u32 2147483647, %v1817
        %v1820 = vcvt.s32.f32 %v1813
        %v1821 = vmul.f32 %v1820, %v1818
        %v1822 = vxor.u32 %v1821, 2147483648
        %v1823 = vsel %vm1740, %v1822, %v1821
        %v1824 = vsub.s32 4, %v1800
        %v1825 = vsel %vm1740, %v1824, %v1800
        %v1826 = vsel %vm1739, %v286, %v1823
        %v1827 = vsel %vm1739, 0, %v1825
        %v1828 = vcosq.f32.pop %v1826
        %v1829 = vsinq.f32.pop %v1826
        %vm1830 = vweird.f32 %v286
        %v1831 = vand.u32 %v1827, 3
        %vm1832 = vcmp.lt.s32.totalorder %v1831, 2
        %vm1833 = vcmp.eq.s32.totalorder %v1831, 0
        %v1834 = vxor.u32 %v1829, 2147483648
        %v1835 = vsel %vm1833, %v1828, %v1834
        %vm1836 = vcmp.eq.s32.totalorder %v1831, 2
        %v1837 = vxor.u32 %v1828, 2147483648
        %v1838 = vsel %vm1836, %v1837, %v1829
        %v1839 = vsel %vm1832, %v1835, %v1838
        %v1840 = vsel %vm1830, nan, %v1839
        %v1841 = vand.u32 2147483647, %v287
        %vm1842 = vcmp.le.f32.partialorder %v1841, 0.7853982
        %vm1843 = vcmp.lt.s32.totalorder %v287, 0
        %v1844 = vand.u32 %v287, 2139095040
        %v1845 = vshrl.u32 %v1844, 23
        %v1846 = vsub.s32 %v1845, 127
        %v1847 = vand.u32 2147483647, %v287
        %v1848 = vand.u32 %v1847, 8388607
        %v1849 = vor.u32 %v1848, 8388608
        %v1850 = vsub.s32 0, %v1849
        %v1851 = vadd.s32 %v1846, 1
        %vm1852 = vcmp.gt.s32.totalorder %v1851, 0
        %v1853 = vsel %vm1852, %v1851, 0
        %v1854 = vshrl.u32 %v1853, 5
        %v1855 = vand.u32 %v1853, 31
        %v1856 = vsub.s32 32, %v1855
        %v1857 = vshrl.u32 683565275, %v1856
        %v1858 = vshll.u32 683565275, %v1855
        %v1859 = vshrl.u32 2475754826, %v1856
        %v1860 = vor.u32 %v1858, %v1859
        %v1861 = vshll.u32 2475754826, %v1855
        %v1862 = vshrl.u32 2131351028, %v1856
        %v1863 = vor.u32 %v1861, %v1862
        %v1864 = vshll.u32 2131351028, %v1855
        %v1865 = vshrl.u32 2102212464, %v1856
        %v1866 = vor.u32 %v1864, %v1865
        %v1867 = vshll.u32 2102212464, %v1855
        %v1868 = vshrl.u32 920167782, %v1856
        %v1869 = vor.u32 %v1867, %v1868
        %v1870 = vshll.u32 920167782, %v1855
        %v1871 = vshrl.u32 1326507024, %v1856
        %v1872 = vor.u32 %v1870, %v1871
        %vm1873 = vcmp.lt.s32.totalorder %v1854, 1
        %vm1874 = vcmp.lt.s32.totalorder %v1854, 2
        %vm1875 = vcmp.lt.s32.totalorder %v1854, 3
        %vm1876 = vcmp.lt.s32.totalorder %v1854, 4
        %v1877 = vsel %vm1873, %v1857, %v1860
        %v1878 = vsel %vm1876, %v1866, 2102212464
        %v1879 = vsel %vm1875, %v1863, %v1878
        %v1880 = vsel %vm1874, %v1877, %v1879
        %v1881 = vsel %vm1873, %v1860, %v1863
        %v1882 = vsel %vm1876, %v1869, 920167782
        %v1883 = vsel %vm1875, %v1866, %v1882
        %v1884 = vsel %vm1874, %v1881, %v1883
        %v1885 = vsel %vm1873, %v1863, %v1866
        %v1886 = vsel %vm1876, %v1872, 1326507024
        %v1887 = vsel %vm1875, %v1869, %v1886
        %v1888 = vsel %vm1874, %v1885, %v1887
        %v1889 = vshll.u32 %v1849, 8
        %v1890 = vmul.u32.u64.compose %v1889, %v1888
        %v1891 = vextract.low.u32 %v1890
        %v1892 = vextract.high.u32 %v1890
        %v1893 = vmul.u32.u64.compose %v1889, %v1884
        %v1894 = vextract.low.u32 %v1893
        %v1895 = vextract.high.u32 %v1893
        %v1896 = vmul.u32 %v1889, %v1880
        %v1897 = vadd.s32 %v1892, %v1894
        %vm1898 = vc.u32 %v1892, %v1894
        %v1899 = vadd.s32 %v1895, 1
        %v1900 = vsel %vm1898, %v1899, %v1895
        %v1901 = vadd.s32 %v1896, %v1900
        %v1902 = vadd.s32 %v1901, 536870912
        %v1903 = vshrl.u32 %v1902, 30
        %v1904 = vshll.u32 %v1903, 30
        %v1905 = vsub.s32 %v1901, %v1904
        %vm1906 = vcmp.lt.s32.totalorder %v1905, 0
        %v1907 = vsub.s32 0, %v1905
        %v1908 = vsel %vm1906, %v1907, %v1905
        %v1909 = vclz %v1908
        %v1910 = vsub.s32 %v1909, 2
        %vm1911 = vcmp.gt.s32.totalorder 0, %v1910
        %v1912 = vsel %vm1911, 0, %v1910
        %v1913 = vsub.s32 32, %v1912
        %v1914 = vshll.u32 %v1905, %v1912
        %v1915 = vshrl.u32 %v1897, %v1913
        %v1916 = vor.u32 %v1914, %v1915
        %v1917 = vsub.s32 4294967266, %v1912
        %v1918 = vadd.s32 %v1917, 127
        %v1919 = vshll.u32 %v1918, 23
        %v1920 = vor.u32 4788187, %v1919
        %v1921 = vand.u32 2147483647, %v1920
        %v1923 = vcvt.s32.f32 %v1916
        %v1924 = vmul.f32 %v1923, %v1921
        %v1925 = vxor.u32 %v1924, 2147483648
        %v1926 = vsel %vm1843, %v1925, %v1924
        %v1927 = vsub.s32 4, %v1903
        %v1928 = vsel %vm1843, %v1927, %v1903
        %v1929 = vsel %vm1842, %v287, %v1926
        %v1930 = vsel %vm1842, 0, %v1928
        %v1931 = vcosq.f32.pop %v1929
        %v1932 = vsinq.f32.pop %v1929
        %vm1933 = vweird.f32 %v287
        %v1934 = vand.u32 %v1930, 3
        %vm1935 = vcmp.lt.s32.totalorder %v1934, 2
        %vm1936 = vcmp.eq.s32.totalorder %v1934, 0
        %v1937 = vxor.u32 %v1932, 2147483648
        %v1938 = vsel %vm1936, %v1931, %v1937
        %vm1939 = vcmp.eq.s32.totalorder %v1934, 2
        %v1940 = vxor.u32 %v1931, 2147483648
        %v1941 = vsel %vm1939, %v1940, %v1932
        %v1942 = vsel %vm1935, %v1938, %v1941
        %v1943 = vsel %vm1933, nan, %v1942
        %v1944 = vmul.f32 %v391, 2.0
        %v1945 = vmul.f32 %v495, 2.0
        %v1946 = vmul.f32 %v599, 2.0
        %v1947 = vmul.f32 %v703, 2.0
        %v1948 = vmul.f32 %v807, 2.0
        %v1949 = vmul.f32 %v911, 2.0
        %v1950 = vmul.f32 %v1015, 2.0
        %v1951 = vmul.f32 %v1119, 2.0
        %v1952 = vmul.f32 %v1944, %v1222
        %v1953 = vmul.f32 %v1945, %v1325
        %v1954 = vmul.f32 %v1946, %v1428
        %v1955 = vmul.f32 %v1947, %v1531
        %v1956 = vmul.f32 %v1948, %v1634
        %v1957 = vmul.f32 %v1949, %v1737
        %v1958 = vmul.f32 %v1950, %v1840
        %v1959 = vmul.f32 %v1951, %v1943
        %v1960 = vmul.f32 %v1944, %v391
        %v1961 = vmul.f32 %v1945, %v495
        %v1962 = vmul.f32 %v1946, %v599
        %v1963 = vmul.f32 %v1947, %v703
        %v1964 = vmul.f32 %v1948, %v807
        %v1965 = vmul.f32 %v1949, %v911
        %v1966 = vmul.f32 %v1950, %v1015
        %v1967 = vmul.f32 %v1951, %v1119
        %v1968 = vsub.f32 1.0, %v1960
        %v1969 = vsub.f32 1.0, %v1961
        %v1970 = vsub.f32 1.0, %v1962
        %v1971 = vsub.f32 1.0, %v1963
        %v1972 = vsub.f32 1.0, %v1964
        %v1973 = vsub.f32 1.0, %v1965
        %v1974 = vsub.f32 1.0, %v1966
        %v1975 = vsub.f32 1.0, %v1967
        %v1976 = vmul.f32 %v1952, 2.0
        %v1977 = vmul.f32 %v1953, 2.0
        %v1978 = vmul.f32 %v1954, 2.0
        %v1979 = vmul.f32 %v1955, 2.0
        %v1980 = vmul.f32 %v1956, 2.0
        %v1981 = vmul.f32 %v1957, 2.0
        %v1982 = vmul.f32 %v1958, 2.0
        %v1983 = vmul.f32 %v1959, 2.0
        %v1984 = vmul.f32 %v1976, %v1968
        %v1985 = vmul.f32 %v1977, %v1969
        %v1986 = vmul.f32 %v1978, %v1970
        %v1987 = vmul.f32 %v1979, %v1971
        %v1988 = vmul.f32 %v1980, %v1972
        %v1989 = vmul.f32 %v1981, %v1973
        %v1990 = vmul.f32 %v1982, %v1974
        %v1991 = vmul.f32 %v1983, %v1975
        %v1992 = vmul.f32 %v1976, %v1952
        %v1993 = vmul.f32 %v1977, %v1953
        %v1994 = vmul.f32 %v1978, %v1954
        %v1995 = vmul.f32 %v1979, %v1955
        %v1996 = vmul.f32 %v1980, %v1956
        %v1997 = vmul.f32 %v1981, %v1957
        %v1998 = vmul.f32 %v1982, %v1958
        %v1999 = vmul.f32 %v1983, %v1959
        %v2000 = vsub.f32 1.0, %v1992
        %v2001 = vsub.f32 1.0, %v1993
        %v2002 = vsub.f32 1.0, %v1994
        %v2003 = vsub.f32 1.0, %v1995
        %v2004 = vsub.f32 1.0, %v1996
        %v2005 = vsub.f32 1.0, %v1997
        %v2006 = vsub.f32 1.0, %v1998
        %v2007 = vsub.f32 1.0, %v1999
        %v2008 = vmul.f32 %v1984, 2.0
        %v2009 = vmul.f32 %v1985, 2.0
        %v2010 = vmul.f32 %v1986, 2.0
        %v2011 = vmul.f32 %v1987, 2.0
        %v2012 = vmul.f32 %v1988, 2.0
        %v2013 = vmul.f32 %v1989, 2.0
        %v2014 = vmul.f32 %v1990, 2.0
        %v2015 = vmul.f32 %v1991, 2.0
        %v2016 = vmul.f32 %v2008, %v2000
        %v2017 = vmul.f32 %v2009, %v2001
        %v2018 = vmul.f32 %v2010, %v2002
        %v2019 = vmul.f32 %v2011, %v2003
        %v2020 = vmul.f32 %v2012, %v2004
        %v2021 = vmul.f32 %v2013, %v2005
        %v2022 = vmul.f32 %v2014, %v2006
        %v2023 = vmul.f32 %v2015, %v2007
        %v2024 = vmul.f32 %v2008, %v1984
        %v2025 = vmul.f32 %v2009, %v1985
        %v2026 = vmul.f32 %v2010, %v1986
        %v2027 = vmul.f32 %v2011, %v1987
        %v2028 = vmul.f32 %v2012, %v1988
        %v2029 = vmul.f32 %v2013, %v1989
        %v2030 = vmul.f32 %v2014, %v1990
        %v2031 = vmul.f32 %v2015, %v1991
        %v2032 = vsub.f32 1.0, %v2024
        %v2033 = vsub.f32 1.0, %v2025
        %v2034 = vsub.f32 1.0, %v2026
        %v2035 = vsub.f32 1.0, %v2027
        %v2036 = vsub.f32 1.0, %v2028
        %v2037 = vsub.f32 1.0, %v2029
        %v2038 = vsub.f32 1.0, %v2030
        %v2039 = vsub.f32 1.0, %v2031
        %v2048 = vcombine.high %v280, %v280
        %v2049 = vcombine.high %v281, %v281
        %v2050 = vcombine.high %v282, %v282
        %v2051 = vcombine.high %v283, %v283
        %v2052 = vcombine.high %v284, %v284
        %v2053 = vcombine.high %v285, %v285
        %v2054 = vcombine.high %v286, %v286
        %v2055 = vcombine.high %v287, %v287
        %2064 = vst [vmem:[#allocation2] sm:$0x3] %v280
        %2065 = vst [vmem:[#allocation2 + $0x8] sm:$0x3] %v2048
        %2066 = vst [vmem:[#allocation2 + $0x10] sm:$0x3] %v281
        %2067 = vst [vmem:[#allocation2 + $0x18] sm:$0x3] %v2049
        %2068 = vst [vmem:[#allocation2 + $0x20] sm:$0x3] %v282
        %2069 = vst [vmem:[#allocation2 + $0x28] sm:$0x3] %v2050
        %2070 = vst [vmem:[#allocation2 + $0x30] sm:$0x3] %v283
        %2071 = vst [vmem:[#allocation2 + $0x38] sm:$0x3] %v2051
        %2072 = vst [vmem:[#allocation2 + $0x40] sm:$0x3] %v284
        %2073 = vst [vmem:[#allocation2 + $0x48] sm:$0x3] %v2052
        %2074 = vst [vmem:[#allocation2 + $0x50] sm:$0x3] %v285
        %2075 = vst [vmem:[#allocation2 + $0x58] sm:$0x3] %v2053
        %2076 = vst [vmem:[#allocation2 + $0x60] sm:$0x3] %v286
        %2077 = vst [vmem:[#allocation2 + $0x68] sm:$0x3] %v2054
        %2078 = vst [vmem:[#allocation2 + $0x70] sm:$0x3] %v287
        %2079 = vst [vmem:[#allocation2 + $0x78] sm:$0x3] %v2055
        %v2088 = vcombine.high %v391, %v391
        %v2089 = vcombine.high %v495, %v495
        %v2090 = vcombine.high %v599, %v599
        %v2091 = vcombine.high %v703, %v703
        %v2092 = vcombine.high %v807, %v807
        %v2093 = vcombine.high %v911, %v911
        %v2094 = vcombine.high %v1015, %v1015
        %v2095 = vcombine.high %v1119, %v1119
        %v2096 = vrot.slane %v391, 6
        %v2097 = vrot.slane %v2088, 6
        %v2098 = vrot.slane %v495, 6
        %v2099 = vrot.slane %v2089, 6
        %v2100 = vrot.slane %v599, 6
        %v2101 = vrot.slane %v2090, 6
        %v2102 = vrot.slane %v703, 6
        %v2103 = vrot.slane %v2091, 6
        %v2104 = vrot.slane %v807, 6
        %v2105 = vrot.slane %v2092, 6
        %v2106 = vrot.slane %v911, 6
        %v2107 = vrot.slane %v2093, 6
        %v2108 = vrot.slane %v1015, 6
        %v2109 = vrot.slane %v2094, 6
        %v2110 = vrot.slane %v1119, 6
        %v2111 = vrot.slane %v2095, 6
        %2128 = vst [vmem:[#allocation2] sm:$0xc] %v2096
        %2129 = vst [vmem:[#allocation2 + $0x8] sm:$0xc] %v2097
        %2130 = vst [vmem:[#allocation2 + $0x10] sm:$0xc] %v2098
        %2131 = vst [vmem:[#allocation2 + $0x18] sm:$0xc] %v2099
        %2132 = vst [vmem:[#allocation2 + $0x20] sm:$0xc] %v2100
        %2133 = vst [vmem:[#allocation2 + $0x28] sm:$0xc] %v2101
        %2134 = vst [vmem:[#allocation2 + $0x30] sm:$0xc] %v2102
        %2135 = vst [vmem:[#allocation2 + $0x38] sm:$0xc] %v2103
        %2136 = vst [vmem:[#allocation2 + $0x40] sm:$0xc] %v2104
        %2137 = vst [vmem:[#allocation2 + $0x48] sm:$0xc] %v2105
        %2138 = vst [vmem:[#allocation2 + $0x50] sm:$0xc] %v2106
        %2139 = vst [vmem:[#allocation2 + $0x58] sm:$0xc] %v2107
        %2140 = vst [vmem:[#allocation2 + $0x60] sm:$0xc] %v2108
        %2141 = vst [vmem:[#allocation2 + $0x68] sm:$0xc] %v2109
        %2142 = vst [vmem:[#allocation2 + $0x70] sm:$0xc] %v2110
        %2143 = vst [vmem:[#allocation2 + $0x78] sm:$0xc] %v2111
        %v2152 = vcombine.low %v1222, %v1222
        %v2153 = vcombine.low %v1325, %v1325
        %v2154 = vcombine.low %v1428, %v1428
        %v2155 = vcombine.low %v1531, %v1531
        %v2156 = vcombine.low %v1634, %v1634
        %v2157 = vcombine.low %v1737, %v1737
        %v2158 = vcombine.low %v1840, %v1840
        %v2159 = vcombine.low %v1943, %v1943
        %2168 = vst [vmem:[#allocation2] sm:$0x30] %v2152
        %2169 = vst [vmem:[#allocation2 + $0x8] sm:$0x30] %v1222
        %2170 = vst [vmem:[#allocation2 + $0x10] sm:$0x30] %v2153
        %2171 = vst [vmem:[#allocation2 + $0x18] sm:$0x30] %v1325
        %2172 = vst [vmem:[#allocation2 + $0x20] sm:$0x30] %v2154
        %2173 = vst [vmem:[#allocation2 + $0x28] sm:$0x30] %v1428
        %2174 = vst [vmem:[#allocation2 + $0x30] sm:$0x30] %v2155
        %2175 = vst [vmem:[#allocation2 + $0x38] sm:$0x30] %v1531
        %2176 = vst [vmem:[#allocation2 + $0x40] sm:$0x30] %v2156
        %2177 = vst [vmem:[#allocation2 + $0x48] sm:$0x30] %v1634
        %2178 = vst [vmem:[#allocation2 + $0x50] sm:$0x30] %v2157
        %2179 = vst [vmem:[#allocation2 + $0x58] sm:$0x30] %v1737
        %2180 = vst [vmem:[#allocation2 + $0x60] sm:$0x30] %v2158
        %2181 = vst [vmem:[#allocation2 + $0x68] sm:$0x30] %v1840
        %2182 = vst [vmem:[#allocation2 + $0x70] sm:$0x30] %v2159
        %2183 = vst [vmem:[#allocation2 + $0x78] sm:$0x30] %v1943
        %v2192 = vcombine.high %v1952, %v1952
        %v2193 = vcombine.high %v1953, %v1953
        %v2194 = vcombine.high %v1954, %v1954
        %v2195 = vcombine.high %v1955, %v1955
        %v2196 = vcombine.high %v1956, %v1956
        %v2197 = vcombine.high %v1957, %v1957
        %v2198 = vcombine.high %v1958, %v1958
        %v2199 = vcombine.high %v1959, %v1959
        %v2200 = vrot.slane %v1952, 2
        %v2201 = vrot.slane %v2192, 2
        %v2202 = vrot.slane %v1953, 2
        %v2203 = vrot.slane %v2193, 2
        %v2204 = vrot.slane %v1954, 2
        %v2205 = vrot.slane %v2194, 2
        %v2206 = vrot.slane %v1955, 2
        %v2207 = vrot.slane %v2195, 2
        %v2208 = vrot.slane %v1956, 2
        %v2209 = vrot.slane %v2196, 2
        %v2210 = vrot.slane %v1957, 2
        %v2211 = vrot.slane %v2197, 2
        %v2212 = vrot.slane %v1958, 2
        %v2213 = vrot.slane %v2198, 2
        %v2214 = vrot.slane %v1959, 2
        %v2215 = vrot.slane %v2199, 2
        %2232 = vst [vmem:[#allocation2] sm:$0xc0] %v2200
        %2233 = vst [vmem:[#allocation2 + $0x8] sm:$0xc0] %v2201
        %2234 = vst [vmem:[#allocation2 + $0x10] sm:$0xc0] %v2202
        %2235 = vst [vmem:[#allocation2 + $0x18] sm:$0xc0] %v2203
        %2236 = vst [vmem:[#allocation2 + $0x20] sm:$0xc0] %v2204
        %2237 = vst [vmem:[#allocation2 + $0x28] sm:$0xc0] %v2205
        %2238 = vst [vmem:[#allocation2 + $0x30] sm:$0xc0] %v2206
        %2239 = vst [vmem:[#allocation2 + $0x38] sm:$0xc0] %v2207
        %2240 = vst [vmem:[#allocation2 + $0x40] sm:$0xc0] %v2208
        %2241 = vst [vmem:[#allocation2 + $0x48] sm:$0xc0] %v2209
        %2242 = vst [vmem:[#allocation2 + $0x50] sm:$0xc0] %v2210
        %2243 = vst [vmem:[#allocation2 + $0x58] sm:$0xc0] %v2211
        %2244 = vst [vmem:[#allocation2 + $0x60] sm:$0xc0] %v2212
        %2245 = vst [vmem:[#allocation2 + $0x68] sm:$0xc0] %v2213
        %2246 = vst [vmem:[#allocation2 + $0x70] sm:$0xc0] %v2214
        %2247 = vst [vmem:[#allocation2 + $0x78] sm:$0xc0] %v2215
        %v2256 = vcombine.high %v1968, %v1968
        %v2257 = vcombine.high %v1969, %v1969
        %v2258 = vcombine.high %v1970, %v1970
        %v2259 = vcombine.high %v1971, %v1971
        %v2260 = vcombine.high %v1972, %v1972
        %v2261 = vcombine.high %v1973, %v1973
        %v2262 = vcombine.high %v1974, %v1974
        %v2263 = vcombine.high %v1975, %v1975
        %2272 = vst [vmem:[#allocation2 + $0x80] sm:$0x3] %v1968
        %2273 = vst [vmem:[#allocation2 + $0x88] sm:$0x3] %v2256
        %2274 = vst [vmem:[#allocation2 + $0x90] sm:$0x3] %v1969
        %2275 = vst [vmem:[#allocation2 + $0x98] sm:$0x3] %v2257
        %2276 = vst [vmem:[#allocation2 + $0xa0] sm:$0x3] %v1970
        %2277 = vst [vmem:[#allocation2 + $0xa8] sm:$0x3] %v2258
        %2278 = vst [vmem:[#allocation2 + $0xb0] sm:$0x3] %v1971
        %2279 = vst [vmem:[#allocation2 + $0xb8] sm:$0x3] %v2259
        %2280 = vst [vmem:[#allocation2 + $0xc0] sm:$0x3] %v1972
        %2281 = vst [vmem:[#allocation2 + $0xc8] sm:$0x3] %v2260
        %2282 = vst [vmem:[#allocation2 + $0xd0] sm:$0x3] %v1973
        %2283 = vst [vmem:[#allocation2 + $0xd8] sm:$0x3] %v2261
        %2284 = vst [vmem:[#allocation2 + $0xe0] sm:$0x3] %v1974
        %2285 = vst [vmem:[#allocation2 + $0xe8] sm:$0x3] %v2262
        %2286 = vst [vmem:[#allocation2 + $0xf0] sm:$0x3] %v1975
        %2287 = vst [vmem:[#allocation2 + $0xf8] sm:$0x3] %v2263
        %v2296 = vcombine.high %v1984, %v1984
        %v2297 = vcombine.high %v1985, %v1985
        %v2298 = vcombine.high %v1986, %v1986
        %v2299 = vcombine.high %v1987, %v1987
        %v2300 = vcombine.high %v1988, %v1988
        %v2301 = vcombine.high %v1989, %v1989
        %v2302 = vcombine.high %v1990, %v1990
        %v2303 = vcombine.high %v1991, %v1991
        %v2304 = vrot.slane %v1984, 6
        %v2305 = vrot.slane %v2296, 6
        %v2306 = vrot.slane %v1985, 6
        %v2307 = vrot.slane %v2297, 6
        %v2308 = vrot.slane %v1986, 6
        %v2309 = vrot.slane %v2298, 6
        %v2310 = vrot.slane %v1987, 6
        %v2311 = vrot.slane %v2299, 6
        %v2312 = vrot.slane %v1988, 6
        %v2313 = vrot.slane %v2300, 6
        %v2314 = vrot.slane %v1989, 6
        %v2315 = vrot.slane %v2301, 6
        %v2316 = vrot.slane %v1990, 6
        %v2317 = vrot.slane %v2302, 6
        %v2318 = vrot.slane %v1991, 6
        %v2319 = vrot.slane %v2303, 6
        %2336 = vst [vmem:[#allocation2 + $0x80] sm:$0xc] %v2304
        %2337 = vst [vmem:[#allocation2 + $0x88] sm:$0xc] %v2305
        %2338 = vst [vmem:[#allocation2 + $0x90] sm:$0xc] %v2306
        %2339 = vst [vmem:[#allocation2 + $0x98] sm:$0xc] %v2307
        %2340 = vst [vmem:[#allocation2 + $0xa0] sm:$0xc] %v2308
        %2341 = vst [vmem:[#allocation2 + $0xa8] sm:$0xc] %v2309
        %2342 = vst [vmem:[#allocation2 + $0xb0] sm:$0xc] %v2310
        %2343 = vst [vmem:[#allocation2 + $0xb8] sm:$0xc] %v2311
        %2344 = vst [vmem:[#allocation2 + $0xc0] sm:$0xc] %v2312
        %2345 = vst [vmem:[#allocation2 + $0xc8] sm:$0xc] %v2313
        %2346 = vst [vmem:[#allocation2 + $0xd0] sm:$0xc] %v2314
        %2347 = vst [vmem:[#allocation2 + $0xd8] sm:$0xc] %v2315
        %2348 = vst [vmem:[#allocation2 + $0xe0] sm:$0xc] %v2316
        %2349 = vst [vmem:[#allocation2 + $0xe8] sm:$0xc] %v2317
        %2350 = vst [vmem:[#allocation2 + $0xf0] sm:$0xc] %v2318
        %2351 = vst [vmem:[#allocation2 + $0xf8] sm:$0xc] %v2319
        %v2360 = vcombine.low %v2000, %v2000
        %v2361 = vcombine.low %v2001, %v2001
        %v2362 = vcombine.low %v2002, %v2002
        %v2363 = vcombine.low %v2003, %v2003
        %v2364 = vcombine.low %v2004, %v2004
        %v2365 = vcombine.low %v2005, %v2005
        %v2366 = vcombine.low %v2006, %v2006
        %v2367 = vcombine.low %v2007, %v2007
        %2376 = vst [vmem:[#allocation2 + $0x80] sm:$0x30] %v2360
        %2377 = vst [vmem:[#allocation2 + $0x88] sm:$0x30] %v2000
        %2378 = vst [vmem:[#allocation2 + $0x90] sm:$0x30] %v2361
        %2379 = vst [vmem:[#allocation2 + $0x98] sm:$0x30] %v2001
        %2380 = vst [vmem:[#allocation2 + $0xa0] sm:$0x30] %v2362
        %2381 = vst [vmem:[#allocation2 + $0xa8] sm:$0x30] %v2002
        %2382 = vst [vmem:[#allocation2 + $0xb0] sm:$0x30] %v2363
        %2383 = vst [vmem:[#allocation2 + $0xb8] sm:$0x30] %v2003
        %2384 = vst [vmem:[#allocation2 + $0xc0] sm:$0x30] %v2364
        %2385 = vst [vmem:[#allocation2 + $0xc8] sm:$0x30] %v2004
        %2386 = vst [vmem:[#allocation2 + $0xd0] sm:$0x30] %v2365
        %2387 = vst [vmem:[#allocation2 + $0xd8] sm:$0x30] %v2005
        %2388 = vst [vmem:[#allocation2 + $0xe0] sm:$0x30] %v2366
        %2389 = vst [vmem:[#allocation2 + $0xe8] sm:$0x30] %v2006
        %2390 = vst [vmem:[#allocation2 + $0xf0] sm:$0x30] %v2367
        %2391 = vst [vmem:[#allocation2 + $0xf8] sm:$0x30] %v2007
        %v2400 = vcombine.high %v2016, %v2016
        %v2401 = vcombine.high %v2017, %v2017
        %v2402 = vcombine.high %v2018, %v2018
        %v2403 = vcombine.high %v2019, %v2019
        %v2404 = vcombine.high %v2020, %v2020
        %v2405 = vcombine.high %v2021, %v2021
        %v2406 = vcombine.high %v2022, %v2022
        %v2407 = vcombine.high %v2023, %v2023
        %v2408 = vrot.slane %v2016, 2
        %v2409 = vrot.slane %v2400, 2
        %v2410 = vrot.slane %v2017, 2
        %v2411 = vrot.slane %v2401, 2
        %v2412 = vrot.slane %v2018, 2
        %v2413 = vrot.slane %v2402, 2
        %v2414 = vrot.slane %v2019, 2
        %v2415 = vrot.slane %v2403, 2
        %v2416 = vrot.slane %v2020, 2
        %v2417 = vrot.slane %v2404, 2
        %v2418 = vrot.slane %v2021, 2
        %v2419 = vrot.slane %v2405, 2
        %v2420 = vrot.slane %v2022, 2
        %v2421 = vrot.slane %v2406, 2
        %v2422 = vrot.slane %v2023, 2
        %v2423 = vrot.slane %v2407, 2
        %2440 = vst [vmem:[#allocation2 + $0x80] sm:$0xc0] %v2408
        %2441 = vst [vmem:[#allocation2 + $0x88] sm:$0xc0] %v2409
        %2442 = vst [vmem:[#allocation2 + $0x90] sm:$0xc0] %v2410
        %2443 = vst [vmem:[#allocation2 + $0x98] sm:$0xc0] %v2411
        %2444 = vst [vmem:[#allocation2 + $0xa0] sm:$0xc0] %v2412
        %2445 = vst [vmem:[#allocation2 + $0xa8] sm:$0xc0] %v2413
        %2446 = vst [vmem:[#allocation2 + $0xb0] sm:$0xc0] %v2414
        %2447 = vst [vmem:[#allocation2 + $0xb8] sm:$0xc0] %v2415
        %2448 = vst [vmem:[#allocation2 + $0xc0] sm:$0xc0] %v2416
        %2449 = vst [vmem:[#allocation2 + $0xc8] sm:$0xc0] %v2417
        %2450 = vst [vmem:[#allocation2 + $0xd0] sm:$0xc0] %v2418
        %2451 = vst [vmem:[#allocation2 + $0xd8] sm:$0xc0] %v2419
        %2452 = vst [vmem:[#allocation2 + $0xe0] sm:$0xc0] %v2420
        %2453 = vst [vmem:[#allocation2 + $0xe8] sm:$0xc0] %v2421
        %2454 = vst [vmem:[#allocation2 + $0xf0] sm:$0xc0] %v2422
        %2455 = vst [vmem:[#allocation2 + $0xf8] sm:$0xc0] %v2423
        %v2464 = vcombine.high %v2032, %v2032
        %v2465 = vcombine.high %v2033, %v2033
        %v2466 = vcombine.high %v2034, %v2034
        %v2467 = vcombine.high %v2035, %v2035
        %v2468 = vcombine.high %v2036, %v2036
        %v2469 = vcombine.high %v2037, %v2037
        %v2470 = vcombine.high %v2038, %v2038
        %v2471 = vcombine.high %v2039, %v2039
        %2480 = vst [vmem:[#allocation2 + $0x100] sm:$0x3] %v2032
        %2481 = vst [vmem:[#allocation2 + $0x108] sm:$0x3] %v2464
        %2482 = vst [vmem:[#allocation2 + $0x110] sm:$0x3] %v2033
        %2483 = vst [vmem:[#allocation2 + $0x118] sm:$0x3] %v2465
        %2484 = vst [vmem:[#allocation2 + $0x120] sm:$0x3] %v2034
        %2485 = vst [vmem:[#allocation2 + $0x128] sm:$0x3] %v2466
        %2486 = vst [vmem:[#allocation2 + $0x130] sm:$0x3] %v2035
        %2487 = vst [vmem:[#allocation2 + $0x138] sm:$0x3] %v2467
        %2488 = vst [vmem:[#allocation2 + $0x140] sm:$0x3] %v2036
        %2489 = vst [vmem:[#allocation2 + $0x148] sm:$0x3] %v2468
        %2490 = vst [vmem:[#allocation2 + $0x150] sm:$0x3] %v2037
        %2491 = vst [vmem:[#allocation2 + $0x158] sm:$0x3] %v2469
        %2492 = vst [vmem:[#allocation2 + $0x160] sm:$0x3] %v2038
        %2493 = vst [vmem:[#allocation2 + $0x168] sm:$0x3] %v2470
        %2494 = vst [vmem:[#allocation2 + $0x170] sm:$0x3] %v2039
        %2495 = vst [vmem:[#allocation2 + $0x178] sm:$0x3] %v2471
        %2496 = vst [vmem:[#allocation2 + $0x100] sm:$0xc] %v280
        %2497 = vst [vmem:[#allocation2 + $0x108] sm:$0xc] %v2048
        %2498 = vst [vmem:[#allocation2 + $0x110] sm:$0xc] %v281
        %2499 = vst [vmem:[#allocation2 + $0x118] sm:$0xc] %v2049
        %2500 = vst [vmem:[#allocation2 + $0x120] sm:$0xc] %v282
        %2501 = vst [vmem:[#allocation2 + $0x128] sm:$0xc] %v2050
        %2502 = vst [vmem:[#allocation2 + $0x130] sm:$0xc] %v283
        %2503 = vst [vmem:[#allocation2 + $0x138] sm:$0xc] %v2051
        %2504 = vst [vmem:[#allocation2 + $0x140] sm:$0xc] %v284
        %2505 = vst [vmem:[#allocation2 + $0x148] sm:$0xc] %v2052
        %2506 = vst [vmem:[#allocation2 + $0x150] sm:$0xc] %v285
        %2507 = vst [vmem:[#allocation2 + $0x158] sm:$0xc] %v2053
        %2508 = vst [vmem:[#allocation2 + $0x160] sm:$0xc] %v286
        %2509 = vst [vmem:[#allocation2 + $0x168] sm:$0xc] %v2054
        %2510 = vst [vmem:[#allocation2 + $0x170] sm:$0xc] %v287
        %2511 = vst [vmem:[#allocation2 + $0x178] sm:$0xc] %v2055
        %v2512 = vld [vmem:[%s1] sm:$0xff]
        %v2513 = vld [vmem:[%s1 + $0x8] sm:$0xff]
        %v2514 = vld [vmem:[%s1 + $0x10] sm:$0xff]
        %v2515 = vld [vmem:[%s1 + $0x18] sm:$0xff]
        %v2516 = vld [vmem:[#allocation2] sm:$0xff]
        %v2517 = vld [vmem:[#allocation2 + $0x8] sm:$0xff]
        %v2518 = vld [vmem:[#allocation2 + $0x10] sm:$0xff]
        %v2519 = vld [vmem:[#allocation2 + $0x18] sm:$0xff]
        %v2520 = vld [vmem:[#allocation2 + $0x20] sm:$0xff]
        %v2521 = vld [vmem:[#allocation2 + $0x28] sm:$0xff]
        %v2522 = vld [vmem:[#allocation2 + $0x30] sm:$0xff]
        %v2523 = vld [vmem:[#allocation2 + $0x38] sm:$0xff]
        %v2524 = vld [vmem:[#allocation2 + $0x40] sm:$0xff]
        %v2525 = vld [vmem:[#allocation2 + $0x48] sm:$0xff]
        %v2526 = vld [vmem:[#allocation2 + $0x50] sm:$0xff]
        %v2527 = vld [vmem:[#allocation2 + $0x58] sm:$0xff]
        %v2528 = vld [vmem:[#allocation2 + $0x60] sm:$0xff]
        %v2529 = vld [vmem:[#allocation2 + $0x68] sm:$0xff]
        %v2530 = vld [vmem:[#allocation2 + $0x70] sm:$0xff]
        %v2531 = vld [vmem:[#allocation2 + $0x78] sm:$0xff]
        %v2532 = vld [vmem:[#allocation2 + $0x80] sm:$0xff]
        %v2533 = vld [vmem:[#allocation2 + $0x88] sm:$0xff]
        %v2534 = vld [vmem:[#allocation2 + $0x90] sm:$0xff]
        %v2535 = vld [vmem:[#allocation2 + $0x98] sm:$0xff]
        %v2536 = vld [vmem:[#allocation2 + $0xa0] sm:$0xff]
        %v2537 = vld [vmem:[#allocation2 + $0xa8] sm:$0xff]
        %v2538 = vld [vmem:[#allocation2 + $0xb0] sm:$0xff]
        %v2539 = vld [vmem:[#allocation2 + $0xb8] sm:$0xff]
        %v2540 = vld [vmem:[#allocation2 + $0xc0] sm:$0xff]
        %v2541 = vld [vmem:[#allocation2 + $0xc8] sm:$0xff]
        %v2542 = vld [vmem:[#allocation2 + $0xd0] sm:$0xff]
        %v2543 = vld [vmem:[#allocation2 + $0xd8] sm:$0xff]
        %v2544 = vld [vmem:[#allocation2 + $0xe0] sm:$0xff]
        %v2545 = vld [vmem:[#allocation2 + $0xe8] sm:$0xff]
        %v2546 = vld [vmem:[#allocation2 + $0xf0] sm:$0xff]
        %v2547 = vld [vmem:[#allocation2 + $0xf8] sm:$0xff]
        %v2548 = vld [vmem:[#allocation2 + $0x100] sm:$0xf]
        %v2549 = vld [vmem:[#allocation2 + $0x108] sm:$0xf]
        %v2550 = vld [vmem:[#allocation2 + $0x110] sm:$0xf]
        %v2551 = vld [vmem:[#allocation2 + $0x118] sm:$0xf]
        %v2552 = vld [vmem:[#allocation2 + $0x120] sm:$0xf]
        %v2553 = vld [vmem:[#allocation2 + $0x128] sm:$0xf]
        %v2554 = vld [vmem:[#allocation2 + $0x130] sm:$0xf]
        %v2555 = vld [vmem:[#allocation2 + $0x138] sm:$0xf]
        %v2556 = vld [vmem:[#allocation2 + $0x140] sm:$0xf]
        %v2557 = vld [vmem:[#allocation2 + $0x148] sm:$0xf]
        %v2558 = vld [vmem:[#allocation2 + $0x150] sm:$0xf]
        %v2559 = vld [vmem:[#allocation2 + $0x158] sm:$0xf]
        %v2560 = vld [vmem:[#allocation2 + $0x160] sm:$0xf]
        %v2561 = vld [vmem:[#allocation2 + $0x168] sm:$0xf]
        %v2562 = vld [vmem:[#allocation2 + $0x170] sm:$0xf]
        %v2563 = vld [vmem:[#allocation2 + $0x178] sm:$0xf]
        %v2564 = vld [vmem:[%s2] sm:$0xff]
        %v2565 = vld [vmem:[%s2 + $0x8] sm:$0xff]
        %v2566 = vld [vmem:[%s2 + $0x10] sm:$0xff]
        %v2567 = vld [vmem:[%s2 + $0x18] sm:$0xff]
        %2569 = vset.pattern.permute.xlu0 0
        %2570 = vperm.xlu0 %2569, %v2564
        %v2571 = vpop.permute.xlu0 %2570
        %2574 = vset.pattern.permute.xlu0 0
        %2575 = vperm.xlu0 %2574, %v2565
        %v2576 = vpop.permute.xlu0 %2575
        %2579 = vset.pattern.permute.xlu0 0
        %2580 = vperm.xlu0 %2579, %v2566
        %v2581 = vpop.permute.xlu0 %2580
        %2584 = vset.pattern.permute.xlu0 0
        %2585 = vperm.xlu0 %2584, %v2567
        %v2586 = vpop.permute.xlu0 %2585
        %vm2588 = vcmask 162816
        %v2590 = vsel %vm2588, %v2512, 0
        %v2593 = vsel %vm2588, %v2513, 0
        %v2596 = vsel %vm2588, %v2514, 0
        %v2599 = vsel %vm2588, %v2515, 0
        %vm2601 = vcmask 1043456
        %v2603 = vsel %vm2601, %v2548, 0
        %v2606 = vsel %vm2601, %v2549, 0
        %v2609 = vsel %vm2601, %v2550, 0
        %v2612 = vsel %vm2601, %v2551, 0
        %v2615 = vsel %vm2601, %v2552, 0
        %v2618 = vsel %vm2601, %v2553, 0
        %v2621 = vsel %vm2601, %v2554, 0
        %v2624 = vsel %vm2601, %v2555, 0
        %v2627 = vsel %vm2601, %v2556, 0
        %v2630 = vsel %vm2601, %v2557, 0
        %v2633 = vsel %vm2601, %v2558, 0
        %v2636 = vsel %vm2601, %v2559, 0
        %v2639 = vsel %vm2601, %v2560, 0
        %v2642 = vsel %vm2601, %v2561, 0
        %v2645 = vsel %vm2601, %v2562, 0
        %v2648 = vsel %vm2601, %v2563, 0
        %2650 = vmatprep.subr.mxu0 %v2517
        %2651 = vmatpush1.msra.mxu0 %v2516
        %2652 = vmatprep.subr.mxu0 %v2533
        %2653 = vmatpush1.msra.mxu0 %v2532
        %2654 = vmatprep.subr.mxu0 %v2606
        %2655 = vmatpush1.msra.mxu0 %v2603
        %2656 = vmatprep.subr.mxu0 0.0
        %2657 = vmatpush1.msra.mxu0 0.0
        %2658 = vmatprep.subr.mxu0 0.0
        %2659 = vmatpush1.msra.mxu0 0.0
        %2660 = vmatprep.subr.mxu0 0.0
        %2661 = vmatpush1.msra.mxu0 0.0
        %2662 = vmatprep.subr.mxu0 0.0
        %2663 = vmatpush1.msra.mxu0 0.0
        %2664 = vmatprep.subr.mxu0 0.0
        %2665 = vmatpush1.msra.mxu0 0.0
        %2666 = vmatprep.subr.mxu0 0.0
        %2667 = vmatpush1.msra.mxu0 0.0
        %2668 = vmatprep.subr.mxu0 0.0
        %2669 = vmatpush1.msra.mxu0 0.0
        %2670 = vmatprep.subr.mxu0 0.0
        %2671 = vmatpush1.msra.mxu0 0.0
        %2672 = vmatprep.subr.mxu0 0.0
        %2673 = vmatpush1.msra.mxu0 0.0
        %2674 = vmatprep.subr.mxu0 0.0
        %2675 = vmatpush1.msra.mxu0 0.0
        %2676 = vmatprep.subr.mxu0 0.0
        %2677 = vmatpush1.msra.mxu0 0.0
        %2678 = vmatprep.subr.mxu0 0.0
        %2679 = vmatpush1.msra.mxu0 0.0
        %2680 = vmatprep.subr.mxu0 0.0
        %2681 = vmatpush1.msra.mxu0 0.0
        %2682 = vmatprep.subr.mxu0 0.0
        %2683 = vmatpush1.msra.mxu0 0.0
        %2684 = vmatprep.subr.mxu0 0.0
        %2685 = vmatpush1.msra.mxu0 0.0
        %2686 = vmatprep.subr.mxu0 0.0
        %2687 = vmatpush1.msra.mxu0 0.0
        %2688 = vmatprep.subr.mxu0 0.0
        %2689 = vmatpush1.msra.mxu0 0.0
        %2690 = vmatprep.subr.mxu0 0.0
        %2691 = vmatpush1.msra.mxu0 0.0
        %2692 = vmatprep.subr.mxu0 0.0
        %2693 = vmatpush1.msra.mxu0 0.0
        %2694 = vmatprep.subr.mxu0 0.0
        %2695 = vmatpush1.msra.mxu0 0.0
        %2696 = vmatprep.subr.mxu0 0.0
        %2697 = vmatpush1.msra.mxu0 0.0
        %2698 = vmatprep.subr.mxu0 0.0
        %2699 = vmatpush1.msra.mxu0 0.0
        %2700 = vmatprep.subr.mxu0 0.0
        %2701 = vmatpush1.msra.mxu0 0.0
        %2702 = vmatprep.subr.mxu0 0.0
        %2703 = vmatpush1.msra.mxu0 0.0
        %2704 = vmatprep.subr.mxu0 0.0
        %2705 = vmatpush1.msra.mxu0 0.0
        %2706 = vmatprep.subr.mxu0 0.0
        %2707 = vmatpush1.msra.mxu0 0.0
        %2708 = vmatprep.subr.mxu0 0.0
        %2709 = vmatpush1.msra.mxu0 0.0
        %2710 = vmatprep.subr.mxu0 0.0
        %2711 = vmatpush1.msra.mxu0 0.0
        %2712 = vmatprep.subr.mxu0 0.0
        %2713 = vmatpush1.msra.mxu0 0.0
        %2714 = vmatprep.mubr.f32.mxu0 0.0
        %2715 = vmatmul.mubr.f32.gmra.mrb[0].mxu0 %v2590
        %v2716 = vpop.f32.mrb[0].mxu0
        %v2717 = vadd.f32 %v2571, %v2716
        %v2718 = vpop.f32.mrb[0].mxu0
        %v2719 = vadd.f32 %v2571, %v2718
        %2720 = vmatprep.mubr.f32.mxu0 0.0
        %2721 = vmatmul.mubr.f32.gmra.mrb[0].mxu0 %v2593
        %v2722 = vpop.f32.mrb[0].mxu0
        %v2723 = vadd.f32 %v2576, %v2722
        %v2724 = vpop.f32.mrb[0].mxu0
        %v2725 = vadd.f32 %v2576, %v2724
        %2726 = vmatprep.mubr.f32.mxu0 0.0
        %2727 = vmatmul.mubr.f32.gmra.mrb[0].mxu0 %v2596
        %v2728 = vpop.f32.mrb[0].mxu0
        %v2729 = vadd.f32 %v2581, %v2728
        %v2730 = vpop.f32.mrb[0].mxu0
        %v2731 = vadd.f32 %v2581, %v2730
        %2732 = vmatprep.mubr.f32.mxu0 0.0
        %2733 = vmatmul.mubr.f32.gmra.mrb[0].mxu0 %v2599
        %v2734 = vpop.f32.mrb[0].mxu0
        %v2735 = vadd.f32 %v2586, %v2734
        %v2736 = vpop.f32.mrb[0].mxu0
        %v2737 = vadd.f32 %v2586, %v2736
        %2738 = vdwg.mxu0
        %2739 = vmatprep.subr.mxu0 %v2519
        %2740 = vmatpush1.msra.mxu0 %v2518
        %2741 = vmatprep.subr.mxu0 %v2535
        %2742 = vmatpush1.msra.mxu0 %v2534
        %2743 = vmatprep.subr.mxu0 %v2612
        %2744 = vmatpush1.msra.mxu0 %v2609
        %2745 = vmatprep.subr.mxu0 0.0
        %2746 = vmatpush1.msra.mxu0 0.0
        %2747 = vmatprep.subr.mxu0 0.0
        %2748 = vmatpush1.msra.mxu0 0.0
        %2749 = vmatprep.subr.mxu0 0.0
        %2750 = vmatpush1.msra.mxu0 0.0
        %2751 = vmatprep.subr.mxu0 0.0
        %2752 = vmatpush1.msra.mxu0 0.0
        %2753 = vmatprep.subr.mxu0 0.0
        %2754 = vmatpush1.msra.mxu0 0.0
        %2755 = vmatprep.subr.mxu0 0.0
        %2756 = vmatpush1.msra.mxu0 0.0
        %2757 = vmatprep.subr.mxu0 0.0
        %2758 = vmatpush1.msra.mxu0 0.0
        %2759 = vmatprep.subr.mxu0 0.0
        %2760 = vmatpush1.msra.mxu0 0.0
        %2761 = vmatprep.subr.mxu0 0.0
        %2762 = vmatpush1.msra.mxu0 0.0
        %2763 = vmatprep.subr.mxu0 0.0
        %2764 = vmatpush1.msra.mxu0 0.0
        %2765 = vmatprep.subr.mxu0 0.0
        %2766 = vmatpush1.msra.mxu0 0.0
        %2767 = vmatprep.subr.mxu0 0.0
        %2768 = vmatpush1.msra.mxu0 0.0
        %2769 = vmatprep.subr.mxu0 0.0
        %2770 = vmatpush1.msra.mxu0 0.0
        %2771 = vmatprep.subr.mxu0 0.0
        %2772 = vmatpush1.msra.mxu0 0.0
        %2773 = vmatprep.subr.mxu0 0.0
        %2774 = vmatpush1.msra.mxu0 0.0
        %2775 = vmatprep.subr.mxu0 0.0
        %2776 = vmatpush1.msra.mxu0 0.0
        %2777 = vmatprep.subr.mxu0 0.0
        %2778 = vmatpush1.msra.mxu0 0.0
        %2779 = vmatprep.subr.mxu0 0.0
        %2780 = vmatpush1.msra.mxu0 0.0
        %2781 = vmatprep.subr.mxu0 0.0
        %2782 = vmatpush1.msra.mxu0 0.0
        %2783 = vmatprep.subr.mxu0 0.0
        %2784 = vmatpush1.msra.mxu0 0.0
        %2785 = vmatprep.subr.mxu0 0.0
        %2786 = vmatpush1.msra.mxu0 0.0
        %2787 = vmatprep.subr.mxu0 0.0
        %2788 = vmatpush1.msra.mxu0 0.0
        %2789 = vmatprep.subr.mxu0 0.0
        %2790 = vmatpush1.msra.mxu0 0.0
        %2791 = vmatprep.subr.mxu0 0.0
        %2792 = vmatpush1.msra.mxu0 0.0
        %2793 = vmatprep.subr.mxu0 0.0
        %2794 = vmatpush1.msra.mxu0 0.0
        %2795 = vmatprep.subr.mxu0 0.0
        %2796 = vmatpush1.msra.mxu0 0.0
        %2797 = vmatprep.subr.mxu0 0.0
        %2798 = vmatpush1.msra.mxu0 0.0
        %2799 = vmatprep.subr.mxu0 0.0
        %2800 = vmatpush1.msra.mxu0 0.0
        %2801 = vmatprep.subr.mxu0 0.0
        %2802 = vmatpush1.msra.mxu0 0.0
        %2803 = vmatprep.mubr.f32.mxu0 0.0
        %2804 = vmatmul.mubr.f32.gmra.mrb[0].mxu0 %v2590
        %v2805 = vpop.f32.mrb[0].mxu0
        %v2806 = vadd.f32 %v2571, %v2805
        %v2807 = vpop.f32.mrb[0].mxu0
        %v2808 = vadd.f32 %v2571, %v2807
        %2809 = vmatprep.mubr.f32.mxu0 0.0
        %2810 = vmatmul.mubr.f32.gmra.mrb[0].mxu0 %v2593
        %v2811 = vpop.f32.mrb[0].mxu0
        %v2812 = vadd.f32 %v2576, %v2811
        %v2813 = vpop.f32.mrb[0].mxu0
        %v2814 = vadd.f32 %v2576, %v2813
        %2815 = vmatprep.mubr.f32.mxu0 0.0
        %2816 = vmatmul.mubr.f32.gmra.mrb[0].mxu0 %v2596
        %v2817 = vpop.f32.mrb[0].mxu0
        %v2818 = vadd.f32 %v2581, %v2817
        %v2819 = vpop.f32.mrb[0].mxu0
        %v2820 = vadd.f32 %v2581, %v2819
        %2821 = vmatprep.mubr.f32.mxu0 0.0
        %2822 = vmatmul.mubr.f32.gmra.mrb[0].mxu0 %v2599
        %v2823 = vpop.f32.mrb[0].mxu0
        %v2824 = vadd.f32 %v2586, %v2823
        %v2825 = vpop.f32.mrb[0].mxu0
        %v2826 = vadd.f32 %v2586, %v2825
        %2827 = vdwg.mxu0
        %2828 = vmatprep.subr.mxu0 %v2521
        %2829 = vmatpush1.msra.mxu0 %v2520
        %2830 = vmatprep.subr.mxu0 %v2537
        %2831 = vmatpush1.msra.mxu0 %v2536
        %2832 = vmatprep.subr.mxu0 %v2618
        %2833 = vmatpush1.msra.mxu0 %v2615
        %2834 = vmatprep.subr.mxu0 0.0
        %2835 = vmatpush1.msra.mxu0 0.0
        %2836 = vmatprep.subr.mxu0 0.0
        %2837 = vmatpush1.msra.mxu0 0.0
        %2838 = vmatprep.subr.mxu0 0.0
        %2839 = vmatpush1.msra.mxu0 0.0
        %2840 = vmatprep.subr.mxu0 0.0
        %2841 = vmatpush1.msra.mxu0 0.0
        %2842 = vmatprep.subr.mxu0 0.0
        %2843 = vmatpush1.msra.mxu0 0.0
        %2844 = vmatprep.subr.mxu0 0.0
        %2845 = vmatpush1.msra.mxu0 0.0
        %2846 = vmatprep.subr.mxu0 0.0
        %2847 = vmatpush1.msra.mxu0 0.0
        %2848 = vmatprep.subr.mxu0 0.0
        %2849 = vmatpush1.msra.mxu0 0.0
        %2850 = vmatprep.subr.mxu0 0.0
        %2851 = vmatpush1.msra.mxu0 0.0
        %2852 = vmatprep.subr.mxu0 0.0
        %2853 = vmatpush1.msra.mxu0 0.0
        %2854 = vmatprep.subr.mxu0 0.0
        %2855 = vmatpush1.msra.mxu0 0.0
        %2856 = vmatprep.subr.mxu0 0.0
        %2857 = vmatpush1.msra.mxu0 0.0
        %2858 = vmatprep.subr.mxu0 0.0
        %2859 = vmatpush1.msra.mxu0 0.0
        %2860 = vmatprep.subr.mxu0 0.0
        %2861 = vmatpush1.msra.mxu0 0.0
        %2862 = vmatprep.subr.mxu0 0.0
        %2863 = vmatpush1.msra.mxu0 0.0
        %2864 = vmatprep.subr.mxu0 0.0
        %2865 = vmatpush1.msra.mxu0 0.0
        %2866 = vmatprep.subr.mxu0 0.0
        %2867 = vmatpush1.msra.mxu0 0.0
        %2868 = vmatprep.subr.mxu0 0.0
        %2869 = vmatpush1.msra.mxu0 0.0
        %2870 = vmatprep.subr.mxu0 0.0
        %2871 = vmatpush1.msra.mxu0 0.0
        %2872 = vmatprep.subr.mxu0 0.0
        %2873 = vmatpush1.msra.mxu0 0.0
        %2874 = vmatprep.subr.mxu0 0.0
        %2875 = vmatpush1.msra.mxu0 0.0
        %2876 = vmatprep.subr.mxu0 0.0
        %2877 = vmatpush1.msra.mxu0 0.0
        %2878 = vmatprep.subr.mxu0 0.0
        %2879 = vmatpush1.msra.mxu0 0.0
        %2880 = vmatprep.subr.mxu0 0.0
        %2881 = vmatpush1.msra.mxu0 0.0
        %2882 = vmatprep.subr.mxu0 0.0
        %2883 = vmatpush1.msra.mxu0 0.0
        %2884 = vmatprep.subr.mxu0 0.0
        %2885 = vmatpush1.msra.mxu0 0.0
        %2886 = vmatprep.subr.mxu0 0.0
        %2887 = vmatpush1.msra.mxu0 0.0
        %2888 = vmatprep.subr.mxu0 0.0
        %2889 = vmatpush1.msra.mxu0 0.0
        %2890 = vmatprep.subr.mxu0 0.0
        %2891 = vmatpush1.msra.mxu0 0.0
        %2892 = vmatprep.mubr.f32.mxu0 0.0
        %2893 = vmatmul.mubr.f32.gmra.mrb[0].mxu0 %v2590
        %v2894 = vpop.f32.mrb[0].mxu0
        %v2895 = vadd.f32 %v2571, %v2894
        %v2896 = vpop.f32.mrb[0].mxu0
        %v2897 = vadd.f32 %v2571, %v2896
        %2898 = vmatprep.mubr.f32.mxu0 0.0
        %2899 = vmatmul.mubr.f32.gmra.mrb[0].mxu0 %v2593
        %v2900 = vpop.f32.mrb[0].mxu0
        %v2901 = vadd.f32 %v2576, %v2900
        %v2902 = vpop.f32.mrb[0].mxu0
        %v2903 = vadd.f32 %v2576, %v2902
        %2904 = vmatprep.mubr.f32.mxu0 0.0
        %2905 = vmatmul.mubr.f32.gmra.mrb[0].mxu0 %v2596
        %v2906 = vpop.f32.mrb[0].mxu0
        %v2907 = vadd.f32 %v2581, %v2906
        %v2908 = vpop.f32.mrb[0].mxu0
        %v2909 = vadd.f32 %v2581, %v2908
        %2910 = vmatprep.mubr.f32.mxu0 0.0
        %2911 = vmatmul.mubr.f32.gmra.mrb[0].mxu0 %v2599
        %v2912 = vpop.f32.mrb[0].mxu0
        %v2913 = vadd.f32 %v2586, %v2912
        %v2914 = vpop.f32.mrb[0].mxu0
        %v2915 = vadd.f32 %v2586, %v2914
        %2916 = vdwg.mxu0
        %2917 = vmatprep.subr.mxu0 %v2523
        %2918 = vmatpush1.msra.mxu0 %v2522
        %2919 = vmatprep.subr.mxu0 %v2539
        %2920 = vmatpush1.msra.mxu0 %v2538
        %2921 = vmatprep.subr.mxu0 %v2624
        %2922 = vmatpush1.msra.mxu0 %v2621
        %2923 = vmatprep.subr.mxu0 0.0
        %2924 = vmatpush1.msra.mxu0 0.0
        %2925 = vmatprep.subr.mxu0 0.0
        %2926 = vmatpush1.msra.mxu0 0.0
        %2927 = vmatprep.subr.mxu0 0.0
        %2928 = vmatpush1.msra.mxu0 0.0
        %2929 = vmatprep.subr.mxu0 0.0
        %2930 = vmatpush1.msra.mxu0 0.0
        %2931 = vmatprep.subr.mxu0 0.0
        %2932 = vmatpush1.msra.mxu0 0.0
        %2933 = vmatprep.subr.mxu0 0.0
        %2934 = vmatpush1.msra.mxu0 0.0
        %2935 = vmatprep.subr.mxu0 0.0
        %2936 = vmatpush1.msra.mxu0 0.0
        %2937 = vmatprep.subr.mxu0 0.0
        %2938 = vmatpush1.msra.mxu0 0.0
        %2939 = vmatprep.subr.mxu0 0.0
        %2940 = vmatpush1.msra.mxu0 0.0
        %2941 = vmatprep.subr.mxu0 0.0
        %2942 = vmatpush1.msra.mxu0 0.0
        %2943 = vmatprep.subr.mxu0 0.0
        %2944 = vmatpush1.msra.mxu0 0.0
        %2945 = vmatprep.subr.mxu0 0.0
        %2946 = vmatpush1.msra.mxu0 0.0
        %2947 = vmatprep.subr.mxu0 0.0
        %2948 = vmatpush1.msra.mxu0 0.0
        %2949 = vmatprep.subr.mxu0 0.0
        %2950 = vmatpush1.msra.mxu0 0.0
        %2951 = vmatprep.subr.mxu0 0.0
        %2952 = vmatpush1.msra.mxu0 0.0
        %2953 = vmatprep.subr.mxu0 0.0
        %2954 = vmatpush1.msra.mxu0 0.0
        %2955 = vmatprep.subr.mxu0 0.0
        %2956 = vmatpush1.msra.mxu0 0.0
        %2957 = vmatprep.subr.mxu0 0.0
        %2958 = vmatpush1.msra.mxu0 0.0
        %2959 = vmatprep.subr.mxu0 0.0
        %2960 = vmatpush1.msra.mxu0 0.0
        %2961 = vmatprep.subr.mxu0 0.0
        %2962 = vmatpush1.msra.mxu0 0.0
        %2963 = vmatprep.subr.mxu0 0.0
        %2964 = vmatpush1.msra.mxu0 0.0
        %2965 = vmatprep.subr.mxu0 0.0
        %2966 = vmatpush1.msra.mxu0 0.0
        %2967 = vmatprep.subr.mxu0 0.0
        %2968 = vmatpush1.msra.mxu0 0.0
        %2969 = vmatprep.subr.mxu0 0.0
        %2970 = vmatpush1.msra.mxu0 0.0
        %2971 = vmatprep.subr.mxu0 0.0
        %2972 = vmatpush1.msra.mxu0 0.0
        %2973 = vmatprep.subr.mxu0 0.0
        %2974 = vmatpush1.msra.mxu0 0.0
        %2975 = vmatprep.subr.mxu0 0.0
        %2976 = vmatpush1.msra.mxu0 0.0
        %2977 = vmatprep.subr.mxu0 0.0
        %2978 = vmatpush1.msra.mxu0 0.0
        %2979 = vmatprep.subr.mxu0 0.0
        %2980 = vmatpush1.msra.mxu0 0.0
        %2981 = vmatprep.mubr.f32.mxu0 0.0
        %2982 = vmatmul.mubr.f32.gmra.mrb[0].mxu0 %v2590
        %v2983 = vpop.f32.mrb[0].mxu0
        %v2984 = vadd.f32 %v2571, %v2983
        %v2985 = vpop.f32.mrb[0].mxu0
        %v2986 = vadd.f32 %v2571, %v2985
        %2987 = vmatprep.mubr.f32.mxu0 0.0
        %2988 = vmatmul.mubr.f32.gmra.mrb[0].mxu0 %v2593
        %v2989 = vpop.f32.mrb[0].mxu0
        %v2990 = vadd.f32 %v2576, %v2989
        %v2991 = vpop.f32.mrb[0].mxu0
        %v2992 = vadd.f32 %v2576, %v2991
        %2993 = vmatprep.mubr.f32.mxu0 0.0
        %2994 = vmatmul.mubr.f32.gmra.mrb[0].mxu0 %v2596
        %v2995 = vpop.f32.mrb[0].mxu0
        %v2996 = vadd.f32 %v2581, %v2995
        %v2997 = vpop.f32.mrb[0].mxu0
        %v2998 = vadd.f32 %v2581, %v2997
        %2999 = vmatprep.mubr.f32.mxu0 0.0
        %3000 = vmatmul.mubr.f32.gmra.mrb[0].mxu0 %v2599
        %v3001 = vpop.f32.mrb[0].mxu0
        %v3002 = vadd.f32 %v2586, %v3001
        %v3003 = vpop.f32.mrb[0].mxu0
        %v3004 = vadd.f32 %v2586, %v3003
        %3005 = vdwg.mxu0
        %3006 = vmatprep.subr.mxu0 %v2525
        %3007 = vmatpush1.msra.mxu0 %v2524
        %3008 = vmatprep.subr.mxu0 %v2541
        %3009 = vmatpush1.msra.mxu0 %v2540
        %3010 = vmatprep.subr.mxu0 %v2630
        %3011 = vmatpush1.msra.mxu0 %v2627
        %3012 = vmatprep.subr.mxu0 0.0
        %3013 = vmatpush1.msra.mxu0 0.0
        %3014 = vmatprep.subr.mxu0 0.0
        %3015 = vmatpush1.msra.mxu0 0.0
        %3016 = vmatprep.subr.mxu0 0.0
        %3017 = vmatpush1.msra.mxu0 0.0
        %3018 = vmatprep.subr.mxu0 0.0
        %3019 = vmatpush1.msra.mxu0 0.0
        %3020 = vmatprep.subr.mxu0 0.0
        %3021 = vmatpush1.msra.mxu0 0.0
        %3022 = vmatprep.subr.mxu0 0.0
        %3023 = vmatpush1.msra.mxu0 0.0
        %3024 = vmatprep.subr.mxu0 0.0
        %3025 = vmatpush1.msra.mxu0 0.0
        %3026 = vmatprep.subr.mxu0 0.0
        %3027 = vmatpush1.msra.mxu0 0.0
        %3028 = vmatprep.subr.mxu0 0.0
        %3029 = vmatpush1.msra.mxu0 0.0
        %3030 = vmatprep.subr.mxu0 0.0
        %3031 = vmatpush1.msra.mxu0 0.0
        %3032 = vmatprep.subr.mxu0 0.0
        %3033 = vmatpush1.msra.mxu0 0.0
        %3034 = vmatprep.subr.mxu0 0.0
        %3035 = vmatpush1.msra.mxu0 0.0
        %3036 = vmatprep.subr.mxu0 0.0
        %3037 = vmatpush1.msra.mxu0 0.0
        %3038 = vmatprep.subr.mxu0 0.0
        %3039 = vmatpush1.msra.mxu0 0.0
        %3040 = vmatprep.subr.mxu0 0.0
        %3041 = vmatpush1.msra.mxu0 0.0
        %3042 = vmatprep.subr.mxu0 0.0
        %3043 = vmatpush1.msra.mxu0 0.0
        %3044 = vmatprep.subr.mxu0 0.0
        %3045 = vmatpush1.msra.mxu0 0.0
        %3046 = vmatprep.subr.mxu0 0.0
        %3047 = vmatpush1.msra.mxu0 0.0
        %3048 = vmatprep.subr.mxu0 0.0
        %3049 = vmatpush1.msra.mxu0 0.0
        %3050 = vmatprep.subr.mxu0 0.0
        %3051 = vmatpush1.msra.mxu0 0.0
        %3052 = vmatprep.subr.mxu0 0.0
        %3053 = vmatpush1.msra.mxu0 0.0
        %3054 = vmatprep.subr.mxu0 0.0
        %3055 = vmatpush1.msra.mxu0 0.0
        %3056 = vmatprep.subr.mxu0 0.0
        %3057 = vmatpush1.msra.mxu0 0.0
        %3058 = vmatprep.subr.mxu0 0.0
        %3059 = vmatpush1.msra.mxu0 0.0
        %3060 = vmatprep.subr.mxu0 0.0
        %3061 = vmatpush1.msra.mxu0 0.0
        %3062 = vmatprep.subr.mxu0 0.0
        %3063 = vmatpush1.msra.mxu0 0.0
        %3064 = vmatprep.subr.mxu0 0.0
        %3065 = vmatpush1.msra.mxu0 0.0
        %3066 = vmatprep.subr.mxu0 0.0
        %3067 = vmatpush1.msra.mxu0 0.0
        %3068 = vmatprep.subr.mxu0 0.0
        %3069 = vmatpush1.msra.mxu0 0.0
        %3070 = vmatprep.mubr.f32.mxu0 0.0
        %3071 = vmatmul.mubr.f32.gmra.mrb[0].mxu0 %v2590
        %v3072 = vpop.f32.mrb[0].mxu0
        %v3073 = vadd.f32 %v2571, %v3072
        %v3074 = vpop.f32.mrb[0].mxu0
        %v3075 = vadd.f32 %v2571, %v3074
        %3076 = vmatprep.mubr.f32.mxu0 0.0
        %3077 = vmatmul.mubr.f32.gmra.mrb[0].mxu0 %v2593
        %v3078 = vpop.f32.mrb[0].mxu0
        %v3079 = vadd.f32 %v2576, %v3078
        %v3080 = vpop.f32.mrb[0].mxu0
        %v3081 = vadd.f32 %v2576, %v3080
        %3082 = vmatprep.mubr.f32.mxu0 0.0
        %3083 = vmatmul.mubr.f32.gmra.mrb[0].mxu0 %v2596
        %v3084 = vpop.f32.mrb[0].mxu0
        %v3085 = vadd.f32 %v2581, %v3084
        %v3086 = vpop.f32.mrb[0].mxu0
        %v3087 = vadd.f32 %v2581, %v3086
        %3088 = vmatprep.mubr.f32.mxu0 0.0
        %3089 = vmatmul.mubr.f32.gmra.mrb[0].mxu0 %v2599
        %v3090 = vpop.f32.mrb[0].mxu0
        %v3091 = vadd.f32 %v2586, %v3090
        %v3092 = vpop.f32.mrb[0].mxu0
        %v3093 = vadd.f32 %v2586, %v3092
        %3094 = vdwg.mxu0
        %3095 = vmatprep.subr.mxu0 %v2527
        %3096 = vmatpush1.msra.mxu0 %v2526
        %3097 = vmatprep.subr.mxu0 %v2543
        %3098 = vmatpush1.msra.mxu0 %v2542
        %3099 = vmatprep.subr.mxu0 %v2636
        %3100 = vmatpush1.msra.mxu0 %v2633
        %3101 = vmatprep.subr.mxu0 0.0
        %3102 = vmatpush1.msra.mxu0 0.0
        %3103 = vmatprep.subr.mxu0 0.0
        %3104 = vmatpush1.msra.mxu0 0.0
        %3105 = vmatprep.subr.mxu0 0.0
        %3106 = vmatpush1.msra.mxu0 0.0
        %3107 = vmatprep.subr.mxu0 0.0
        %3108 = vmatpush1.msra.mxu0 0.0
        %3109 = vmatprep.subr.mxu0 0.0
        %3110 = vmatpush1.msra.mxu0 0.0
        %3111 = vmatprep.subr.mxu0 0.0
        %3112 = vmatpush1.msra.mxu0 0.0
        %3113 = vmatprep.subr.mxu0 0.0
        %3114 = vmatpush1.msra.mxu0 0.0
        %3115 = vmatprep.subr.mxu0 0.0
        %3116 = vmatpush1.msra.mxu0 0.0
        %3117 = vmatprep.subr.mxu0 0.0
        %3118 = vmatpush1.msra.mxu0 0.0
        %3119 = vmatprep.subr.mxu0 0.0
        %3120 = vmatpush1.msra.mxu0 0.0
        %3121 = vmatprep.subr.mxu0 0.0
        %3122 = vmatpush1.msra.mxu0 0.0
        %3123 = vmatprep.subr.mxu0 0.0
        %3124 = vmatpush1.msra.mxu0 0.0
        %3125 = vmatprep.subr.mxu0 0.0
        %3126 = vmatpush1.msra.mxu0 0.0
        %3127 = vmatprep.subr.mxu0 0.0
        %3128 = vmatpush1.msra.mxu0 0.0
        %3129 = vmatprep.subr.mxu0 0.0
        %3130 = vmatpush1.msra.mxu0 0.0
        %3131 = vmatprep.subr.mxu0 0.0
        %3132 = vmatpush1.msra.mxu0 0.0
        %3133 = vmatprep.subr.mxu0 0.0
        %3134 = vmatpush1.msra.mxu0 0.0
        %3135 = vmatprep.subr.mxu0 0.0
        %3136 = vmatpush1.msra.mxu0 0.0
        %3137 = vmatprep.subr.mxu0 0.0
        %3138 = vmatpush1.msra.mxu0 0.0
        %3139 = vmatprep.subr.mxu0 0.0
        %3140 = vmatpush1.msra.mxu0 0.0
        %3141 = vmatprep.subr.mxu0 0.0
        %3142 = vmatpush1.msra.mxu0 0.0
        %3143 = vmatprep.subr.mxu0 0.0
        %3144 = vmatpush1.msra.mxu0 0.0
        %3145 = vmatprep.subr.mxu0 0.0
        %3146 = vmatpush1.msra.mxu0 0.0
        %3147 = vmatprep.subr.mxu0 0.0
        %3148 = vmatpush1.msra.mxu0 0.0
        %3149 = vmatprep.subr.mxu0 0.0
        %3150 = vmatpush1.msra.mxu0 0.0
        %3151 = vmatprep.subr.mxu0 0.0
        %3152 = vmatpush1.msra.mxu0 0.0
        %3153 = vmatprep.subr.mxu0 0.0
        %3154 = vmatpush1.msra.mxu0 0.0
        %3155 = vmatprep.subr.mxu0 0.0
        %3156 = vmatpush1.msra.mxu0 0.0
        %3157 = vmatprep.subr.mxu0 0.0
        %3158 = vmatpush1.msra.mxu0 0.0
        %3159 = vmatprep.mubr.f32.mxu0 0.0
        %3160 = vmatmul.mubr.f32.gmra.mrb[0].mxu0 %v2590
        %v3161 = vpop.f32.mrb[0].mxu0
        %v3162 = vadd.f32 %v2571, %v3161
        %v3163 = vpop.f32.mrb[0].mxu0
        %v3164 = vadd.f32 %v2571, %v3163
        %3165 = vmatprep.mubr.f32.mxu0 0.0
        %3166 = vmatmul.mubr.f32.gmra.mrb[0].mxu0 %v2593
        %v3167 = vpop.f32.mrb[0].mxu0
        %v3168 = vadd.f32 %v2576, %v3167
        %v3169 = vpop.f32.mrb[0].mxu0
        %v3170 = vadd.f32 %v2576, %v3169
        %3171 = vmatprep.mubr.f32.mxu0 0.0
        %3172 = vmatmul.mubr.f32.gmra.mrb[0].mxu0 %v2596
        %v3173 = vpop.f32.mrb[0].mxu0
        %v3174 = vadd.f32 %v2581, %v3173
        %v3175 = vpop.f32.mrb[0].mxu0
        %v3176 = vadd.f32 %v2581, %v3175
        %3177 = vmatprep.mubr.f32.mxu0 0.0
        %3178 = vmatmul.mubr.f32.gmra.mrb[0].mxu0 %v2599
        %v3179 = vpop.f32.mrb[0].mxu0
        %v3180 = vadd.f32 %v2586, %v3179
        %v3181 = vpop.f32.mrb[0].mxu0
        %v3182 = vadd.f32 %v2586, %v3181
        %3183 = vdwg.mxu0
        %3184 = vmatprep.subr.mxu0 %v2529
        %3185 = vmatpush1.msra.mxu0 %v2528
        %3186 = vmatprep.subr.mxu0 %v2545
        %3187 = vmatpush1.msra.mxu0 %v2544
        %3188 = vmatprep.subr.mxu0 %v2642
        %3189 = vmatpush1.msra.mxu0 %v2639
        %3190 = vmatprep.subr.mxu0 0.0
        %3191 = vmatpush1.msra.mxu0 0.0
        %3192 = vmatprep.subr.mxu0 0.0
        %3193 = vmatpush1.msra.mxu0 0.0
        %3194 = vmatprep.subr.mxu0 0.0
        %3195 = vmatpush1.msra.mxu0 0.0
        %3196 = vmatprep.subr.mxu0 0.0
        %3197 = vmatpush1.msra.mxu0 0.0
        %3198 = vmatprep.subr.mxu0 0.0
        %3199 = vmatpush1.msra.mxu0 0.0
        %3200 = vmatprep.subr.mxu0 0.0
        %3201 = vmatpush1.msra.mxu0 0.0
        %3202 = vmatprep.subr.mxu0 0.0
        %3203 = vmatpush1.msra.mxu0 0.0
        %3204 = vmatprep.subr.mxu0 0.0
        %3205 = vmatpush1.msra.mxu0 0.0
        %3206 = vmatprep.subr.mxu0 0.0
        %3207 = vmatpush1.msra.mxu0 0.0
        %3208 = vmatprep.subr.mxu0 0.0
        %3209 = vmatpush1.msra.mxu0 0.0
        %3210 = vmatprep.subr.mxu0 0.0
        %3211 = vmatpush1.msra.mxu0 0.0
        %3212 = vmatprep.subr.mxu0 0.0
        %3213 = vmatpush1.msra.mxu0 0.0
        %3214 = vmatprep.subr.mxu0 0.0
        %3215 = vmatpush1.msra.mxu0 0.0
        %3216 = vmatprep.subr.mxu0 0.0
        %3217 = vmatpush1.msra.mxu0 0.0
        %3218 = vmatprep.subr.mxu0 0.0
        %3219 = vmatpush1.msra.mxu0 0.0
        %3220 = vmatprep.subr.mxu0 0.0
        %3221 = vmatpush1.msra.mxu0 0.0
        %3222 = vmatprep.subr.mxu0 0.0
        %3223 = vmatpush1.msra.mxu0 0.0
        %3224 = vmatprep.subr.mxu0 0.0
        %3225 = vmatpush1.msra.mxu0 0.0
        %3226 = vmatprep.subr.mxu0 0.0
        %3227 = vmatpush1.msra.mxu0 0.0
        %3228 = vmatprep.subr.mxu0 0.0
        %3229 = vmatpush1.msra.mxu0 0.0
        %3230 = vmatprep.subr.mxu0 0.0
        %3231 = vmatpush1.msra.mxu0 0.0
        %3232 = vmatprep.subr.mxu0 0.0
        %3233 = vmatpush1.msra.mxu0 0.0
        %3234 = vmatprep.subr.mxu0 0.0
        %3235 = vmatpush1.msra.mxu0 0.0
        %3236 = vmatprep.subr.mxu0 0.0
        %3237 = vmatpush1.msra.mxu0 0.0
        %3238 = vmatprep.subr.mxu0 0.0
        %3239 = vmatpush1.msra.mxu0 0.0
        %3240 = vmatprep.subr.mxu0 0.0
        %3241 = vmatpush1.msra.mxu0 0.0
        %3242 = vmatprep.subr.mxu0 0.0
        %3243 = vmatpush1.msra.mxu0 0.0
        %3244 = vmatprep.subr.mxu0 0.0
        %3245 = vmatpush1.msra.mxu0 0.0
        %3246 = vmatprep.subr.mxu0 0.0
        %3247 = vmatpush1.msra.mxu0 0.0
        %3248 = vmatprep.mubr.f32.mxu0 0.0
        %3249 = vmatmul.mubr.f32.gmra.mrb[0].mxu0 %v2590
        %v3250 = vpop.f32.mrb[0].mxu0
        %v3251 = vadd.f32 %v2571, %v3250
        %v3252 = vpop.f32.mrb[0].mxu0
        %v3253 = vadd.f32 %v2571, %v3252
        %3254 = vmatprep.mubr.f32.mxu0 0.0
        %3255 = vmatmul.mubr.f32.gmra.mrb[0].mxu0 %v2593
        %v3256 = vpop.f32.mrb[0].mxu0
        %v3257 = vadd.f32 %v2576, %v3256
        %v3258 = vpop.f32.mrb[0].mxu0
        %v3259 = vadd.f32 %v2576, %v3258
        %3260 = vmatprep.mubr.f32.mxu0 0.0
        %3261 = vmatmul.mubr.f32.gmra.mrb[0].mxu0 %v2596
        %v3262 = vpop.f32.mrb[0].mxu0
        %v3263 = vadd.f32 %v2581, %v3262
        %v3264 = vpop.f32.mrb[0].mxu0
        %v3265 = vadd.f32 %v2581, %v3264
        %3266 = vmatprep.mubr.f32.mxu0 0.0
        %3267 = vmatmul.mubr.f32.gmra.mrb[0].mxu0 %v2599
        %v3268 = vpop.f32.mrb[0].mxu0
        %v3269 = vadd.f32 %v2586, %v3268
        %v3270 = vpop.f32.mrb[0].mxu0
        %v3271 = vadd.f32 %v2586, %v3270
        %3272 = vdwg.mxu0
        %3273 = vmatprep.subr.mxu0 %v2531
        %3274 = vmatpush1.msra.mxu0 %v2530
        %3275 = vmatprep.subr.mxu0 %v2547
        %3276 = vmatpush1.msra.mxu0 %v2546
        %3277 = vmatprep.subr.mxu0 %v2648
        %3278 = vmatpush1.msra.mxu0 %v2645
        %3279 = vmatprep.subr.mxu0 0.0
        %3280 = vmatpush1.msra.mxu0 0.0
        %3281 = vmatprep.subr.mxu0 0.0
        %3282 = vmatpush1.msra.mxu0 0.0
        %3283 = vmatprep.subr.mxu0 0.0
        %3284 = vmatpush1.msra.mxu0 0.0
        %3285 = vmatprep.subr.mxu0 0.0
        %3286 = vmatpush1.msra.mxu0 0.0
        %3287 = vmatprep.subr.mxu0 0.0
        %3288 = vmatpush1.msra.mxu0 0.0
        %3289 = vmatprep.subr.mxu0 0.0
        %3290 = vmatpush1.msra.mxu0 0.0
        %3291 = vmatprep.subr.mxu0 0.0
        %3292 = vmatpush1.msra.mxu0 0.0
        %3293 = vmatprep.subr.mxu0 0.0
        %3294 = vmatpush1.msra.mxu0 0.0
        %3295 = vmatprep.subr.mxu0 0.0
        %3296 = vmatpush1.msra.mxu0 0.0
        %3297 = vmatprep.subr.mxu0 0.0
        %3298 = vmatpush1.msra.mxu0 0.0
        %3299 = vmatprep.subr.mxu0 0.0
        %3300 = vmatpush1.msra.mxu0 0.0
        %3301 = vmatprep.subr.mxu0 0.0
        %3302 = vmatpush1.msra.mxu0 0.0
        %3303 = vmatprep.subr.mxu0 0.0
        %3304 = vmatpush1.msra.mxu0 0.0
        %3305 = vmatprep.subr.mxu0 0.0
        %3306 = vmatpush1.msra.mxu0 0.0
        %3307 = vmatprep.subr.mxu0 0.0
        %3308 = vmatpush1.msra.mxu0 0.0
        %3309 = vmatprep.subr.mxu0 0.0
        %3310 = vmatpush1.msra.mxu0 0.0
        %3311 = vmatprep.subr.mxu0 0.0
        %3312 = vmatpush1.msra.mxu0 0.0
        %3313 = vmatprep.subr.mxu0 0.0
        %3314 = vmatpush1.msra.mxu0 0.0
        %3315 = vmatprep.subr.mxu0 0.0
        %3316 = vmatpush1.msra.mxu0 0.0
        %3317 = vmatprep.subr.mxu0 0.0
        %3318 = vmatpush1.msra.mxu0 0.0
        %3319 = vmatprep.subr.mxu0 0.0
        %3320 = vmatpush1.msra.mxu0 0.0
        %3321 = vmatprep.subr.mxu0 0.0
        %3322 = vmatpush1.msra.mxu0 0.0
        %3323 = vmatprep.subr.mxu0 0.0
        %3324 = vmatpush1.msra.mxu0 0.0
        %3325 = vmatprep.subr.mxu0 0.0
        %3326 = vmatpush1.msra.mxu0 0.0
        %3327 = vmatprep.subr.mxu0 0.0
        %3328 = vmatpush1.msra.mxu0 0.0
        %3329 = vmatprep.subr.mxu0 0.0
        %3330 = vmatpush1.msra.mxu0 0.0
        %3331 = vmatprep.subr.mxu0 0.0
        %3332 = vmatpush1.msra.mxu0 0.0
        %3333 = vmatprep.subr.mxu0 0.0
        %3334 = vmatpush1.msra.mxu0 0.0
        %3335 = vmatprep.subr.mxu0 0.0
        %3336 = vmatpush1.msra.mxu0 0.0
        %3337 = vmatprep.mubr.f32.mxu0 0.0
        %3338 = vmatmul.mubr.f32.gmra.mrb[0].mxu0 %v2590
        %v3339 = vpop.f32.mrb[0].mxu0
        %v3340 = vadd.f32 %v2571, %v3339
        %v3341 = vpop.f32.mrb[0].mxu0
        %v3342 = vadd.f32 %v2571, %v3341
        %3343 = vmatprep.mubr.f32.mxu0 0.0
        %3344 = vmatmul.mubr.f32.gmra.mrb[0].mxu0 %v2593
        %v3345 = vpop.f32.mrb[0].mxu0
        %v3346 = vadd.f32 %v2576, %v3345
        %v3347 = vpop.f32.mrb[0].mxu0
        %v3348 = vadd.f32 %v2576, %v3347
        %3349 = vmatprep.mubr.f32.mxu0 0.0
        %3350 = vmatmul.mubr.f32.gmra.mrb[0].mxu0 %v2596
        %v3351 = vpop.f32.mrb[0].mxu0
        %v3352 = vadd.f32 %v2581, %v3351
        %v3353 = vpop.f32.mrb[0].mxu0
        %v3354 = vadd.f32 %v2581, %v3353
        %3355 = vmatprep.mubr.f32.mxu0 0.0
        %3356 = vmatmul.mubr.f32.gmra.mrb[0].mxu0 %v2599
        %v3357 = vpop.f32.mrb[0].mxu0
        %v3358 = vadd.f32 %v2586, %v3357
        %v3359 = vpop.f32.mrb[0].mxu0
        %v3360 = vadd.f32 %v2586, %v3359
        %3361 = vdwg.mxu0
        %v3362 = vmul.f32 %v2717, 0.5
        %v3363 = vmul.f32 %v2719, 0.5
        %v3364 = vmul.f32 %v2806, 0.5
        %v3365 = vmul.f32 %v2808, 0.5
        %v3366 = vmul.f32 %v2895, 0.5
        %v3367 = vmul.f32 %v2897, 0.5
        %v3368 = vmul.f32 %v2984, 0.5
        %v3369 = vmul.f32 %v2986, 0.5
        %v3370 = vmul.f32 %v3073, 0.5
        %v3371 = vmul.f32 %v3075, 0.5
        %v3372 = vmul.f32 %v3162, 0.5
        %v3373 = vmul.f32 %v3164, 0.5
        %v3374 = vmul.f32 %v3251, 0.5
        %v3375 = vmul.f32 %v3253, 0.5
        %v3376 = vmul.f32 %v3340, 0.5
        %v3377 = vmul.f32 %v3342, 0.5
        %v3378 = vmul.f32 %v2723, 0.5
        %v3379 = vmul.f32 %v2725, 0.5
        %v3380 = vmul.f32 %v2812, 0.5
        %v3381 = vmul.f32 %v2814, 0.5
        %v3382 = vmul.f32 %v2901, 0.5
        %v3383 = vmul.f32 %v2903, 0.5
        %v3384 = vmul.f32 %v2990, 0.5
        %v3385 = vmul.f32 %v2992, 0.5
        %v3386 = vmul.f32 %v3079, 0.5
        %v3387 = vmul.f32 %v3081, 0.5
        %v3388 = vmul.f32 %v3168, 0.5
        %v3389 = vmul.f32 %v3170, 0.5
        %v3390 = vmul.f32 %v3257, 0.5
        %v3391 = vmul.f32 %v3259, 0.5
        %v3392 = vmul.f32 %v3346, 0.5
        %v3393 = vmul.f32 %v3348, 0.5
        %v3394 = vmul.f32 %v2729, 0.5
        %v3395 = vmul.f32 %v2731, 0.5
        %v3396 = vmul.f32 %v2818, 0.5
        %v3397 = vmul.f32 %v2820, 0.5
        %v3398 = vmul.f32 %v2907, 0.5
        %v3399 = vmul.f32 %v2909, 0.5
        %v3400 = vmul.f32 %v2996, 0.5
        %v3401 = vmul.f32 %v2998, 0.5
        %v3402 = vmul.f32 %v3085, 0.5
        %v3403 = vmul.f32 %v3087, 0.5
        %v3404 = vmul.f32 %v3174, 0.5
        %v3405 = vmul.f32 %v3176, 0.5
        %v3406 = vmul.f32 %v3263, 0.5
        %v3407 = vmul.f32 %v3265, 0.5
        %v3408 = vmul.f32 %v3352, 0.5
        %v3409 = vmul.f32 %v3354, 0.5
        %v3410 = vmul.f32 %v2735, 0.5
        %v3411 = vmul.f32 %v2737, 0.5
        %v3412 = vmul.f32 %v2824, 0.5
        %v3413 = vmul.f32 %v2826, 0.5
        %v3414 = vmul.f32 %v2913, 0.5
        %v3415 = vmul.f32 %v2915, 0.5
        %v3416 = vmul.f32 %v3002, 0.5
        %v3417 = vmul.f32 %v3004, 0.5
        %v3418 = vmul.f32 %v3091, 0.5
        %v3419 = vmul.f32 %v3093, 0.5
        %v3420 = vmul.f32 %v3180, 0.5
        %v3421 = vmul.f32 %v3182, 0.5
        %v3422 = vmul.f32 %v3269, 0.5
        %v3423 = vmul.f32 %v3271, 0.5
        %v3424 = vmul.f32 %v3358, 0.5
        %v3425 = vmul.f32 %v3360, 0.5
        %v3426 = vtanh.pop %v3362
        %v3427 = vtanh.pop %v3363
        %v3428 = vtanh.pop %v3364
        %v3429 = vtanh.pop %v3365
        %v3430 = vtanh.pop %v3366
        %v3431 = vtanh.pop %v3367
        %v3432 = vtanh.pop %v3368
        %v3433 = vtanh.pop %v3369
        %v3434 = vtanh.pop %v3370
        %v3435 = vtanh.pop %v3371
        %v3436 = vtanh.pop %v3372
        %v3437 = vtanh.pop %v3373
        %v3438 = vtanh.pop %v3374
        %v3439 = vtanh.pop %v3375
        %v3440 = vtanh.pop %v3376
        %v3441 = vtanh.pop %v3377
        %v3442 = vtanh.pop %v3378
        %v3443 = vtanh.pop %v3379
        %v3444 = vtanh.pop %v3380
        %v3445 = vtanh.pop %v3381
        %v3446 = vtanh.pop %v3382
        %v3447 = vtanh.pop %v3383
        %v3448 = vtanh.pop %v3384
        %v3449 = vtanh.pop %v3385
        %v3450 = vtanh.pop %v3386
        %v3451 = vtanh.pop %v3387
        %v3452 = vtanh.pop %v3388
        %v3453 = vtanh.pop %v3389
        %v3454 = vtanh.pop %v3390
        %v3455 = vtanh.pop %v3391
        %v3456 = vtanh.pop %v3392
        %v3457 = vtanh.pop %v3393
        %v3458 = vtanh.pop %v3394
        %v3459 = vtanh.pop %v3395
        %v3460 = vtanh.pop %v3396
        %v3461 = vtanh.pop %v3397
        %v3462 = vtanh.pop %v3398
        %v3463 = vtanh.pop %v3399
        %v3464 = vtanh.pop %v3400
        %v3465 = vtanh.pop %v3401
        %v3466 = vtanh.pop %v3402
        %v3467 = vtanh.pop %v3403
        %v3468 = vtanh.pop %v3404
        %v3469 = vtanh.pop %v3405
        %v3470 = vtanh.pop %v3406
        %v3471 = vtanh.pop %v3407
        %v3472 = vtanh.pop %v3408
        %v3473 = vtanh.pop %v3409
        %v3474 = vtanh.pop %v3410
        %v3475 = vtanh.pop %v3411
        %v3476 = vtanh.pop %v3412
        %v3477 = vtanh.pop %v3413
        %v3478 = vtanh.pop %v3414
        %v3479 = vtanh.pop %v3415
        %v3480 = vtanh.pop %v3416
        %v3481 = vtanh.pop %v3417
        %v3482 = vtanh.pop %v3418
        %v3483 = vtanh.pop %v3419
        %v3484 = vtanh.pop %v3420
        %v3485 = vtanh.pop %v3421
        %v3486 = vtanh.pop %v3422
        %v3487 = vtanh.pop %v3423
        %v3488 = vtanh.pop %v3424
        %v3489 = vtanh.pop %v3425
        %v3490 = vadd.f32 %v3426, 1.0
        %v3491 = vadd.f32 %v3427, 1.0
        %v3492 = vadd.f32 %v3428, 1.0
        %v3493 = vadd.f32 %v3429, 1.0
        %v3494 = vadd.f32 %v3430, 1.0
        %v3495 = vadd.f32 %v3431, 1.0
        %v3496 = vadd.f32 %v3432, 1.0
        %v3497 = vadd.f32 %v3433, 1.0
        %v3498 = vadd.f32 %v3434, 1.0
        %v3499 = vadd.f32 %v3435, 1.0
        %v3500 = vadd.f32 %v3436, 1.0
        %v3501 = vadd.f32 %v3437, 1.0
        %v3502 = vadd.f32 %v3438, 1.0
        %v3503 = vadd.f32 %v3439, 1.0
        %v3504 = vadd.f32 %v3440, 1.0
        %v3505 = vadd.f32 %v3441, 1.0
        %v3506 = vadd.f32 %v3442, 1.0
        %v3507 = vadd.f32 %v3443, 1.0
        %v3508 = vadd.f32 %v3444, 1.0
        %v3509 = vadd.f32 %v3445, 1.0
        %v3510 = vadd.f32 %v3446, 1.0
        %v3511 = vadd.f32 %v3447, 1.0
        %v3512 = vadd.f32 %v3448, 1.0
        %v3513 = vadd.f32 %v3449, 1.0
        %v3514 = vadd.f32 %v3450, 1.0
        %v3515 = vadd.f32 %v3451, 1.0
        %v3516 = vadd.f32 %v3452, 1.0
        %v3517 = vadd.f32 %v3453, 1.0
        %v3518 = vadd.f32 %v3454, 1.0
        %v3519 = vadd.f32 %v3455, 1.0
        %v3520 = vadd.f32 %v3456, 1.0
        %v3521 = vadd.f32 %v3457, 1.0
        %v3522 = vadd.f32 %v3458, 1.0
        %v3523 = vadd.f32 %v3459, 1.0
        %v3524 = vadd.f32 %v3460, 1.0
        %v3525 = vadd.f32 %v3461, 1.0
        %v3526 = vadd.f32 %v3462, 1.0
        %v3527 = vadd.f32 %v3463, 1.0
        %v3528 = vadd.f32 %v3464, 1.0
        %v3529 = vadd.f32 %v3465, 1.0
        %v3530 = vadd.f32 %v3466, 1.0
        %v3531 = vadd.f32 %v3467, 1.0
        %v3532 = vadd.f32 %v3468, 1.0
        %v3533 = vadd.f32 %v3469, 1.0
        %v3534 = vadd.f32 %v3470, 1.0
        %v3535 = vadd.f32 %v3471, 1.0
        %v3536 = vadd.f32 %v3472, 1.0
        %v3537 = vadd.f32 %v3473, 1.0
        %v3538 = vadd.f32 %v3474, 1.0
        %v3539 = vadd.f32 %v3475, 1.0
        %v3540 = vadd.f32 %v3476, 1.0
        %v3541 = vadd.f32 %v3477, 1.0
        %v3542 = vadd.f32 %v3478, 1.0
        %v3543 = vadd.f32 %v3479, 1.0
        %v3544 = vadd.f32 %v3480, 1.0
        %v3545 = vadd.f32 %v3481, 1.0
        %v3546 = vadd.f32 %v3482, 1.0
        %v3547 = vadd.f32 %v3483, 1.0
        %v3548 = vadd.f32 %v3484, 1.0
        %v3549 = vadd.f32 %v3485, 1.0
        %v3550 = vadd.f32 %v3486, 1.0
        %v3551 = vadd.f32 %v3487, 1.0
        %v3552 = vadd.f32 %v3488, 1.0
        %v3553 = vadd.f32 %v3489, 1.0
        %v3554 = vmul.f32 %v3490, 0.5
        %v3555 = vmul.f32 %v3491, 0.5
        %v3556 = vmul.f32 %v3492, 0.5
        %v3557 = vmul.f32 %v3493, 0.5
        %v3558 = vmul.f32 %v3494, 0.5
        %v3559 = vmul.f32 %v3495, 0.5
        %v3560 = vmul.f32 %v3496, 0.5
        %v3561 = vmul.f32 %v3497, 0.5
        %v3562 = vmul.f32 %v3498, 0.5
        %v3563 = vmul.f32 %v3499, 0.5
        %v3564 = vmul.f32 %v3500, 0.5
        %v3565 = vmul.f32 %v3501, 0.5
        %v3566 = vmul.f32 %v3502, 0.5
        %v3567 = vmul.f32 %v3503, 0.5
        %v3568 = vmul.f32 %v3504, 0.5
        %v3569 = vmul.f32 %v3505, 0.5
        %v3570 = vmul.f32 %v3506, 0.5
        %v3571 = vmul.f32 %v3507, 0.5
        %v3572 = vmul.f32 %v3508, 0.5
        %v3573 = vmul.f32 %v3509, 0.5
        %v3574 = vmul.f32 %v3510, 0.5
        %v3575 = vmul.f32 %v3511, 0.5
        %v3576 = vmul.f32 %v3512, 0.5
        %v3577 = vmul.f32 %v3513, 0.5
        %v3578 = vmul.f32 %v3514, 0.5
        %v3579 = vmul.f32 %v3515, 0.5
        %v3580 = vmul.f32 %v3516, 0.5
        %v3581 = vmul.f32 %v3517, 0.5
        %v3582 = vmul.f32 %v3518, 0.5
        %v3583 = vmul.f32 %v3519, 0.5
        %v3584 = vmul.f32 %v3520, 0.5
        %v3585 = vmul.f32 %v3521, 0.5
        %v3586 = vmul.f32 %v3522, 0.5
        %v3587 = vmul.f32 %v3523, 0.5
        %v3588 = vmul.f32 %v3524, 0.5
        %v3589 = vmul.f32 %v3525, 0.5
        %v3590 = vmul.f32 %v3526, 0.5
        %v3591 = vmul.f32 %v3527, 0.5
        %v3592 = vmul.f32 %v3528, 0.5
        %v3593 = vmul.f32 %v3529, 0.5
        %v3594 = vmul.f32 %v3530, 0.5
        %v3595 = vmul.f32 %v3531, 0.5
        %v3596 = vmul.f32 %v3532, 0.5
        %v3597 = vmul.f32 %v3533, 0.5
        %v3598 = vmul.f32 %v3534, 0.5
        %v3599 = vmul.f32 %v3535, 0.5
        %v3600 = vmul.f32 %v3536, 0.5
        %v3601 = vmul.f32 %v3537, 0.5
        %v3602 = vmul.f32 %v3538, 0.5
        %v3603 = vmul.f32 %v3539, 0.5
        %v3604 = vmul.f32 %v3540, 0.5
        %v3605 = vmul.f32 %v3541, 0.5
        %v3606 = vmul.f32 %v3542, 0.5
        %v3607 = vmul.f32 %v3543, 0.5
        %v3608 = vmul.f32 %v3544, 0.5
        %v3609 = vmul.f32 %v3545, 0.5
        %v3610 = vmul.f32 %v3546, 0.5
        %v3611 = vmul.f32 %v3547, 0.5
        %v3612 = vmul.f32 %v3548, 0.5
        %v3613 = vmul.f32 %v3549, 0.5
        %v3614 = vmul.f32 %v3550, 0.5
        %v3615 = vmul.f32 %v3551, 0.5
        %v3616 = vmul.f32 %v3552, 0.5
        %v3617 = vmul.f32 %v3553, 0.5
        %v3618 = vmul.f32 %v2717, %v3554
        %v3619 = vmul.f32 %v2719, %v3555
        %v3620 = vmul.f32 %v2806, %v3556
        %v3621 = vmul.f32 %v2808, %v3557
        %v3622 = vmul.f32 %v2895, %v3558
        %v3623 = vmul.f32 %v2897, %v3559
        %v3624 = vmul.f32 %v2984, %v3560
        %v3625 = vmul.f32 %v2986, %v3561
        %v3626 = vmul.f32 %v3073, %v3562
        %v3627 = vmul.f32 %v3075, %v3563
        %v3628 = vmul.f32 %v3162, %v3564
        %v3629 = vmul.f32 %v3164, %v3565
        %v3630 = vmul.f32 %v3251, %v3566
        %v3631 = vmul.f32 %v3253, %v3567
        %v3632 = vmul.f32 %v3340, %v3568
        %v3633 = vmul.f32 %v3342, %v3569
        %v3634 = vmul.f32 %v2723, %v3570
        %v3635 = vmul.f32 %v2725, %v3571
        %v3636 = vmul.f32 %v2812, %v3572
        %v3637 = vmul.f32 %v2814, %v3573
        %v3638 = vmul.f32 %v2901, %v3574
        %v3639 = vmul.f32 %v2903, %v3575
        %v3640 = vmul.f32 %v2990, %v3576
        %v3641 = vmul.f32 %v2992, %v3577
        %v3642 = vmul.f32 %v3079, %v3578
        %v3643 = vmul.f32 %v3081, %v3579
        %v3644 = vmul.f32 %v3168, %v3580
        %v3645 = vmul.f32 %v3170, %v3581
        %v3646 = vmul.f32 %v3257, %v3582
        %v3647 = vmul.f32 %v3259, %v3583
        %v3648 = vmul.f32 %v3346, %v3584
        %v3649 = vmul.f32 %v3348, %v3585
        %v3650 = vmul.f32 %v2729, %v3586
        %v3651 = vmul.f32 %v2731, %v3587
        %v3652 = vmul.f32 %v2818, %v3588
        %v3653 = vmul.f32 %v2820, %v3589
        %v3654 = vmul.f32 %v2907, %v3590
        %v3655 = vmul.f32 %v2909, %v3591
        %v3656 = vmul.f32 %v2996, %v3592
        %v3657 = vmul.f32 %v2998, %v3593
        %v3658 = vmul.f32 %v3085, %v3594
        %v3659 = vmul.f32 %v3087, %v3595
        %v3660 = vmul.f32 %v3174, %v3596
        %v3661 = vmul.f32 %v3176, %v3597
        %v3662 = vmul.f32 %v3263, %v3598
        %v3663 = vmul.f32 %v3265, %v3599
        %v3664 = vmul.f32 %v3352, %v3600
        %v3665 = vmul.f32 %v3354, %v3601
        %v3666 = vmul.f32 %v2735, %v3602
        %v3667 = vmul.f32 %v2737, %v3603
        %v3668 = vmul.f32 %v2824, %v3604
        %v3669 = vmul.f32 %v2826, %v3605
        %v3670 = vmul.f32 %v2913, %v3606
        %v3671 = vmul.f32 %v2915, %v3607
        %v3672 = vmul.f32 %v3002, %v3608
        %v3673 = vmul.f32 %v3004, %v3609
        %v3674 = vmul.f32 %v3091, %v3610
        %v3675 = vmul.f32 %v3093, %v3611
        %v3676 = vmul.f32 %v3180, %v3612
        %v3677 = vmul.f32 %v3182, %v3613
        %v3678 = vmul.f32 %v3269, %v3614
        %v3679 = vmul.f32 %v3271, %v3615
        %v3680 = vmul.f32 %v3358, %v3616
        %v3681 = vmul.f32 %v3360, %v3617
        %v3682 = vld [vmem:[%s3] sm:$0xff]
        %v3683 = vld [vmem:[%s3 + $0x8] sm:$0xff]
        %v3684 = vld [vmem:[%s3 + $0x10] sm:$0xff]
        %v3685 = vld [vmem:[%s3 + $0x18] sm:$0xff]
        %v3686 = vld [vmem:[%s4] sm:$0xff]
        %v3687 = vld [vmem:[%s4 + $0x8] sm:$0xff]
        %v3688 = vld [vmem:[%s4 + $0x10] sm:$0xff]
        %v3689 = vld [vmem:[%s4 + $0x18] sm:$0xff]
        %3691 = vset.pattern.permute.xlu0 0
        %3692 = vperm.xlu0 %3691, %v3686
        %v3693 = vpop.permute.xlu0 %3692
        %3696 = vset.pattern.permute.xlu0 0
        %3697 = vperm.xlu0 %3696, %v3687
        %v3698 = vpop.permute.xlu0 %3697
        %3701 = vset.pattern.permute.xlu0 0
        %3702 = vperm.xlu0 %3701, %v3688
        %v3703 = vpop.permute.xlu0 %3702
        %3706 = vset.pattern.permute.xlu0 0
        %3707 = vperm.xlu0 %3706, %v3689
        %v3708 = vpop.permute.xlu0 %3707
        %vm3710 = vcmask 261120
        %v3712 = vsel %vm3710, %v3682, 0
        %v3715 = vsel %vm3710, %v3683, 0
        %v3718 = vsel %vm3710, %v3684, 0
        %v3721 = vsel %vm3710, %v3685, 0
        %3723 = vmatprep.subr.mxu0 %v3619
        %3724 = vmatpush1.msra.mxu0 %v3618
        %3725 = vmatprep.subr.mxu0 %v3635
        %3726 = vmatpush1.msra.mxu0 %v3634
        %3727 = vmatprep.subr.mxu0 %v3651
        %3728 = vmatpush1.msra.mxu0 %v3650
        %3729 = vmatprep.subr.mxu0 %v3667
        %3730 = vmatpush1.msra.mxu0 %v3666
        %3731 = vmatprep.subr.mxu0 0.0
        %3732 = vmatpush1.msra.mxu0 0.0
        %3733 = vmatprep.subr.mxu0 0.0
        %3734 = vmatpush1.msra.mxu0 0.0
        %3735 = vmatprep.subr.mxu0 0.0
        %3736 = vmatpush1.msra.mxu0 0.0
        %3737 = vmatprep.subr.mxu0 0.0
        %3738 = vmatpush1.msra.mxu0 0.0
        %3739 = vmatprep.subr.mxu0 0.0
        %3740 = vmatpush1.msra.mxu0 0.0
        %3741 = vmatprep.subr.mxu0 0.0
        %3742 = vmatpush1.msra.mxu0 0.0
        %3743 = vmatprep.subr.mxu0 0.0
        %3744 = vmatpush1.msra.mxu0 0.0
        %3745 = vmatprep.subr.mxu0 0.0
        %3746 = vmatpush1.msra.mxu0 0.0
        %3747 = vmatprep.subr.mxu0 0.0
        %3748 = vmatpush1.msra.mxu0 0.0
        %3749 = vmatprep.subr.mxu0 0.0
        %3750 = vmatpush1.msra.mxu0 0.0
        %3751 = vmatprep.subr.mxu0 0.0
        %3752 = vmatpush1.msra.mxu0 0.0
        %3753 = vmatprep.subr.mxu0 0.0
        %3754 = vmatpush1.msra.mxu0 0.0
        %3755 = vmatprep.subr.mxu0 0.0
        %3756 = vmatpush1.msra.mxu0 0.0
        %3757 = vmatprep.subr.mxu0 0.0
        %3758 = vmatpush1.msra.mxu0 0.0
        %3759 = vmatprep.subr.mxu0 0.0
        %3760 = vmatpush1.msra.mxu0 0.0
        %3761 = vmatprep.subr.mxu0 0.0
        %3762 = vmatpush1.msra.mxu0 0.0
        %3763 = vmatprep.subr.mxu0 0.0
        %3764 = vmatpush1.msra.mxu0 0.0
        %3765 = vmatprep.subr.mxu0 0.0
        %3766 = vmatpush1.msra.mxu0 0.0
        %3767 = vmatprep.subr.mxu0 0.0
        %3768 = vmatpush1.msra.mxu0 0.0
        %3769 = vmatprep.subr.mxu0 0.0
        %3770 = vmatpush1.msra.mxu0 0.0
        %3771 = vmatprep.subr.mxu0 0.0
        %3772 = vmatpush1.msra.mxu0 0.0
        %3773 = vmatprep.subr.mxu0 0.0
        %3774 = vmatpush1.msra.mxu0 0.0
        %3775 = vmatprep.subr.mxu0 0.0
        %3776 = vmatpush1.msra.mxu0 0.0
        %3777 = vmatprep.subr.mxu0 0.0
        %3778 = vmatpush1.msra.mxu0 0.0
        %3779 = vmatprep.subr.mxu0 0.0
        %3780 = vmatpush1.msra.mxu0 0.0
        %3781 = vmatprep.subr.mxu0 0.0
        %3782 = vmatpush1.msra.mxu0 0.0
        %3783 = vmatprep.subr.mxu0 0.0
        %3784 = vmatpush1.msra.mxu0 0.0
        %3785 = vmatprep.subr.mxu0 0.0
        %3786 = vmatpush1.msra.mxu0 0.0
        %3787 = vmatprep.mubr.f32.mxu0 0.0
        %3788 = vmatmul.mubr.f32.gmra.mrb[0].mxu0 %v3712
        %v3789 = vpop.f32.mrb[0].mxu0
        %v3790 = vadd.f32 %v3693, %v3789
        %v3791 = vpop.f32.mrb[0].mxu0
        %v3792 = vadd.f32 %v3693, %v3791
        %3793 = vmatprep.mubr.f32.mxu0 0.0
        %3794 = vmatmul.mubr.f32.gmra.mrb[0].mxu0 %v3715
        %v3795 = vpop.f32.mrb[0].mxu0
        %v3796 = vadd.f32 %v3698, %v3795
        %v3797 = vpop.f32.mrb[0].mxu0
        %v3798 = vadd.f32 %v3698, %v3797
        %3799 = vmatprep.mubr.f32.mxu0 0.0
        %3800 = vmatmul.mubr.f32.gmra.mrb[0].mxu0 %v3718
        %v3801 = vpop.f32.mrb[0].mxu0
        %v3802 = vadd.f32 %v3703, %v3801
        %v3803 = vpop.f32.mrb[0].mxu0
        %v3804 = vadd.f32 %v3703, %v3803
        %3805 = vmatprep.mubr.f32.mxu0 0.0
        %3806 = vmatmul.mubr.f32.gmra.mrb[0].mxu0 %v3721
        %v3807 = vpop.f32.mrb[0].mxu0
        %v3808 = vadd.f32 %v3708, %v3807
        %v3809 = vpop.f32.mrb[0].mxu0
        %v3810 = vadd.f32 %v3708, %v3809
        %3811 = vdwg.mxu0
        %3812 = vmatprep.subr.mxu0 %v3621
        %3813 = vmatpush1.msra.mxu0 %v3620
        %3814 = vmatprep.subr.mxu0 %v3637
        %3815 = vmatpush1.msra.mxu0 %v3636
        %3816 = vmatprep.subr.mxu0 %v3653
        %3817 = vmatpush1.msra.mxu0 %v3652
        %3818 = vmatprep.subr.mxu0 %v3669
        %3819 = vmatpush1.msra.mxu0 %v3668
        %3820 = vmatprep.subr.mxu0 0.0
        %3821 = vmatpush1.msra.mxu0 0.0
        %3822 = vmatprep.subr.mxu0 0.0
        %3823 = vmatpush1.msra.mxu0 0.0
        %3824 = vmatprep.subr.mxu0 0.0
        %3825 = vmatpush1.msra.mxu0 0.0
        %3826 = vmatprep.subr.mxu0 0.0
        %3827 = vmatpush1.msra.mxu0 0.0
        %3828 = vmatprep.subr.mxu0 0.0
        %3829 = vmatpush1.msra.mxu0 0.0
        %3830 = vmatprep.subr.mxu0 0.0
        %3831 = vmatpush1.msra.mxu0 0.0
        %3832 = vmatprep.subr.mxu0 0.0
        %3833 = vmatpush1.msra.mxu0 0.0
        %3834 = vmatprep.subr.mxu0 0.0
        %3835 = vmatpush1.msra.mxu0 0.0
        %3836 = vmatprep.subr.mxu0 0.0
        %3837 = vmatpush1.msra.mxu0 0.0
        %3838 = vmatprep.subr.mxu0 0.0
        %3839 = vmatpush1.msra.mxu0 0.0
        %3840 = vmatprep.subr.mxu0 0.0
        %3841 = vmatpush1.msra.mxu0 0.0
        %3842 = vmatprep.subr.mxu0 0.0
        %3843 = vmatpush1.msra.mxu0 0.0
        %3844 = vmatprep.subr.mxu0 0.0
        %3845 = vmatpush1.msra.mxu0 0.0
        %3846 = vmatprep.subr.mxu0 0.0
        %3847 = vmatpush1.msra.mxu0 0.0
        %3848 = vmatprep.subr.mxu0 0.0
        %3849 = vmatpush1.msra.mxu0 0.0
        %3850 = vmatprep.subr.mxu0 0.0
        %3851 = vmatpush1.msra.mxu0 0.0
        %3852 = vmatprep.subr.mxu0 0.0
        %3853 = vmatpush1.msra.mxu0 0.0
        %3854 = vmatprep.subr.mxu0 0.0
        %3855 = vmatpush1.msra.mxu0 0.0
        %3856 = vmatprep.subr.mxu0 0.0
        %3857 = vmatpush1.msra.mxu0 0.0
        %3858 = vmatprep.subr.mxu0 0.0
        %3859 = vmatpush1.msra.mxu0 0.0
        %3860 = vmatprep.subr.mxu0 0.0
        %3861 = vmatpush1.msra.mxu0 0.0
        %3862 = vmatprep.subr.mxu0 0.0
        %3863 = vmatpush1.msra.mxu0 0.0
        %3864 = vmatprep.subr.mxu0 0.0
        %3865 = vmatpush1.msra.mxu0 0.0
        %3866 = vmatprep.subr.mxu0 0.0
        %3867 = vmatpush1.msra.mxu0 0.0
        %3868 = vmatprep.subr.mxu0 0.0
        %3869 = vmatpush1.msra.mxu0 0.0
        %3870 = vmatprep.subr.mxu0 0.0
        %3871 = vmatpush1.msra.mxu0 0.0
        %3872 = vmatprep.subr.mxu0 0.0
        %3873 = vmatpush1.msra.mxu0 0.0
        %3874 = vmatprep.subr.mxu0 0.0
        %3875 = vmatpush1.msra.mxu0 0.0
        %3876 = vmatprep.mubr.f32.mxu0 0.0
        %3877 = vmatmul.mubr.f32.gmra.mrb[0].mxu0 %v3712
        %v3878 = vpop.f32.mrb[0].mxu0
        %v3879 = vadd.f32 %v3693, %v3878
        %v3880 = vpop.f32.mrb[0].mxu0
        %v3881 = vadd.f32 %v3693, %v3880
        %3882 = vmatprep.mubr.f32.mxu0 0.0
        %3883 = vmatmul.mubr.f32.gmra.mrb[0].mxu0 %v3715
        %v3884 = vpop.f32.mrb[0].mxu0
        %v3885 = vadd.f32 %v3698, %v3884
        %v3886 = vpop.f32.mrb[0].mxu0
        %v3887 = vadd.f32 %v3698, %v3886
        %3888 = vmatprep.mubr.f32.mxu0 0.0
        %3889 = vmatmul.mubr.f32.gmra.mrb[0].mxu0 %v3718
        %v3890 = vpop.f32.mrb[0].mxu0
        %v3891 = vadd.f32 %v3703, %v3890
        %v3892 = vpop.f32.mrb[0].mxu0
        %v3893 = vadd.f32 %v3703, %v3892
        %3894 = vmatprep.mubr.f32.mxu0 0.0
        %3895 = vmatmul.mubr.f32.gmra.mrb[0].mxu0 %v3721
        %v3896 = vpop.f32.mrb[0].mxu0
        %v3897 = vadd.f32 %v3708, %v3896
        %v3898 = vpop.f32.mrb[0].mxu0
        %v3899 = vadd.f32 %v3708, %v3898
        %3900 = vdwg.mxu0
        %3901 = vmatprep.subr.mxu0 %v3623
        %3902 = vmatpush1.msra.mxu0 %v3622
        %3903 = vmatprep.subr.mxu0 %v3639
        %3904 = vmatpush1.msra.mxu0 %v3638
        %3905 = vmatprep.subr.mxu0 %v3655
        %3906 = vmatpush1.msra.mxu0 %v3654
        %3907 = vmatprep.subr.mxu0 %v3671
        %3908 = vmatpush1.msra.mxu0 %v3670
        %3909 = vmatprep.subr.mxu0 0.0
        %3910 = vmatpush1.msra.mxu0 0.0
        %3911 = vmatprep.subr.mxu0 0.0
        %3912 = vmatpush1.msra.mxu0 0.0
        %3913 = vmatprep.subr.mxu0 0.0
        %3914 = vmatpush1.msra.mxu0 0.0
        %3915 = vmatprep.subr.mxu0 0.0
        %3916 = vmatpush1.msra.mxu0 0.0
        %3917 = vmatprep.subr.mxu0 0.0
        %3918 = vmatpush1.msra.mxu0 0.0
        %3919 = vmatprep.subr.mxu0 0.0
        %3920 = vmatpush1.msra.mxu0 0.0
        %3921 = vmatprep.subr.mxu0 0.0
        %3922 = vmatpush1.msra.mxu0 0.0
        %3923 = vmatprep.subr.mxu0 0.0
        %3924 = vmatpush1.msra.mxu0 0.0
        %3925 = vmatprep.subr.mxu0 0.0
        %3926 = vmatpush1.msra.mxu0 0.0
        %3927 = vmatprep.subr.mxu0 0.0
        %3928 = vmatpush1.msra.mxu0 0.0
        %3929 = vmatprep.subr.mxu0 0.0
        %3930 = vmatpush1.msra.mxu0 0.0
        %3931 = vmatprep.subr.mxu0 0.0
        %3932 = vmatpush1.msra.mxu0 0.0
        %3933 = vmatprep.subr.mxu0 0.0
        %3934 = vmatpush1.msra.mxu0 0.0
        %3935 = vmatprep.subr.mxu0 0.0
        %3936 = vmatpush1.msra.mxu0 0.0
        %3937 = vmatprep.subr.mxu0 0.0
        %3938 = vmatpush1.msra.mxu0 0.0
        %3939 = vmatprep.subr.mxu0 0.0
        %3940 = vmatpush1.msra.mxu0 0.0
        %3941 = vmatprep.subr.mxu0 0.0
        %3942 = vmatpush1.msra.mxu0 0.0
        %3943 = vmatprep.subr.mxu0 0.0
        %3944 = vmatpush1.msra.mxu0 0.0
        %3945 = vmatprep.subr.mxu0 0.0
        %3946 = vmatpush1.msra.mxu0 0.0
        %3947 = vmatprep.subr.mxu0 0.0
        %3948 = vmatpush1.msra.mxu0 0.0
        %3949 = vmatprep.subr.mxu0 0.0
        %3950 = vmatpush1.msra.mxu0 0.0
        %3951 = vmatprep.subr.mxu0 0.0
        %3952 = vmatpush1.msra.mxu0 0.0
        %3953 = vmatprep.subr.mxu0 0.0
        %3954 = vmatpush1.msra.mxu0 0.0
        %3955 = vmatprep.subr.mxu0 0.0
        %3956 = vmatpush1.msra.mxu0 0.0
        %3957 = vmatprep.subr.mxu0 0.0
        %3958 = vmatpush1.msra.mxu0 0.0
        %3959 = vmatprep.subr.mxu0 0.0
        %3960 = vmatpush1.msra.mxu0 0.0
        %3961 = vmatprep.subr.mxu0 0.0
        %3962 = vmatpush1.msra.mxu0 0.0
        %3963 = vmatprep.subr.mxu0 0.0
        %3964 = vmatpush1.msra.mxu0 0.0
        %3965 = vmatprep.mubr.f32.mxu0 0.0
        %3966 = vmatmul.mubr.f32.gmra.mrb[0].mxu0 %v3712
        %v3967 = vpop.f32.mrb[0].mxu0
        %v3968 = vadd.f32 %v3693, %v3967
        %v3969 = vpop.f32.mrb[0].mxu0
        %v3970 = vadd.f32 %v3693, %v3969
        %3971 = vmatprep.mubr.f32.mxu0 0.0
        %3972 = vmatmul.mubr.f32.gmra.mrb[0].mxu0 %v3715
        %v3973 = vpop.f32.mrb[0].mxu0
        %v3974 = vadd.f32 %v3698, %v3973
        %v3975 = vpop.f32.mrb[0].mxu0
        %v3976 = vadd.f32 %v3698, %v3975
        %3977 = vmatprep.mubr.f32.mxu0 0.0
        %3978 = vmatmul.mubr.f32.gmra.mrb[0].mxu0 %v3718
        %v3979 = vpop.f32.mrb[0].mxu0
        %v3980 = vadd.f32 %v3703, %v3979
        %v3981 = vpop.f32.mrb[0].mxu0
        %v3982 = vadd.f32 %v3703, %v3981
        %3983 = vmatprep.mubr.f32.mxu0 0.0
        %3984 = vmatmul.mubr.f32.gmra.mrb[0].mxu0 %v3721
        %v3985 = vpop.f32.mrb[0].mxu0
        %v3986 = vadd.f32 %v3708, %v3985
        %v3987 = vpop.f32.mrb[0].mxu0
        %v3988 = vadd.f32 %v3708, %v3987
        %3989 = vdwg.mxu0
        %3990 = vmatprep.subr.mxu0 %v3625
        %3991 = vmatpush1.msra.mxu0 %v3624
        %3992 = vmatprep.subr.mxu0 %v3641
        %3993 = vmatpush1.msra.mxu0 %v3640
        %3994 = vmatprep.subr.mxu0 %v3657
        %3995 = vmatpush1.msra.mxu0 %v3656
        %3996 = vmatprep.subr.mxu0 %v3673
        %3997 = vmatpush1.msra.mxu0 %v3672
        %3998 = vmatprep.subr.mxu0 0.0
        %3999 = vmatpush1.msra.mxu0 0.0
        %4000 = vmatprep.subr.mxu0 0.0
        %4001 = vmatpush1.msra.mxu0 0.0
        %4002 = vmatprep.subr.mxu0 0.0
        %4003 = vmatpush1.msra.mxu0 0.0
        %4004 = vmatprep.subr.mxu0 0.0
        %4005 = vmatpush1.msra.mxu0 0.0
        %4006 = vmatprep.subr.mxu0 0.0
        %4007 = vmatpush1.msra.mxu0 0.0
        %4008 = vmatprep.subr.mxu0 0.0
        %4009 = vmatpush1.msra.mxu0 0.0
        %4010 = vmatprep.subr.mxu0 0.0
        %4011 = vmatpush1.msra.mxu0 0.0
        %4012 = vmatprep.subr.mxu0 0.0
        %4013 = vmatpush1.msra.mxu0 0.0
        %4014 = vmatprep.subr.mxu0 0.0
        %4015 = vmatpush1.msra.mxu0 0.0
        %4016 = vmatprep.subr.mxu0 0.0
        %4017 = vmatpush1.msra.mxu0 0.0
        %4018 = vmatprep.subr.mxu0 0.0
        %4019 = vmatpush1.msra.mxu0 0.0
        %4020 = vmatprep.subr.mxu0 0.0
        %4021 = vmatpush1.msra.mxu0 0.0
        %4022 = vmatprep.subr.mxu0 0.0
        %4023 = vmatpush1.msra.mxu0 0.0
        %4024 = vmatprep.subr.mxu0 0.0
        %4025 = vmatpush1.msra.mxu0 0.0
        %4026 = vmatprep.subr.mxu0 0.0
        %4027 = vmatpush1.msra.mxu0 0.0
        %4028 = vmatprep.subr.mxu0 0.0
        %4029 = vmatpush1.msra.mxu0 0.0
        %4030 = vmatprep.subr.mxu0 0.0
        %4031 = vmatpush1.msra.mxu0 0.0
        %4032 = vmatprep.subr.mxu0 0.0
        %4033 = vmatpush1.msra.mxu0 0.0
        %4034 = vmatprep.subr.mxu0 0.0
        %4035 = vmatpush1.msra.mxu0 0.0
        %4036 = vmatprep.subr.mxu0 0.0
        %4037 = vmatpush1.msra.mxu0 0.0
        %4038 = vmatprep.subr.mxu0 0.0
        %4039 = vmatpush1.msra.mxu0 0.0
        %4040 = vmatprep.subr.mxu0 0.0
        %4041 = vmatpush1.msra.mxu0 0.0
        %4042 = vmatprep.subr.mxu0 0.0
        %4043 = vmatpush1.msra.mxu0 0.0
        %4044 = vmatprep.subr.mxu0 0.0
        %4045 = vmatpush1.msra.mxu0 0.0
        %4046 = vmatprep.subr.mxu0 0.0
        %4047 = vmatpush1.msra.mxu0 0.0
        %4048 = vmatprep.subr.mxu0 0.0
        %4049 = vmatpush1.msra.mxu0 0.0
        %4050 = vmatprep.subr.mxu0 0.0
        %4051 = vmatpush1.msra.mxu0 0.0
        %4052 = vmatprep.subr.mxu0 0.0
        %4053 = vmatpush1.msra.mxu0 0.0
        %4054 = vmatprep.mubr.f32.mxu0 0.0
        %4055 = vmatmul.mubr.f32.gmra.mrb[0].mxu0 %v3712
        %v4056 = vpop.f32.mrb[0].mxu0
        %v4057 = vadd.f32 %v3693, %v4056
        %v4058 = vpop.f32.mrb[0].mxu0
        %v4059 = vadd.f32 %v3693, %v4058
        %4060 = vmatprep.mubr.f32.mxu0 0.0
        %4061 = vmatmul.mubr.f32.gmra.mrb[0].mxu0 %v3715
        %v4062 = vpop.f32.mrb[0].mxu0
        %v4063 = vadd.f32 %v3698, %v4062
        %v4064 = vpop.f32.mrb[0].mxu0
        %v4065 = vadd.f32 %v3698, %v4064
        %4066 = vmatprep.mubr.f32.mxu0 0.0
        %4067 = vmatmul.mubr.f32.gmra.mrb[0].mxu0 %v3718
        %v4068 = vpop.f32.mrb[0].mxu0
        %v4069 = vadd.f32 %v3703, %v4068
        %v4070 = vpop.f32.mrb[0].mxu0
        %v4071 = vadd.f32 %v3703, %v4070
        %4072 = vmatprep.mubr.f32.mxu0 0.0
        %4073 = vmatmul.mubr.f32.gmra.mrb[0].mxu0 %v3721
        %v4074 = vpop.f32.mrb[0].mxu0
        %v4075 = vadd.f32 %v3708, %v4074
        %v4076 = vpop.f32.mrb[0].mxu0
        %v4077 = vadd.f32 %v3708, %v4076
        %4078 = vdwg.mxu0
        %4079 = vmatprep.subr.mxu0 %v3627
        %4080 = vmatpush1.msra.mxu0 %v3626
        %4081 = vmatprep.subr.mxu0 %v3643
        %4082 = vmatpush1.msra.mxu0 %v3642
        %4083 = vmatprep.subr.mxu0 %v3659
        %4084 = vmatpush1.msra.mxu0 %v3658
        %4085 = vmatprep.subr.mxu0 %v3675
        %4086 = vmatpush1.msra.mxu0 %v3674
        %4087 = vmatprep.subr.mxu0 0.0
        %4088 = vmatpush1.msra.mxu0 0.0
        %4089 = vmatprep.subr.mxu0 0.0
        %4090 = vmatpush1.msra.mxu0 0.0
        %4091 = vmatprep.subr.mxu0 0.0
        %4092 = vmatpush1.msra.mxu0 0.0
        %4093 = vmatprep.subr.mxu0 0.0
        %4094 = vmatpush1.msra.mxu0 0.0
        %4095 = vmatprep.subr.mxu0 0.0
        %4096 = vmatpush1.msra.mxu0 0.0
        %4097 = vmatprep.subr.mxu0 0.0
        %4098 = vmatpush1.msra.mxu0 0.0
        %4099 = vmatprep.subr.mxu0 0.0
        %4100 = vmatpush1.msra.mxu0 0.0
        %4101 = vmatprep.subr.mxu0 0.0
        %4102 = vmatpush1.msra.mxu0 0.0
        %4103 = vmatprep.subr.mxu0 0.0
        %4104 = vmatpush1.msra.mxu0 0.0
        %4105 = vmatprep.subr.mxu0 0.0
        %4106 = vmatpush1.msra.mxu0 0.0
        %4107 = vmatprep.subr.mxu0 0.0
        %4108 = vmatpush1.msra.mxu0 0.0
        %4109 = vmatprep.subr.mxu0 0.0
        %4110 = vmatpush1.msra.mxu0 0.0
        %4111 = vmatprep.subr.mxu0 0.0
        %4112 = vmatpush1.msra.mxu0 0.0
        %4113 = vmatprep.subr.mxu0 0.0
        %4114 = vmatpush1.msra.mxu0 0.0
        %4115 = vmatprep.subr.mxu0 0.0
        %4116 = vmatpush1.msra.mxu0 0.0
        %4117 = vmatprep.subr.mxu0 0.0
        %4118 = vmatpush1.msra.mxu0 0.0
        %4119 = vmatprep.subr.mxu0 0.0
        %4120 = vmatpush1.msra.mxu0 0.0
        %4121 = vmatprep.subr.mxu0 0.0
        %4122 = vmatpush1.msra.mxu0 0.0
        %4123 = vmatprep.subr.mxu0 0.0
        %4124 = vmatpush1.msra.mxu0 0.0
        %4125 = vmatprep.subr.mxu0 0.0
        %4126 = vmatpush1.msra.mxu0 0.0
        %4127 = vmatprep.subr.mxu0 0.0
        %4128 = vmatpush1.msra.mxu0 0.0
        %4129 = vmatprep.subr.mxu0 0.0
        %4130 = vmatpush1.msra.mxu0 0.0
        %4131 = vmatprep.subr.mxu0 0.0
        %4132 = vmatpush1.msra.mxu0 0.0
        %4133 = vmatprep.subr.mxu0 0.0
        %4134 = vmatpush1.msra.mxu0 0.0
        %4135 = vmatprep.subr.mxu0 0.0
        %4136 = vmatpush1.msra.mxu0 0.0
        %4137 = vmatprep.subr.mxu0 0.0
        %4138 = vmatpush1.msra.mxu0 0.0
        %4139 = vmatprep.subr.mxu0 0.0
        %4140 = vmatpush1.msra.mxu0 0.0
        %4141 = vmatprep.subr.mxu0 0.0
        %4142 = vmatpush1.msra.mxu0 0.0
        %4143 = vmatprep.mubr.f32.mxu0 0.0
        %4144 = vmatmul.mubr.f32.gmra.mrb[0].mxu0 %v3712
        %v4145 = vpop.f32.mrb[0].mxu0
        %v4146 = vadd.f32 %v3693, %v4145
        %v4147 = vpop.f32.mrb[0].mxu0
        %v4148 = vadd.f32 %v3693, %v4147
        %4149 = vmatprep.mubr.f32.mxu0 0.0
        %4150 = vmatmul.mubr.f32.gmra.mrb[0].mxu0 %v3715
        %v4151 = vpop.f32.mrb[0].mxu0
        %v4152 = vadd.f32 %v3698, %v4151
        %v4153 = vpop.f32.mrb[0].mxu0
        %v4154 = vadd.f32 %v3698, %v4153
        %4155 = vmatprep.mubr.f32.mxu0 0.0
        %4156 = vmatmul.mubr.f32.gmra.mrb[0].mxu0 %v3718
        %v4157 = vpop.f32.mrb[0].mxu0
        %v4158 = vadd.f32 %v3703, %v4157
        %v4159 = vpop.f32.mrb[0].mxu0
        %v4160 = vadd.f32 %v3703, %v4159
        %4161 = vmatprep.mubr.f32.mxu0 0.0
        %4162 = vmatmul.mubr.f32.gmra.mrb[0].mxu0 %v3721
        %v4163 = vpop.f32.mrb[0].mxu0
        %v4164 = vadd.f32 %v3708, %v4163
        %v4165 = vpop.f32.mrb[0].mxu0
        %v4166 = vadd.f32 %v3708, %v4165
        %4167 = vdwg.mxu0
        %4168 = vmatprep.subr.mxu0 %v3629
        %4169 = vmatpush1.msra.mxu0 %v3628
        %4170 = vmatprep.subr.mxu0 %v3645
        %4171 = vmatpush1.msra.mxu0 %v3644
        %4172 = vmatprep.subr.mxu0 %v3661
        %4173 = vmatpush1.msra.mxu0 %v3660
        %4174 = vmatprep.subr.mxu0 %v3677
        %4175 = vmatpush1.msra.mxu0 %v3676
        %4176 = vmatprep.subr.mxu0 0.0
        %4177 = vmatpush1.msra.mxu0 0.0
        %4178 = vmatprep.subr.mxu0 0.0
        %4179 = vmatpush1.msra.mxu0 0.0
        %4180 = vmatprep.subr.mxu0 0.0
        %4181 = vmatpush1.msra.mxu0 0.0
        %4182 = vmatprep.subr.mxu0 0.0
        %4183 = vmatpush1.msra.mxu0 0.0
        %4184 = vmatprep.subr.mxu0 0.0
        %4185 = vmatpush1.msra.mxu0 0.0
        %4186 = vmatprep.subr.mxu0 0.0
        %4187 = vmatpush1.msra.mxu0 0.0
        %4188 = vmatprep.subr.mxu0 0.0
        %4189 = vmatpush1.msra.mxu0 0.0
        %4190 = vmatprep.subr.mxu0 0.0
        %4191 = vmatpush1.msra.mxu0 0.0
        %4192 = vmatprep.subr.mxu0 0.0
        %4193 = vmatpush1.msra.mxu0 0.0
        %4194 = vmatprep.subr.mxu0 0.0
        %4195 = vmatpush1.msra.mxu0 0.0
        %4196 = vmatprep.subr.mxu0 0.0
        %4197 = vmatpush1.msra.mxu0 0.0
        %4198 = vmatprep.subr.mxu0 0.0
        %4199 = vmatpush1.msra.mxu0 0.0
        %4200 = vmatprep.subr.mxu0 0.0
        %4201 = vmatpush1.msra.mxu0 0.0
        %4202 = vmatprep.subr.mxu0 0.0
        %4203 = vmatpush1.msra.mxu0 0.0
        %4204 = vmatprep.subr.mxu0 0.0
        %4205 = vmatpush1.msra.mxu0 0.0
        %4206 = vmatprep.subr.mxu0 0.0
        %4207 = vmatpush1.msra.mxu0 0.0
        %4208 = vmatprep.subr.mxu0 0.0
        %4209 = vmatpush1.msra.mxu0 0.0
        %4210 = vmatprep.subr.mxu0 0.0
        %4211 = vmatpush1.msra.mxu0 0.0
        %4212 = vmatprep.subr.mxu0 0.0
        %4213 = vmatpush1.msra.mxu0 0.0
        %4214 = vmatprep.subr.mxu0 0.0
        %4215 = vmatpush1.msra.mxu0 0.0
        %4216 = vmatprep.subr.mxu0 0.0
        %4217 = vmatpush1.msra.mxu0 0.0
        %4218 = vmatprep.subr.mxu0 0.0
        %4219 = vmatpush1.msra.mxu0 0.0
        %4220 = vmatprep.subr.mxu0 0.0
        %4221 = vmatpush1.msra.mxu0 0.0
        %4222 = vmatprep.subr.mxu0 0.0
        %4223 = vmatpush1.msra.mxu0 0.0
        %4224 = vmatprep.subr.mxu0 0.0
        %4225 = vmatpush1.msra.mxu0 0.0
        %4226 = vmatprep.subr.mxu0 0.0
        %4227 = vmatpush1.msra.mxu0 0.0
        %4228 = vmatprep.subr.mxu0 0.0
        %4229 = vmatpush1.msra.mxu0 0.0
        %4230 = vmatprep.subr.mxu0 0.0
        %4231 = vmatpush1.msra.mxu0 0.0
        %4232 = vmatprep.mubr.f32.mxu0 0.0
        %4233 = vmatmul.mubr.f32.gmra.mrb[0].mxu0 %v3712
        %v4234 = vpop.f32.mrb[0].mxu0
        %v4235 = vadd.f32 %v3693, %v4234
        %v4236 = vpop.f32.mrb[0].mxu0
        %v4237 = vadd.f32 %v3693, %v4236
        %4238 = vmatprep.mubr.f32.mxu0 0.0
        %4239 = vmatmul.mubr.f32.gmra.mrb[0].mxu0 %v3715
        %v4240 = vpop.f32.mrb[0].mxu0
        %v4241 = vadd.f32 %v3698, %v4240
        %v4242 = vpop.f32.mrb[0].mxu0
        %v4243 = vadd.f32 %v3698, %v4242
        %4244 = vmatprep.mubr.f32.mxu0 0.0
        %4245 = vmatmul.mubr.f32.gmra.mrb[0].mxu0 %v3718
        %v4246 = vpop.f32.mrb[0].mxu0
        %v4247 = vadd.f32 %v3703, %v4246
        %v4248 = vpop.f32.mrb[0].mxu0
        %v4249 = vadd.f32 %v3703, %v4248
        %4250 = vmatprep.mubr.f32.mxu0 0.0
        %4251 = vmatmul.mubr.f32.gmra.mrb[0].mxu0 %v3721
        %v4252 = vpop.f32.mrb[0].mxu0
        %v4253 = vadd.f32 %v3708, %v4252
        %v4254 = vpop.f32.mrb[0].mxu0
        %v4255 = vadd.f32 %v3708, %v4254
        %4256 = vdwg.mxu0
        %4257 = vmatprep.subr.mxu0 %v3631
        %4258 = vmatpush1.msra.mxu0 %v3630
        %4259 = vmatprep.subr.mxu0 %v3647
        %4260 = vmatpush1.msra.mxu0 %v3646
        %4261 = vmatprep.subr.mxu0 %v3663
        %4262 = vmatpush1.msra.mxu0 %v3662
        %4263 = vmatprep.subr.mxu0 %v3679
        %4264 = vmatpush1.msra.mxu0 %v3678
        %4265 = vmatprep.subr.mxu0 0.0
        %4266 = vmatpush1.msra.mxu0 0.0
        %4267 = vmatprep.subr.mxu0 0.0
        %4268 = vmatpush1.msra.mxu0 0.0
        %4269 = vmatprep.subr.mxu0 0.0
        %4270 = vmatpush1.msra.mxu0 0.0
        %4271 = vmatprep.subr.mxu0 0.0
        %4272 = vmatpush1.msra.mxu0 0.0
        %4273 = vmatprep.subr.mxu0 0.0
        %4274 = vmatpush1.msra.mxu0 0.0
        %4275 = vmatprep.subr.mxu0 0.0
        %4276 = vmatpush1.msra.mxu0 0.0
        %4277 = vmatprep.subr.mxu0 0.0
        %4278 = vmatpush1.msra.mxu0 0.0
        %4279 = vmatprep.subr.mxu0 0.0
        %4280 = vmatpush1.msra.mxu0 0.0
        %4281 = vmatprep.subr.mxu0 0.0
        %4282 = vmatpush1.msra.mxu0 0.0
        %4283 = vmatprep.subr.mxu0 0.0
        %4284 = vmatpush1.msra.mxu0 0.0
        %4285 = vmatprep.subr.mxu0 0.0
        %4286 = vmatpush1.msra.mxu0 0.0
        %4287 = vmatprep.subr.mxu0 0.0
        %4288 = vmatpush1.msra.mxu0 0.0
        %4289 = vmatprep.subr.mxu0 0.0
        %4290 = vmatpush1.msra.mxu0 0.0
        %4291 = vmatprep.subr.mxu0 0.0
        %4292 = vmatpush1.msra.mxu0 0.0
        %4293 = vmatprep.subr.mxu0 0.0
        %4294 = vmatpush1.msra.mxu0 0.0
        %4295 = vmatprep.subr.mxu0 0.0
        %4296 = vmatpush1.msra.mxu0 0.0
        %4297 = vmatprep.subr.mxu0 0.0
        %4298 = vmatpush1.msra.mxu0 0.0
        %4299 = vmatprep.subr.mxu0 0.0
        %4300 = vmatpush1.msra.mxu0 0.0
        %4301 = vmatprep.subr.mxu0 0.0
        %4302 = vmatpush1.msra.mxu0 0.0
        %4303 = vmatprep.subr.mxu0 0.0
        %4304 = vmatpush1.msra.mxu0 0.0
        %4305 = vmatprep.subr.mxu0 0.0
        %4306 = vmatpush1.msra.mxu0 0.0
        %4307 = vmatprep.subr.mxu0 0.0
        %4308 = vmatpush1.msra.mxu0 0.0
        %4309 = vmatprep.subr.mxu0 0.0
        %4310 = vmatpush1.msra.mxu0 0.0
        %4311 = vmatprep.subr.mxu0 0.0
        %4312 = vmatpush1.msra.mxu0 0.0
        %4313 = vmatprep.subr.mxu0 0.0
        %4314 = vmatpush1.msra.mxu0 0.0
        %4315 = vmatprep.subr.mxu0 0.0
        %4316 = vmatpush1.msra.mxu0 0.0
        %4317 = vmatprep.subr.mxu0 0.0
        %4318 = vmatpush1.msra.mxu0 0.0
        %4319 = vmatprep.subr.mxu0 0.0
        %4320 = vmatpush1.msra.mxu0 0.0
        %4321 = vmatprep.mubr.f32.mxu0 0.0
        %4322 = vmatmul.mubr.f32.gmra.mrb[0].mxu0 %v3712
        %v4323 = vpop.f32.mrb[0].mxu0
        %v4324 = vadd.f32 %v3693, %v4323
        %v4325 = vpop.f32.mrb[0].mxu0
        %v4326 = vadd.f32 %v3693, %v4325
        %4327 = vmatprep.mubr.f32.mxu0 0.0
        %4328 = vmatmul.mubr.f32.gmra.mrb[0].mxu0 %v3715
        %v4329 = vpop.f32.mrb[0].mxu0
        %v4330 = vadd.f32 %v3698, %v4329
        %v4331 = vpop.f32.mrb[0].mxu0
        %v4332 = vadd.f32 %v3698, %v4331
        %4333 = vmatprep.mubr.f32.mxu0 0.0
        %4334 = vmatmul.mubr.f32.gmra.mrb[0].mxu0 %v3718
        %v4335 = vpop.f32.mrb[0].mxu0
        %v4336 = vadd.f32 %v3703, %v4335
        %v4337 = vpop.f32.mrb[0].mxu0
        %v4338 = vadd.f32 %v3703, %v4337
        %4339 = vmatprep.mubr.f32.mxu0 0.0
        %4340 = vmatmul.mubr.f32.gmra.mrb[0].mxu0 %v3721
        %v4341 = vpop.f32.mrb[0].mxu0
        %v4342 = vadd.f32 %v3708, %v4341
        %v4343 = vpop.f32.mrb[0].mxu0
        %v4344 = vadd.f32 %v3708, %v4343
        %4345 = vdwg.mxu0
        %4346 = vmatprep.subr.mxu0 %v3633
        %4347 = vmatpush1.msra.mxu0 %v3632
        %4348 = vmatprep.subr.mxu0 %v3649
        %4349 = vmatpush1.msra.mxu0 %v3648
        %4350 = vmatprep.subr.mxu0 %v3665
        %4351 = vmatpush1.msra.mxu0 %v3664
        %4352 = vmatprep.subr.mxu0 %v3681
        %4353 = vmatpush1.msra.mxu0 %v3680
        %4354 = vmatprep.subr.mxu0 0.0
        %4355 = vmatpush1.msra.mxu0 0.0
        %4356 = vmatprep.subr.mxu0 0.0
        %4357 = vmatpush1.msra.mxu0 0.0
        %4358 = vmatprep.subr.mxu0 0.0
        %4359 = vmatpush1.msra.mxu0 0.0
        %4360 = vmatprep.subr.mxu0 0.0
        %4361 = vmatpush1.msra.mxu0 0.0
        %4362 = vmatprep.subr.mxu0 0.0
        %4363 = vmatpush1.msra.mxu0 0.0
        %4364 = vmatprep.subr.mxu0 0.0
        %4365 = vmatpush1.msra.mxu0 0.0
        %4366 = vmatprep.subr.mxu0 0.0
        %4367 = vmatpush1.msra.mxu0 0.0
        %4368 = vmatprep.subr.mxu0 0.0
        %4369 = vmatpush1.msra.mxu0 0.0
        %4370 = vmatprep.subr.mxu0 0.0
        %4371 = vmatpush1.msra.mxu0 0.0
        %4372 = vmatprep.subr.mxu0 0.0
        %4373 = vmatpush1.msra.mxu0 0.0
        %4374 = vmatprep.subr.mxu0 0.0
        %4375 = vmatpush1.msra.mxu0 0.0
        %4376 = vmatprep.subr.mxu0 0.0
        %4377 = vmatpush1.msra.mxu0 0.0
        %4378 = vmatprep.subr.mxu0 0.0
        %4379 = vmatpush1.msra.mxu0 0.0
        %4380 = vmatprep.subr.mxu0 0.0
        %4381 = vmatpush1.msra.mxu0 0.0
        %4382 = vmatprep.subr.mxu0 0.0
        %4383 = vmatpush1.msra.mxu0 0.0
        %4384 = vmatprep.subr.mxu0 0.0
        %4385 = vmatpush1.msra.mxu0 0.0
        %4386 = vmatprep.subr.mxu0 0.0
        %4387 = vmatpush1.msra.mxu0 0.0
        %4388 = vmatprep.subr.mxu0 0.0
        %4389 = vmatpush1.msra.mxu0 0.0
        %4390 = vmatprep.subr.mxu0 0.0
        %4391 = vmatpush1.msra.mxu0 0.0
        %4392 = vmatprep.subr.mxu0 0.0
        %4393 = vmatpush1.msra.mxu0 0.0
        %4394 = vmatprep.subr.mxu0 0.0
        %4395 = vmatpush1.msra.mxu0 0.0
        %4396 = vmatprep.subr.mxu0 0.0
        %4397 = vmatpush1.msra.mxu0 0.0
        %4398 = vmatprep.subr.mxu0 0.0
        %4399 = vmatpush1.msra.mxu0 0.0
        %4400 = vmatprep.subr.mxu0 0.0
        %4401 = vmatpush1.msra.mxu0 0.0
        %4402 = vmatprep.subr.mxu0 0.0
        %4403 = vmatpush1.msra.mxu0 0.0
        %4404 = vmatprep.subr.mxu0 0.0
        %4405 = vmatpush1.msra.mxu0 0.0
        %4406 = vmatprep.subr.mxu0 0.0
        %4407 = vmatpush1.msra.mxu0 0.0
        %4408 = vmatprep.subr.mxu0 0.0
        %4409 = vmatpush1.msra.mxu0 0.0
        %4410 = vmatprep.mubr.f32.mxu0 0.0
        %4411 = vmatmul.mubr.f32.gmra.mrb[0].mxu0 %v3712
        %v4412 = vpop.f32.mrb[0].mxu0
        %v4413 = vadd.f32 %v3693, %v4412
        %v4414 = vpop.f32.mrb[0].mxu0
        %v4415 = vadd.f32 %v3693, %v4414
        %4416 = vmatprep.mubr.f32.mxu0 0.0
        %4417 = vmatmul.mubr.f32.gmra.mrb[0].mxu0 %v3715
        %v4418 = vpop.f32.mrb[0].mxu0
        %v4419 = vadd.f32 %v3698, %v4418
        %v4420 = vpop.f32.mrb[0].mxu0
        %v4421 = vadd.f32 %v3698, %v4420
        %4422 = vmatprep.mubr.f32.mxu0 0.0
        %4423 = vmatmul.mubr.f32.gmra.mrb[0].mxu0 %v3718
        %v4424 = vpop.f32.mrb[0].mxu0
        %v4425 = vadd.f32 %v3703, %v4424
        %v4426 = vpop.f32.mrb[0].mxu0
        %v4427 = vadd.f32 %v3703, %v4426
        %4428 = vmatprep.mubr.f32.mxu0 0.0
        %4429 = vmatmul.mubr.f32.gmra.mrb[0].mxu0 %v3721
        %v4430 = vpop.f32.mrb[0].mxu0
        %v4431 = vadd.f32 %v3708, %v4430
        %v4432 = vpop.f32.mrb[0].mxu0
        %v4433 = vadd.f32 %v3708, %v4432
        %4434 = vdwg.mxu0
        %v4435 = vmul.f32 %v3790, 0.5
        %v4436 = vmul.f32 %v3792, 0.5
        %v4437 = vmul.f32 %v3879, 0.5
        %v4438 = vmul.f32 %v3881, 0.5
        %v4439 = vmul.f32 %v3968, 0.5
        %v4440 = vmul.f32 %v3970, 0.5
        %v4441 = vmul.f32 %v4057, 0.5
        %v4442 = vmul.f32 %v4059, 0.5
        %v4443 = vmul.f32 %v4146, 0.5
        %v4444 = vmul.f32 %v4148, 0.5
        %v4445 = vmul.f32 %v4235, 0.5
        %v4446 = vmul.f32 %v4237, 0.5
        %v4447 = vmul.f32 %v4324, 0.5
        %v4448 = vmul.f32 %v4326, 0.5
        %v4449 = vmul.f32 %v4413, 0.5
        %v4450 = vmul.f32 %v4415, 0.5
        %v4451 = vmul.f32 %v3796, 0.5
        %v4452 = vmul.f32 %v3798, 0.5
        %v4453 = vmul.f32 %v3885, 0.5
        %v4454 = vmul.f32 %v3887, 0.5
        %v4455 = vmul.f32 %v3974, 0.5
        %v4456 = vmul.f32 %v3976, 0.5
        %v4457 = vmul.f32 %v4063, 0.5
        %v4458 = vmul.f32 %v4065, 0.5
        %v4459 = vmul.f32 %v4152, 0.5
        %v4460 = vmul.f32 %v4154, 0.5
        %v4461 = vmul.f32 %v4241, 0.5
        %v4462 = vmul.f32 %v4243, 0.5
        %v4463 = vmul.f32 %v4330, 0.5
        %v4464 = vmul.f32 %v4332, 0.5
        %v4465 = vmul.f32 %v4419, 0.5
        %v4466 = vmul.f32 %v4421, 0.5
        %v4467 = vmul.f32 %v3802, 0.5
        %v4468 = vmul.f32 %v3804, 0.5
        %v4469 = vmul.f32 %v3891, 0.5
        %v4470 = vmul.f32 %v3893, 0.5
        %v4471 = vmul.f32 %v3980, 0.5
        %v4472 = vmul.f32 %v3982, 0.5
        %v4473 = vmul.f32 %v4069, 0.5
        %v4474 = vmul.f32 %v4071, 0.5
        %v4475 = vmul.f32 %v4158, 0.5
        %v4476 = vmul.f32 %v4160, 0.5
        %v4477 = vmul.f32 %v4247, 0.5
        %v4478 = vmul.f32 %v4249, 0.5
        %v4479 = vmul.f32 %v4336, 0.5
        %v4480 = vmul.f32 %v4338, 0.5
        %v4481 = vmul.f32 %v4425, 0.5
        %v4482 = vmul.f32 %v4427, 0.5
        %v4483 = vmul.f32 %v3808, 0.5
        %v4484 = vmul.f32 %v3810, 0.5
        %v4485 = vmul.f32 %v3897, 0.5
        %v4486 = vmul.f32 %v3899, 0.5
        %v4487 = vmul.f32 %v3986, 0.5
        %v4488 = vmul.f32 %v3988, 0.5
        %v4489 = vmul.f32 %v4075, 0.5
        %v4490 = vmul.f32 %v4077, 0.5
        %v4491 = vmul.f32 %v4164, 0.5
        %v4492 = vmul.f32 %v4166, 0.5
        %v4493 = vmul.f32 %v4253, 0.5
        %v4494 = vmul.f32 %v4255, 0.5
        %v4495 = vmul.f32 %v4342, 0.5
        %v4496 = vmul.f32 %v4344, 0.5
        %v4497 = vmul.f32 %v4431, 0.5
        %v4498 = vmul.f32 %v4433, 0.5
        %v4499 = vtanh.pop %v4435
        %v4500 = vtanh.pop %v4436
        %v4501 = vtanh.pop %v4437
        %v4502 = vtanh.pop %v4438
        %v4503 = vtanh.pop %v4439
        %v4504 = vtanh.pop %v4440
        %v4505 = vtanh.pop %v4441
        %v4506 = vtanh.pop %v4442
        %v4507 = vtanh.pop %v4443
        %v4508 = vtanh.pop %v4444
        %v4509 = vtanh.pop %v4445
        %v4510 = vtanh.pop %v4446
        %v4511 = vtanh.pop %v4447
        %v4512 = vtanh.pop %v4448
        %v4513 = vtanh.pop %v4449
        %v4514 = vtanh.pop %v4450
        %v4515 = vtanh.pop %v4451
        %v4516 = vtanh.pop %v4452
        %v4517 = vtanh.pop %v4453
        %v4518 = vtanh.pop %v4454
        %v4519 = vtanh.pop %v4455
        %v4520 = vtanh.pop %v4456
        %v4521 = vtanh.pop %v4457
        %v4522 = vtanh.pop %v4458
        %v4523 = vtanh.pop %v4459
        %v4524 = vtanh.pop %v4460
        %v4525 = vtanh.pop %v4461
        %v4526 = vtanh.pop %v4462
        %v4527 = vtanh.pop %v4463
        %v4528 = vtanh.pop %v4464
        %v4529 = vtanh.pop %v4465
        %v4530 = vtanh.pop %v4466
        %v4531 = vtanh.pop %v4467
        %v4532 = vtanh.pop %v4468
        %v4533 = vtanh.pop %v4469
        %v4534 = vtanh.pop %v4470
        %v4535 = vtanh.pop %v4471
        %v4536 = vtanh.pop %v4472
        %v4537 = vtanh.pop %v4473
        %v4538 = vtanh.pop %v4474
        %v4539 = vtanh.pop %v4475
        %v4540 = vtanh.pop %v4476
        %v4541 = vtanh.pop %v4477
        %v4542 = vtanh.pop %v4478
        %v4543 = vtanh.pop %v4479
        %v4544 = vtanh.pop %v4480
        %v4545 = vtanh.pop %v4481
        %v4546 = vtanh.pop %v4482
        %v4547 = vtanh.pop %v4483
        %v4548 = vtanh.pop %v4484
        %v4549 = vtanh.pop %v4485
        %v4550 = vtanh.pop %v4486
        %v4551 = vtanh.pop %v4487
        %v4552 = vtanh.pop %v4488
        %v4553 = vtanh.pop %v4489
        %v4554 = vtanh.pop %v4490
        %v4555 = vtanh.pop %v4491
        %v4556 = vtanh.pop %v4492
        %v4557 = vtanh.pop %v4493
        %v4558 = vtanh.pop %v4494
        %v4559 = vtanh.pop %v4495
        %v4560 = vtanh.pop %v4496
        %v4561 = vtanh.pop %v4497
        %v4562 = vtanh.pop %v4498
        %v4563 = vadd.f32 %v4499, 1.0
        %v4564 = vadd.f32 %v4500, 1.0
        %v4565 = vadd.f32 %v4501, 1.0
        %v4566 = vadd.f32 %v4502, 1.0
        %v4567 = vadd.f32 %v4503, 1.0
        %v4568 = vadd.f32 %v4504, 1.0
        %v4569 = vadd.f32 %v4505, 1.0
        %v4570 = vadd.f32 %v4506, 1.0
        %v4571 = vadd.f32 %v4507, 1.0
        %v4572 = vadd.f32 %v4508, 1.0
        %v4573 = vadd.f32 %v4509, 1.0
        %v4574 = vadd.f32 %v4510, 1.0
        %v4575 = vadd.f32 %v4511, 1.0
        %v4576 = vadd.f32 %v4512, 1.0
        %v4577 = vadd.f32 %v4513, 1.0
        %v4578 = vadd.f32 %v4514, 1.0
        %v4579 = vadd.f32 %v4515, 1.0
        %v4580 = vadd.f32 %v4516, 1.0
        %v4581 = vadd.f32 %v4517, 1.0
        %v4582 = vadd.f32 %v4518, 1.0
        %v4583 = vadd.f32 %v4519, 1.0
        %v4584 = vadd.f32 %v4520, 1.0
        %v4585 = vadd.f32 %v4521, 1.0
        %v4586 = vadd.f32 %v4522, 1.0
        %v4587 = vadd.f32 %v4523, 1.0
        %v4588 = vadd.f32 %v4524, 1.0
        %v4589 = vadd.f32 %v4525, 1.0
        %v4590 = vadd.f32 %v4526, 1.0
        %v4591 = vadd.f32 %v4527, 1.0
        %v4592 = vadd.f32 %v4528, 1.0
        %v4593 = vadd.f32 %v4529, 1.0
        %v4594 = vadd.f32 %v4530, 1.0
        %v4595 = vadd.f32 %v4531, 1.0
        %v4596 = vadd.f32 %v4532, 1.0
        %v4597 = vadd.f32 %v4533, 1.0
        %v4598 = vadd.f32 %v4534, 1.0
        %v4599 = vadd.f32 %v4535, 1.0
        %v4600 = vadd.f32 %v4536, 1.0
        %v4601 = vadd.f32 %v4537, 1.0
        %v4602 = vadd.f32 %v4538, 1.0
        %v4603 = vadd.f32 %v4539, 1.0
        %v4604 = vadd.f32 %v4540, 1.0
        %v4605 = vadd.f32 %v4541, 1.0
        %v4606 = vadd.f32 %v4542, 1.0
        %v4607 = vadd.f32 %v4543, 1.0
        %v4608 = vadd.f32 %v4544, 1.0
        %v4609 = vadd.f32 %v4545, 1.0
        %v4610 = vadd.f32 %v4546, 1.0
        %v4611 = vadd.f32 %v4547, 1.0
        %v4612 = vadd.f32 %v4548, 1.0
        %v4613 = vadd.f32 %v4549, 1.0
        %v4614 = vadd.f32 %v4550, 1.0
        %v4615 = vadd.f32 %v4551, 1.0
        %v4616 = vadd.f32 %v4552, 1.0
        %v4617 = vadd.f32 %v4553, 1.0
        %v4618 = vadd.f32 %v4554, 1.0
        %v4619 = vadd.f32 %v4555, 1.0
        %v4620 = vadd.f32 %v4556, 1.0
        %v4621 = vadd.f32 %v4557, 1.0
        %v4622 = vadd.f32 %v4558, 1.0
        %v4623 = vadd.f32 %v4559, 1.0
        %v4624 = vadd.f32 %v4560, 1.0
        %v4625 = vadd.f32 %v4561, 1.0
        %v4626 = vadd.f32 %v4562, 1.0
        %v4627 = vmul.f32 %v4563, 0.5
        %v4628 = vmul.f32 %v4564, 0.5
        %v4629 = vmul.f32 %v4565, 0.5
        %v4630 = vmul.f32 %v4566, 0.5
        %v4631 = vmul.f32 %v4567, 0.5
        %v4632 = vmul.f32 %v4568, 0.5
        %v4633 = vmul.f32 %v4569, 0.5
        %v4634 = vmul.f32 %v4570, 0.5
        %v4635 = vmul.f32 %v4571, 0.5
        %v4636 = vmul.f32 %v4572, 0.5
        %v4637 = vmul.f32 %v4573, 0.5
        %v4638 = vmul.f32 %v4574, 0.5
        %v4639 = vmul.f32 %v4575, 0.5
        %v4640 = vmul.f32 %v4576, 0.5
        %v4641 = vmul.f32 %v4577, 0.5
        %v4642 = vmul.f32 %v4578, 0.5
        %v4643 = vmul.f32 %v4579, 0.5
        %v4644 = vmul.f32 %v4580, 0.5
        %v4645 = vmul.f32 %v4581, 0.5
        %v4646 = vmul.f32 %v4582, 0.5
        %v4647 = vmul.f32 %v4583, 0.5
        %v4648 = vmul.f32 %v4584, 0.5
        %v4649 = vmul.f32 %v4585, 0.5
        %v4650 = vmul.f32 %v4586, 0.5
        %v4651 = vmul.f32 %v4587, 0.5
        %v4652 = vmul.f32 %v4588, 0.5
        %v4653 = vmul.f32 %v4589, 0.5
        %v4654 = vmul.f32 %v4590, 0.5
        %v4655 = vmul.f32 %v4591, 0.5
        %v4656 = vmul.f32 %v4592, 0.5
        %v4657 = vmul.f32 %v4593, 0.5
        %v4658 = vmul.f32 %v4594, 0.5
        %v4659 = vmul.f32 %v4595, 0.5
        %v4660 = vmul.f32 %v4596, 0.5
        %v4661 = vmul.f32 %v4597, 0.5
        %v4662 = vmul.f32 %v4598, 0.5
        %v4663 = vmul.f32 %v4599, 0.5
        %v4664 = vmul.f32 %v4600, 0.5
        %v4665 = vmul.f32 %v4601, 0.5
        %v4666 = vmul.f32 %v4602, 0.5
        %v4667 = vmul.f32 %v4603, 0.5
        %v4668 = vmul.f32 %v4604, 0.5
        %v4669 = vmul.f32 %v4605, 0.5
        %v4670 = vmul.f32 %v4606, 0.5
        %v4671 = vmul.f32 %v4607, 0.5
        %v4672 = vmul.f32 %v4608, 0.5
        %v4673 = vmul.f32 %v4609, 0.5
        %v4674 = vmul.f32 %v4610, 0.5
        %v4675 = vmul.f32 %v4611, 0.5
        %v4676 = vmul.f32 %v4612, 0.5
        %v4677 = vmul.f32 %v4613, 0.5
        %v4678 = vmul.f32 %v4614, 0.5
        %v4679 = vmul.f32 %v4615, 0.5
        %v4680 = vmul.f32 %v4616, 0.5
        %v4681 = vmul.f32 %v4617, 0.5
        %v4682 = vmul.f32 %v4618, 0.5
        %v4683 = vmul.f32 %v4619, 0.5
        %v4684 = vmul.f32 %v4620, 0.5
        %v4685 = vmul.f32 %v4621, 0.5
        %v4686 = vmul.f32 %v4622, 0.5
        %v4687 = vmul.f32 %v4623, 0.5
        %v4688 = vmul.f32 %v4624, 0.5
        %v4689 = vmul.f32 %v4625, 0.5
        %v4690 = vmul.f32 %v4626, 0.5
        %v4691 = vmul.f32 %v3790, %v4627
        %v4692 = vmul.f32 %v3792, %v4628
        %v4693 = vmul.f32 %v3879, %v4629
        %v4694 = vmul.f32 %v3881, %v4630
        %v4695 = vmul.f32 %v3968, %v4631
        %v4696 = vmul.f32 %v3970, %v4632
        %v4697 = vmul.f32 %v4057, %v4633
        %v4698 = vmul.f32 %v4059, %v4634
        %v4699 = vmul.f32 %v4146, %v4635
        %v4700 = vmul.f32 %v4148, %v4636
        %v4701 = vmul.f32 %v4235, %v4637
        %v4702 = vmul.f32 %v4237, %v4638
        %v4703 = vmul.f32 %v4324, %v4639
        %v4704 = vmul.f32 %v4326, %v4640
        %v4705 = vmul.f32 %v4413, %v4641
        %v4706 = vmul.f32 %v4415, %v4642
        %v4707 = vmul.f32 %v3796, %v4643
        %v4708 = vmul.f32 %v3798, %v4644
        %v4709 = vmul.f32 %v3885, %v4645
        %v4710 = vmul.f32 %v3887, %v4646
        %v4711 = vmul.f32 %v3974, %v4647
        %v4712 = vmul.f32 %v3976, %v4648
        %v4713 = vmul.f32 %v4063, %v4649
        %v4714 = vmul.f32 %v4065, %v4650
        %v4715 = vmul.f32 %v4152, %v4651
        %v4716 = vmul.f32 %v4154, %v4652
        %v4717 = vmul.f32 %v4241, %v4653
        %v4718 = vmul.f32 %v4243, %v4654
        %v4719 = vmul.f32 %v4330, %v4655
        %v4720 = vmul.f32 %v4332, %v4656
        %v4721 = vmul.f32 %v4419, %v4657
        %v4722 = vmul.f32 %v4421, %v4658
        %v4723 = vmul.f32 %v3802, %v4659
        %v4724 = vmul.f32 %v3804, %v4660
        %v4725 = vmul.f32 %v3891, %v4661
        %v4726 = vmul.f32 %v3893, %v4662
        %v4727 = vmul.f32 %v3980, %v4663
        %v4728 = vmul.f32 %v3982, %v4664
        %v4729 = vmul.f32 %v4069, %v4665
        %v4730 = vmul.f32 %v4071, %v4666
        %v4731 = vmul.f32 %v4158, %v4667
        %v4732 = vmul.f32 %v4160, %v4668
        %v4733 = vmul.f32 %v4247, %v4669
        %v4734 = vmul.f32 %v4249, %v4670
        %v4735 = vmul.f32 %v4336, %v4671
        %v4736 = vmul.f32 %v4338, %v4672
        %v4737 = vmul.f32 %v4425, %v4673
        %v4738 = vmul.f32 %v4427, %v4674
        %v4739 = vmul.f32 %v3808, %v4675
        %v4740 = vmul.f32 %v3810, %v4676
        %v4741 = vmul.f32 %v3897, %v4677
        %v4742 = vmul.f32 %v3899, %v4678
        %v4743 = vmul.f32 %v3986, %v4679
        %v4744 = vmul.f32 %v3988, %v4680
        %v4745 = vmul.f32 %v4075, %v4681
        %v4746 = vmul.f32 %v4077, %v4682
        %v4747 = vmul.f32 %v4164, %v4683
        %v4748 = vmul.f32 %v4166, %v4684
        %v4749 = vmul.f32 %v4253, %v4685
        %v4750 = vmul.f32 %v4255, %v4686
        %v4751 = vmul.f32 %v4342, %v4687
        %v4752 = vmul.f32 %v4344, %v4688
        %v4753 = vmul.f32 %v4431, %v4689
        %v4754 = vmul.f32 %v4433, %v4690
        %v4755 = vld [vmem:[%s5] sm:$0x7]
        %v4756 = vld [vmem:[%s6] sm:$0x7]
        %4758 = vset.pattern.permute.xlu0 0
        %4759 = vperm.xlu0 %4758, %v4756
        %v4760 = vpop.permute.xlu0 %4759
        %v4763 = vsel %vm3710, %v4755, 0
        %4765 = vmatprep.subr.mxu0 %v4692
        %4766 = vmatpush1.msra.mxu0 %v4691
        %4767 = vmatprep.subr.mxu0 %v4708
        %4768 = vmatpush1.msra.mxu0 %v4707
        %4769 = vmatprep.subr.mxu0 %v4724
        %4770 = vmatpush1.msra.mxu0 %v4723
        %4771 = vmatprep.subr.mxu0 %v4740
        %4772 = vmatpush1.msra.mxu0 %v4739
        %4773 = vmatprep.subr.mxu0 0.0
        %4774 = vmatpush1.msra.mxu0 0.0
        %4775 = vmatprep.subr.mxu0 0.0
        %4776 = vmatpush1.msra.mxu0 0.0
        %4777 = vmatprep.subr.mxu0 0.0
        %4778 = vmatpush1.msra.mxu0 0.0
        %4779 = vmatprep.subr.mxu0 0.0
        %4780 = vmatpush1.msra.mxu0 0.0
        %4781 = vmatprep.subr.mxu0 0.0
        %4782 = vmatpush1.msra.mxu0 0.0
        %4783 = vmatprep.subr.mxu0 0.0
        %4784 = vmatpush1.msra.mxu0 0.0
        %4785 = vmatprep.subr.mxu0 0.0
        %4786 = vmatpush1.msra.mxu0 0.0
        %4787 = vmatprep.subr.mxu0 0.0
        %4788 = vmatpush1.msra.mxu0 0.0
        %4789 = vmatprep.subr.mxu0 0.0
        %4790 = vmatpush1.msra.mxu0 0.0
        %4791 = vmatprep.subr.mxu0 0.0
        %4792 = vmatpush1.msra.mxu0 0.0
        %4793 = vmatprep.subr.mxu0 0.0
        %4794 = vmatpush1.msra.mxu0 0.0
        %4795 = vmatprep.subr.mxu0 0.0
        %4796 = vmatpush1.msra.mxu0 0.0
        %4797 = vmatprep.subr.mxu0 0.0
        %4798 = vmatpush1.msra.mxu0 0.0
        %4799 = vmatprep.subr.mxu0 0.0
        %4800 = vmatpush1.msra.mxu0 0.0
        %4801 = vmatprep.subr.mxu0 0.0
        %4802 = vmatpush1.msra.mxu0 0.0
        %4803 = vmatprep.subr.mxu0 0.0
        %4804 = vmatpush1.msra.mxu0 0.0
        %4805 = vmatprep.subr.mxu0 0.0
        %4806 = vmatpush1.msra.mxu0 0.0
        %4807 = vmatprep.subr.mxu0 0.0
        %4808 = vmatpush1.msra.mxu0 0.0
        %4809 = vmatprep.subr.mxu0 0.0
        %4810 = vmatpush1.msra.mxu0 0.0
        %4811 = vmatprep.subr.mxu0 0.0
        %4812 = vmatpush1.msra.mxu0 0.0
        %4813 = vmatprep.subr.mxu0 0.0
        %4814 = vmatpush1.msra.mxu0 0.0
        %4815 = vmatprep.subr.mxu0 0.0
        %4816 = vmatpush1.msra.mxu0 0.0
        %4817 = vmatprep.subr.mxu0 0.0
        %4818 = vmatpush1.msra.mxu0 0.0
        %4819 = vmatprep.subr.mxu0 0.0
        %4820 = vmatpush1.msra.mxu0 0.0
        %4821 = vmatprep.subr.mxu0 0.0
        %4822 = vmatpush1.msra.mxu0 0.0
        %4823 = vmatprep.subr.mxu0 0.0
        %4824 = vmatpush1.msra.mxu0 0.0
        %4825 = vmatprep.subr.mxu0 0.0
        %4826 = vmatpush1.msra.mxu0 0.0
        %4827 = vmatprep.subr.mxu0 0.0
        %4828 = vmatpush1.msra.mxu0 0.0
        %4829 = vmatprep.mubr.f32.mxu0 0.0
        %4830 = vmatmul.mubr.f32.gmra.mrb[0].mxu0 %v4763
        %v4831 = vpop.f32.mrb[0].mxu0
        %v4832 = vadd.f32 %v4760, %v4831
        %v4833 = vpop.f32.mrb[0].mxu0
        %v4834 = vadd.f32 %v4760, %v4833
        %4835 = vdwg.mxu0
        %4836 = vmatprep.subr.mxu0 %v4694
        %4837 = vmatpush1.msra.mxu0 %v4693
        %4838 = vmatprep.subr.mxu0 %v4710
        %4839 = vmatpush1.msra.mxu0 %v4709
        %4840 = vmatprep.subr.mxu0 %v4726
        %4841 = vmatpush1.msra.mxu0 %v4725
        %4842 = vmatprep.subr.mxu0 %v4742
        %4843 = vmatpush1.msra.mxu0 %v4741
        %4844 = vmatprep.subr.mxu0 0.0
        %4845 = vmatpush1.msra.mxu0 0.0
        %4846 = vmatprep.subr.mxu0 0.0
        %4847 = vmatpush1.msra.mxu0 0.0
        %4848 = vmatprep.subr.mxu0 0.0
        %4849 = vmatpush1.msra.mxu0 0.0
        %4850 = vmatprep.subr.mxu0 0.0
        %4851 = vmatpush1.msra.mxu0 0.0
        %4852 = vmatprep.subr.mxu0 0.0
        %4853 = vmatpush1.msra.mxu0 0.0
        %4854 = vmatprep.subr.mxu0 0.0
        %4855 = vmatpush1.msra.mxu0 0.0
        %4856 = vmatprep.subr.mxu0 0.0
        %4857 = vmatpush1.msra.mxu0 0.0
        %4858 = vmatprep.subr.mxu0 0.0
        %4859 = vmatpush1.msra.mxu0 0.0
        %4860 = vmatprep.subr.mxu0 0.0
        %4861 = vmatpush1.msra.mxu0 0.0
        %4862 = vmatprep.subr.mxu0 0.0
        %4863 = vmatpush1.msra.mxu0 0.0
        %4864 = vmatprep.subr.mxu0 0.0
        %4865 = vmatpush1.msra.mxu0 0.0
        %4866 = vmatprep.subr.mxu0 0.0
        %4867 = vmatpush1.msra.mxu0 0.0
        %4868 = vmatprep.subr.mxu0 0.0
        %4869 = vmatpush1.msra.mxu0 0.0
        %4870 = vmatprep.subr.mxu0 0.0
        %4871 = vmatpush1.msra.mxu0 0.0
        %4872 = vmatprep.subr.mxu0 0.0
        %4873 = vmatpush1.msra.mxu0 0.0
        %4874 = vmatprep.subr.mxu0 0.0
        %4875 = vmatpush1.msra.mxu0 0.0
        %4876 = vmatprep.subr.mxu0 0.0
        %4877 = vmatpush1.msra.mxu0 0.0
        %4878 = vmatprep.subr.mxu0 0.0
        %4879 = vmatpush1.msra.mxu0 0.0
        %4880 = vmatprep.subr.mxu0 0.0
        %4881 = vmatpush1.msra.mxu0 0.0
        %4882 = vmatprep.subr.mxu0 0.0
        %4883 = vmatpush1.msra.mxu0 0.0
        %4884 = vmatprep.subr.mxu0 0.0
        %4885 = vmatpush1.msra.mxu0 0.0
        %4886 = vmatprep.subr.mxu0 0.0
        %4887 = vmatpush1.msra.mxu0 0.0
        %4888 = vmatprep.subr.mxu0 0.0
        %4889 = vmatpush1.msra.mxu0 0.0
        %4890 = vmatprep.subr.mxu0 0.0
        %4891 = vmatpush1.msra.mxu0 0.0
        %4892 = vmatprep.subr.mxu0 0.0
        %4893 = vmatpush1.msra.mxu0 0.0
        %4894 = vmatprep.subr.mxu0 0.0
        %4895 = vmatpush1.msra.mxu0 0.0
        %4896 = vmatprep.subr.mxu0 0.0
        %4897 = vmatpush1.msra.mxu0 0.0
        %4898 = vmatprep.subr.mxu0 0.0
        %4899 = vmatpush1.msra.mxu0 0.0
        %4900 = vmatprep.mubr.f32.mxu0 0.0
        %4901 = vmatmul.mubr.f32.gmra.mrb[0].mxu0 %v4763
        %v4902 = vpop.f32.mrb[0].mxu0
        %v4903 = vadd.f32 %v4760, %v4902
        %v4904 = vpop.f32.mrb[0].mxu0
        %v4905 = vadd.f32 %v4760, %v4904
        %4906 = vdwg.mxu0
        %4907 = vmatprep.subr.mxu0 %v4696
        %4908 = vmatpush1.msra.mxu0 %v4695
        %4909 = vmatprep.subr.mxu0 %v4712
        %4910 = vmatpush1.msra.mxu0 %v4711
        %4911 = vmatprep.subr.mxu0 %v4728
        %4912 = vmatpush1.msra.mxu0 %v4727
        %4913 = vmatprep.subr.mxu0 %v4744
        %4914 = vmatpush1.msra.mxu0 %v4743
        %4915 = vmatprep.subr.mxu0 0.0
        %4916 = vmatpush1.msra.mxu0 0.0
        %4917 = vmatprep.subr.mxu0 0.0
        %4918 = vmatpush1.msra.mxu0 0.0
        %4919 = vmatprep.subr.mxu0 0.0
        %4920 = vmatpush1.msra.mxu0 0.0
        %4921 = vmatprep.subr.mxu0 0.0
        %4922 = vmatpush1.msra.mxu0 0.0
        %4923 = vmatprep.subr.mxu0 0.0
        %4924 = vmatpush1.msra.mxu0 0.0
        %4925 = vmatprep.subr.mxu0 0.0
        %4926 = vmatpush1.msra.mxu0 0.0
        %4927 = vmatprep.subr.mxu0 0.0
        %4928 = vmatpush1.msra.mxu0 0.0
        %4929 = vmatprep.subr.mxu0 0.0
        %4930 = vmatpush1.msra.mxu0 0.0
        %4931 = vmatprep.subr.mxu0 0.0
        %4932 = vmatpush1.msra.mxu0 0.0
        %4933 = vmatprep.subr.mxu0 0.0
        %4934 = vmatpush1.msra.mxu0 0.0
        %4935 = vmatprep.subr.mxu0 0.0
        %4936 = vmatpush1.msra.mxu0 0.0
        %4937 = vmatprep.subr.mxu0 0.0
        %4938 = vmatpush1.msra.mxu0 0.0
        %4939 = vmatprep.subr.mxu0 0.0
        %4940 = vmatpush1.msra.mxu0 0.0
        %4941 = vmatprep.subr.mxu0 0.0
        %4942 = vmatpush1.msra.mxu0 0.0
        %4943 = vmatprep.subr.mxu0 0.0
        %4944 = vmatpush1.msra.mxu0 0.0
        %4945 = vmatprep.subr.mxu0 0.0
        %4946 = vmatpush1.msra.mxu0 0.0
        %4947 = vmatprep.subr.mxu0 0.0
        %4948 = vmatpush1.msra.mxu0 0.0
        %4949 = vmatprep.subr.mxu0 0.0
        %4950 = vmatpush1.msra.mxu0 0.0
        %4951 = vmatprep.subr.mxu0 0.0
        %4952 = vmatpush1.msra.mxu0 0.0
        %4953 = vmatprep.subr.mxu0 0.0
        %4954 = vmatpush1.msra.mxu0 0.0
        %4955 = vmatprep.subr.mxu0 0.0
        %4956 = vmatpush1.msra.mxu0 0.0
        %4957 = vmatprep.subr.mxu0 0.0
        %4958 = vmatpush1.msra.mxu0 0.0
        %4959 = vmatprep.subr.mxu0 0.0
        %4960 = vmatpush1.msra.mxu0 0.0
        %4961 = vmatprep.subr.mxu0 0.0
        %4962 = vmatpush1.msra.mxu0 0.0
        %4963 = vmatprep.subr.mxu0 0.0
        %4964 = vmatpush1.msra.mxu0 0.0
        %4965 = vmatprep.subr.mxu0 0.0
        %4966 = vmatpush1.msra.mxu0 0.0
        %4967 = vmatprep.subr.mxu0 0.0
        %4968 = vmatpush1.msra.mxu0 0.0
        %4969 = vmatprep.subr.mxu0 0.0
        %4970 = vmatpush1.msra.mxu0 0.0
        %4971 = vmatprep.mubr.f32.mxu0 0.0
        %4972 = vmatmul.mubr.f32.gmra.mrb[0].mxu0 %v4763
        %v4973 = vpop.f32.mrb[0].mxu0
        %v4974 = vadd.f32 %v4760, %v4973
        %v4975 = vpop.f32.mrb[0].mxu0
        %v4976 = vadd.f32 %v4760, %v4975
        %4977 = vdwg.mxu0
        %4978 = vmatprep.subr.mxu0 %v4698
        %4979 = vmatpush1.msra.mxu0 %v4697
        %4980 = vmatprep.subr.mxu0 %v4714
        %4981 = vmatpush1.msra.mxu0 %v4713
        %4982 = vmatprep.subr.mxu0 %v4730
        %4983 = vmatpush1.msra.mxu0 %v4729
        %4984 = vmatprep.subr.mxu0 %v4746
        %4985 = vmatpush1.msra.mxu0 %v4745
        %4986 = vmatprep.subr.mxu0 0.0
        %4987 = vmatpush1.msra.mxu0 0.0
        %4988 = vmatprep.subr.mxu0 0.0
        %4989 = vmatpush1.msra.mxu0 0.0
        %4990 = vmatprep.subr.mxu0 0.0
        %4991 = vmatpush1.msra.mxu0 0.0
        %4992 = vmatprep.subr.mxu0 0.0
        %4993 = vmatpush1.msra.mxu0 0.0
        %4994 = vmatprep.subr.mxu0 0.0
        %4995 = vmatpush1.msra.mxu0 0.0
        %4996 = vmatprep.subr.mxu0 0.0
        %4997 = vmatpush1.msra.mxu0 0.0
        %4998 = vmatprep.subr.mxu0 0.0
        %4999 = vmatpush1.msra.mxu0 0.0
        %5000 = vmatprep.subr.mxu0 0.0
        %5001 = vmatpush1.msra.mxu0 0.0
        %5002 = vmatprep.subr.mxu0 0.0
        %5003 = vmatpush1.msra.mxu0 0.0
        %5004 = vmatprep.subr.mxu0 0.0
        %5005 = vmatpush1.msra.mxu0 0.0
        %5006 = vmatprep.subr.mxu0 0.0
        %5007 = vmatpush1.msra.mxu0 0.0
        %5008 = vmatprep.subr.mxu0 0.0
        %5009 = vmatpush1.msra.mxu0 0.0
        %5010 = vmatprep.subr.mxu0 0.0
        %5011 = vmatpush1.msra.mxu0 0.0
        %5012 = vmatprep.subr.mxu0 0.0
        %5013 = vmatpush1.msra.mxu0 0.0
        %5014 = vmatprep.subr.mxu0 0.0
        %5015 = vmatpush1.msra.mxu0 0.0
        %5016 = vmatprep.subr.mxu0 0.0
        %5017 = vmatpush1.msra.mxu0 0.0
        %5018 = vmatprep.subr.mxu0 0.0
        %5019 = vmatpush1.msra.mxu0 0.0
        %5020 = vmatprep.subr.mxu0 0.0
        %5021 = vmatpush1.msra.mxu0 0.0
        %5022 = vmatprep.subr.mxu0 0.0
        %5023 = vmatpush1.msra.mxu0 0.0
        %5024 = vmatprep.subr.mxu0 0.0
        %5025 = vmatpush1.msra.mxu0 0.0
        %5026 = vmatprep.subr.mxu0 0.0
        %5027 = vmatpush1.msra.mxu0 0.0
        %5028 = vmatprep.subr.mxu0 0.0
        %5029 = vmatpush1.msra.mxu0 0.0
        %5030 = vmatprep.subr.mxu0 0.0
        %5031 = vmatpush1.msra.mxu0 0.0
        %5032 = vmatprep.subr.mxu0 0.0
        %5033 = vmatpush1.msra.mxu0 0.0
        %5034 = vmatprep.subr.mxu0 0.0
        %5035 = vmatpush1.msra.mxu0 0.0
        %5036 = vmatprep.subr.mxu0 0.0
        %5037 = vmatpush1.msra.mxu0 0.0
        %5038 = vmatprep.subr.mxu0 0.0
        %5039 = vmatpush1.msra.mxu0 0.0
        %5040 = vmatprep.subr.mxu0 0.0
        %5041 = vmatpush1.msra.mxu0 0.0
        %5042 = vmatprep.mubr.f32.mxu0 0.0
        %5043 = vmatmul.mubr.f32.gmra.mrb[0].mxu0 %v4763
        %v5044 = vpop.f32.mrb[0].mxu0
        %v5045 = vadd.f32 %v4760, %v5044
        %v5046 = vpop.f32.mrb[0].mxu0
        %v5047 = vadd.f32 %v4760, %v5046
        %5048 = vdwg.mxu0
        %5049 = vmatprep.subr.mxu0 %v4700
        %5050 = vmatpush1.msra.mxu0 %v4699
        %5051 = vmatprep.subr.mxu0 %v4716
        %5052 = vmatpush1.msra.mxu0 %v4715
        %5053 = vmatprep.subr.mxu0 %v4732
        %5054 = vmatpush1.msra.mxu0 %v4731
        %5055 = vmatprep.subr.mxu0 %v4748
        %5056 = vmatpush1.msra.mxu0 %v4747
        %5057 = vmatprep.subr.mxu0 0.0
        %5058 = vmatpush1.msra.mxu0 0.0
        %5059 = vmatprep.subr.mxu0 0.0
        %5060 = vmatpush1.msra.mxu0 0.0
        %5061 = vmatprep.subr.mxu0 0.0
        %5062 = vmatpush1.msra.mxu0 0.0
        %5063 = vmatprep.subr.mxu0 0.0
        %5064 = vmatpush1.msra.mxu0 0.0
        %5065 = vmatprep.subr.mxu0 0.0
        %5066 = vmatpush1.msra.mxu0 0.0
        %5067 = vmatprep.subr.mxu0 0.0
        %5068 = vmatpush1.msra.mxu0 0.0
        %5069 = vmatprep.subr.mxu0 0.0
        %5070 = vmatpush1.msra.mxu0 0.0
        %5071 = vmatprep.subr.mxu0 0.0
        %5072 = vmatpush1.msra.mxu0 0.0
        %5073 = vmatprep.subr.mxu0 0.0
        %5074 = vmatpush1.msra.mxu0 0.0
        %5075 = vmatprep.subr.mxu0 0.0
        %5076 = vmatpush1.msra.mxu0 0.0
        %5077 = vmatprep.subr.mxu0 0.0
        %5078 = vmatpush1.msra.mxu0 0.0
        %5079 = vmatprep.subr.mxu0 0.0
        %5080 = vmatpush1.msra.mxu0 0.0
        %5081 = vmatprep.subr.mxu0 0.0
        %5082 = vmatpush1.msra.mxu0 0.0
        %5083 = vmatprep.subr.mxu0 0.0
        %5084 = vmatpush1.msra.mxu0 0.0
        %5085 = vmatprep.subr.mxu0 0.0
        %5086 = vmatpush1.msra.mxu0 0.0
        %5087 = vmatprep.subr.mxu0 0.0
        %5088 = vmatpush1.msra.mxu0 0.0
        %5089 = vmatprep.subr.mxu0 0.0
        %5090 = vmatpush1.msra.mxu0 0.0
        %5091 = vmatprep.subr.mxu0 0.0
        %5092 = vmatpush1.msra.mxu0 0.0
        %5093 = vmatprep.subr.mxu0 0.0
        %5094 = vmatpush1.msra.mxu0 0.0
        %5095 = vmatprep.subr.mxu0 0.0
        %5096 = vmatpush1.msra.mxu0 0.0
        %5097 = vmatprep.subr.mxu0 0.0
        %5098 = vmatpush1.msra.mxu0 0.0
        %5099 = vmatprep.subr.mxu0 0.0
        %5100 = vmatpush1.msra.mxu0 0.0
        %5101 = vmatprep.subr.mxu0 0.0
        %5102 = vmatpush1.msra.mxu0 0.0
        %5103 = vmatprep.subr.mxu0 0.0
        %5104 = vmatpush1.msra.mxu0 0.0
        %5105 = vmatprep.subr.mxu0 0.0
        %5106 = vmatpush1.msra.mxu0 0.0
        %5107 = vmatprep.subr.mxu0 0.0
        %5108 = vmatpush1.msra.mxu0 0.0
        %5109 = vmatprep.subr.mxu0 0.0
        %5110 = vmatpush1.msra.mxu0 0.0
        %5111 = vmatprep.subr.mxu0 0.0
        %5112 = vmatpush1.msra.mxu0 0.0
        %5113 = vmatprep.mubr.f32.mxu0 0.0
        %5114 = vmatmul.mubr.f32.gmra.mrb[0].mxu0 %v4763
        %v5115 = vpop.f32.mrb[0].mxu0
        %v5116 = vadd.f32 %v4760, %v5115
        %v5117 = vpop.f32.mrb[0].mxu0
        %v5118 = vadd.f32 %v4760, %v5117
        %5119 = vdwg.mxu0
        %5120 = vmatprep.subr.mxu0 %v4702
        %5121 = vmatpush1.msra.mxu0 %v4701
        %5122 = vmatprep.subr.mxu0 %v4718
        %5123 = vmatpush1.msra.mxu0 %v4717
        %5124 = vmatprep.subr.mxu0 %v4734
        %5125 = vmatpush1.msra.mxu0 %v4733
        %5126 = vmatprep.subr.mxu0 %v4750
        %5127 = vmatpush1.msra.mxu0 %v4749
        %5128 = vmatprep.subr.mxu0 0.0
        %5129 = vmatpush1.msra.mxu0 0.0
        %5130 = vmatprep.subr.mxu0 0.0
        %5131 = vmatpush1.msra.mxu0 0.0
        %5132 = vmatprep.subr.mxu0 0.0
        %5133 = vmatpush1.msra.mxu0 0.0
        %5134 = vmatprep.subr.mxu0 0.0
        %5135 = vmatpush1.msra.mxu0 0.0
        %5136 = vmatprep.subr.mxu0 0.0
        %5137 = vmatpush1.msra.mxu0 0.0
        %5138 = vmatprep.subr.mxu0 0.0
        %5139 = vmatpush1.msra.mxu0 0.0
        %5140 = vmatprep.subr.mxu0 0.0
        %5141 = vmatpush1.msra.mxu0 0.0
        %5142 = vmatprep.subr.mxu0 0.0
        %5143 = vmatpush1.msra.mxu0 0.0
        %5144 = vmatprep.subr.mxu0 0.0
        %5145 = vmatpush1.msra.mxu0 0.0
        %5146 = vmatprep.subr.mxu0 0.0
        %5147 = vmatpush1.msra.mxu0 0.0
        %5148 = vmatprep.subr.mxu0 0.0
        %5149 = vmatpush1.msra.mxu0 0.0
        %5150 = vmatprep.subr.mxu0 0.0
        %5151 = vmatpush1.msra.mxu0 0.0
        %5152 = vmatprep.subr.mxu0 0.0
        %5153 = vmatpush1.msra.mxu0 0.0
        %5154 = vmatprep.subr.mxu0 0.0
        %5155 = vmatpush1.msra.mxu0 0.0
        %5156 = vmatprep.subr.mxu0 0.0
        %5157 = vmatpush1.msra.mxu0 0.0
        %5158 = vmatprep.subr.mxu0 0.0
        %5159 = vmatpush1.msra.mxu0 0.0
        %5160 = vmatprep.subr.mxu0 0.0
        %5161 = vmatpush1.msra.mxu0 0.0
        %5162 = vmatprep.subr.mxu0 0.0
        %5163 = vmatpush1.msra.mxu0 0.0
        %5164 = vmatprep.subr.mxu0 0.0
        %5165 = vmatpush1.msra.mxu0 0.0
        %5166 = vmatprep.subr.mxu0 0.0
        %5167 = vmatpush1.msra.mxu0 0.0
        %5168 = vmatprep.subr.mxu0 0.0
        %5169 = vmatpush1.msra.mxu0 0.0
        %5170 = vmatprep.subr.mxu0 0.0
        %5171 = vmatpush1.msra.mxu0 0.0
        %5172 = vmatprep.subr.mxu0 0.0
        %5173 = vmatpush1.msra.mxu0 0.0
        %5174 = vmatprep.subr.mxu0 0.0
        %5175 = vmatpush1.msra.mxu0 0.0
        %5176 = vmatprep.subr.mxu0 0.0
        %5177 = vmatpush1.msra.mxu0 0.0
        %5178 = vmatprep.subr.mxu0 0.0
        %5179 = vmatpush1.msra.mxu0 0.0
        %5180 = vmatprep.subr.mxu0 0.0
        %5181 = vmatpush1.msra.mxu0 0.0
        %5182 = vmatprep.subr.mxu0 0.0
        %5183 = vmatpush1.msra.mxu0 0.0
        %5184 = vmatprep.mubr.f32.mxu0 0.0
        %5185 = vmatmul.mubr.f32.gmra.mrb[0].mxu0 %v4763
        %v5186 = vpop.f32.mrb[0].mxu0
        %v5187 = vadd.f32 %v4760, %v5186
        %v5188 = vpop.f32.mrb[0].mxu0
        %v5189 = vadd.f32 %v4760, %v5188
        %5190 = vdwg.mxu0
        %5191 = vmatprep.subr.mxu0 %v4704
        %5192 = vmatpush1.msra.mxu0 %v4703
        %5193 = vmatprep.subr.mxu0 %v4720
        %5194 = vmatpush1.msra.mxu0 %v4719
        %5195 = vmatprep.subr.mxu0 %v4736
        %5196 = vmatpush1.msra.mxu0 %v4735
        %5197 = vmatprep.subr.mxu0 %v4752
        %5198 = vmatpush1.msra.mxu0 %v4751
        %5199 = vmatprep.subr.mxu0 0.0
        %5200 = vmatpush1.msra.mxu0 0.0
        %5201 = vmatprep.subr.mxu0 0.0
        %5202 = vmatpush1.msra.mxu0 0.0
        %5203 = vmatprep.subr.mxu0 0.0
        %5204 = vmatpush1.msra.mxu0 0.0
        %5205 = vmatprep.subr.mxu0 0.0
        %5206 = vmatpush1.msra.mxu0 0.0
        %5207 = vmatprep.subr.mxu0 0.0
        %5208 = vmatpush1.msra.mxu0 0.0
        %5209 = vmatprep.subr.mxu0 0.0
        %5210 = vmatpush1.msra.mxu0 0.0
        %5211 = vmatprep.subr.mxu0 0.0
        %5212 = vmatpush1.msra.mxu0 0.0
        %5213 = vmatprep.subr.mxu0 0.0
        %5214 = vmatpush1.msra.mxu0 0.0
        %5215 = vmatprep.subr.mxu0 0.0
        %5216 = vmatpush1.msra.mxu0 0.0
        %5217 = vmatprep.subr.mxu0 0.0
        %5218 = vmatpush1.msra.mxu0 0.0
        %5219 = vmatprep.subr.mxu0 0.0
        %5220 = vmatpush1.msra.mxu0 0.0
        %5221 = vmatprep.subr.mxu0 0.0
        %5222 = vmatpush1.msra.mxu0 0.0
        %5223 = vmatprep.subr.mxu0 0.0
        %5224 = vmatpush1.msra.mxu0 0.0
        %5225 = vmatprep.subr.mxu0 0.0
        %5226 = vmatpush1.msra.mxu0 0.0
        %5227 = vmatprep.subr.mxu0 0.0
        %5228 = vmatpush1.msra.mxu0 0.0
        %5229 = vmatprep.subr.mxu0 0.0
        %5230 = vmatpush1.msra.mxu0 0.0
        %5231 = vmatprep.subr.mxu0 0.0
        %5232 = vmatpush1.msra.mxu0 0.0
        %5233 = vmatprep.subr.mxu0 0.0
        %5234 = vmatpush1.msra.mxu0 0.0
        %5235 = vmatprep.subr.mxu0 0.0
        %5236 = vmatpush1.msra.mxu0 0.0
        %5237 = vmatprep.subr.mxu0 0.0
        %5238 = vmatpush1.msra.mxu0 0.0
        %5239 = vmatprep.subr.mxu0 0.0
        %5240 = vmatpush1.msra.mxu0 0.0
        %5241 = vmatprep.subr.mxu0 0.0
        %5242 = vmatpush1.msra.mxu0 0.0
        %5243 = vmatprep.subr.mxu0 0.0
        %5244 = vmatpush1.msra.mxu0 0.0
        %5245 = vmatprep.subr.mxu0 0.0
        %5246 = vmatpush1.msra.mxu0 0.0
        %5247 = vmatprep.subr.mxu0 0.0
        %5248 = vmatpush1.msra.mxu0 0.0
        %5249 = vmatprep.subr.mxu0 0.0
        %5250 = vmatpush1.msra.mxu0 0.0
        %5251 = vmatprep.subr.mxu0 0.0
        %5252 = vmatpush1.msra.mxu0 0.0
        %5253 = vmatprep.subr.mxu0 0.0
        %5254 = vmatpush1.msra.mxu0 0.0
        %5255 = vmatprep.mubr.f32.mxu0 0.0
        %5256 = vmatmul.mubr.f32.gmra.mrb[0].mxu0 %v4763
        %v5257 = vpop.f32.mrb[0].mxu0
        %v5258 = vadd.f32 %v4760, %v5257
        %v5259 = vpop.f32.mrb[0].mxu0
        %v5260 = vadd.f32 %v4760, %v5259
        %5261 = vdwg.mxu0
        %5262 = vmatprep.subr.mxu0 %v4706
        %5263 = vmatpush1.msra.mxu0 %v4705
        %5264 = vmatprep.subr.mxu0 %v4722
        %5265 = vmatpush1.msra.mxu0 %v4721
        %5266 = vmatprep.subr.mxu0 %v4738
        %5267 = vmatpush1.msra.mxu0 %v4737
        %5268 = vmatprep.subr.mxu0 %v4754
        %5269 = vmatpush1.msra.mxu0 %v4753
        %5270 = vmatprep.subr.mxu0 0.0
        %5271 = vmatpush1.msra.mxu0 0.0
        %5272 = vmatprep.subr.mxu0 0.0
        %5273 = vmatpush1.msra.mxu0 0.0
        %5274 = vmatprep.subr.mxu0 0.0
        %5275 = vmatpush1.msra.mxu0 0.0
        %5276 = vmatprep.subr.mxu0 0.0
        %5277 = vmatpush1.msra.mxu0 0.0
        %5278 = vmatprep.subr.mxu0 0.0
        %5279 = vmatpush1.msra.mxu0 0.0
        %5280 = vmatprep.subr.mxu0 0.0
        %5281 = vmatpush1.msra.mxu0 0.0
        %5282 = vmatprep.subr.mxu0 0.0
        %5283 = vmatpush1.msra.mxu0 0.0
        %5284 = vmatprep.subr.mxu0 0.0
        %5285 = vmatpush1.msra.mxu0 0.0
        %5286 = vmatprep.subr.mxu0 0.0
        %5287 = vmatpush1.msra.mxu0 0.0
        %5288 = vmatprep.subr.mxu0 0.0
        %5289 = vmatpush1.msra.mxu0 0.0
        %5290 = vmatprep.subr.mxu0 0.0
        %5291 = vmatpush1.msra.mxu0 0.0
        %5292 = vmatprep.subr.mxu0 0.0
        %5293 = vmatpush1.msra.mxu0 0.0
        %5294 = vmatprep.subr.mxu0 0.0
        %5295 = vmatpush1.msra.mxu0 0.0
        %5296 = vmatprep.subr.mxu0 0.0
        %5297 = vmatpush1.msra.mxu0 0.0
        %5298 = vmatprep.subr.mxu0 0.0
        %5299 = vmatpush1.msra.mxu0 0.0
        %5300 = vmatprep.subr.mxu0 0.0
        %5301 = vmatpush1.msra.mxu0 0.0
        %5302 = vmatprep.subr.mxu0 0.0
        %5303 = vmatpush1.msra.mxu0 0.0
        %5304 = vmatprep.subr.mxu0 0.0
        %5305 = vmatpush1.msra.mxu0 0.0
        %5306 = vmatprep.subr.mxu0 0.0
        %5307 = vmatpush1.msra.mxu0 0.0
        %5308 = vmatprep.subr.mxu0 0.0
        %5309 = vmatpush1.msra.mxu0 0.0
        %5310 = vmatprep.subr.mxu0 0.0
        %5311 = vmatpush1.msra.mxu0 0.0
        %5312 = vmatprep.subr.mxu0 0.0
        %5313 = vmatpush1.msra.mxu0 0.0
        %5314 = vmatprep.subr.mxu0 0.0
        %5315 = vmatpush1.msra.mxu0 0.0
        %5316 = vmatprep.subr.mxu0 0.0
        %5317 = vmatpush1.msra.mxu0 0.0
        %5318 = vmatprep.subr.mxu0 0.0
        %5319 = vmatpush1.msra.mxu0 0.0
        %5320 = vmatprep.subr.mxu0 0.0
        %5321 = vmatpush1.msra.mxu0 0.0
        %5322 = vmatprep.subr.mxu0 0.0
        %5323 = vmatpush1.msra.mxu0 0.0
        %5324 = vmatprep.subr.mxu0 0.0
        %5325 = vmatpush1.msra.mxu0 0.0
        %5326 = vmatprep.mubr.f32.mxu0 0.0
        %5327 = vmatmul.mubr.f32.gmra.mrb[0].mxu0 %v4763
        %v5328 = vpop.f32.mrb[0].mxu0
        %v5329 = vadd.f32 %v4760, %v5328
        %v5330 = vpop.f32.mrb[0].mxu0
        %v5331 = vadd.f32 %v4760, %v5330
        %5332 = vdwg.mxu0
        %v5333 = vmul.f32 %v4832, 1.442695
        %v5334 = vpow.pop %v5333
        %v5335 = vmul.f32 %v4834, 1.442695
        %v5336 = vpow.pop %v5335
        %v5337 = vmul.f32 %v4903, 1.442695
        %v5338 = vpow.pop %v5337
        %v5339 = vmul.f32 %v4905, 1.442695
        %v5340 = vpow.pop %v5339
        %v5341 = vmul.f32 %v4974, 1.442695
        %v5342 = vpow.pop %v5341
        %v5343 = vmul.f32 %v4976, 1.442695
        %v5344 = vpow.pop %v5343
        %v5345 = vmul.f32 %v5045, 1.442695
        %v5346 = vpow.pop %v5345
        %v5347 = vmul.f32 %v5047, 1.442695
        %v5348 = vpow.pop %v5347
        %v5349 = vmul.f32 %v5116, 1.442695
        %v5350 = vpow.pop %v5349
        %v5351 = vmul.f32 %v5118, 1.442695
        %v5352 = vpow.pop %v5351
        %v5353 = vmul.f32 %v5187, 1.442695
        %v5354 = vpow.pop %v5353
        %v5355 = vmul.f32 %v5189, 1.442695
        %v5356 = vpow.pop %v5355
        %v5357 = vmul.f32 %v5258, 1.442695
        %v5358 = vpow.pop %v5357
        %v5359 = vmul.f32 %v5260, 1.442695
        %v5360 = vpow.pop %v5359
        %v5361 = vmul.f32 %v5329, 1.442695
        %v5362 = vpow.pop %v5361
        %v5363 = vmul.f32 %v5331, 1.442695
        %v5364 = vpow.pop %v5363
        %v5381 = vcombine.low %v5334, %v5336
        %v5382 = vcombine.low %v5338, %v5340
        %v5383 = vcombine.low %v5342, %v5344
        %v5384 = vcombine.low %v5346, %v5348
        %v5385 = vcombine.low %v5350, %v5352
        %v5386 = vcombine.low %v5354, %v5356
        %v5387 = vcombine.low %v5358, %v5360
        %v5388 = vcombine.low %v5362, %v5364
        %5397 = vst [vmem:[%s272] sm:$0x77] %v5381
        %5398 = vst [vmem:[%s272 + $0x8] sm:$0x77] %v5382
        %5399 = vst [vmem:[%s272 + $0x10] sm:$0x77] %v5383
        %5400 = vst [vmem:[%s272 + $0x18] sm:$0x77] %v5384
        %5401 = vst [vmem:[%s272 + $0x20] sm:$0x77] %v5385
        %5402 = vst [vmem:[%s272 + $0x28] sm:$0x77] %v5386
        %5403 = vst [vmem:[%s272 + $0x30] sm:$0x77] %v5387
        %5404 = vst [vmem:[%s272 + $0x38] sm:$0x77] %v5388
        %s5405 = sand.u32 %s181, 1
        %s5406 = scalar_lea.sflag [#allocation4], %s5405
        %s5407 = sand.u32 %s181, 1
        %s5408 = smul.addr %s5407, 64
        %s5409 = scalar_lea.vmem [#allocation3], %s5408
        // Predicated region
        $region49: #{neubtf_forward.1} parent=47 // pred_check
          %p5410 = pneg %p191
        $region50: #{neubtf_forward.1} parent=47 // pred_check_branch
          %5412 = sbr.rel (%p5410) target = $region52
        $region51: #{neubtf_forward.1} parent=47 // pred_region
          %s5413 = smul.u32 16, %s21
          %s5415 = ssub.s32 1024, 1024
          %5416 = vsyncadd %s5406, %s5415
          %s5417 = smul.addr %s5413, 64
          %s5418 = scalar_lea.hbm %s7, %s5417
          %s5420 = sshll.u32 %s5409, 4
          %s5421 = int_to_ptr.vmem [resolvable:$true] %s5420
          %5423 = dma.vmem_to_hbm [thread:$0]  %s5421, 1024, %s5418, %s5406
        $region52: #{neubtf_forward.1} parent=47 // pred_fallthru
          _
      $region48: #{neubtf_forward.1} parent=5 // pred_fallthru
        _
      %p5424 = scmp.le.s32.totalorder 2, %s16
      // Predicated region
      $region53: #{neubtf_forward.1} parent=5 // pred_check
        %p5425 = pneg %p5424
      $region54: #{neubtf_forward.1} parent=5 // pred_check_branch
        %5427 = sbr.rel (%p5425) target = $region56
      $region55: #{neubtf_forward.1} parent=5 // pred_region
        %s5428 = ssub.s32 %s16, 2
        // Predicated region
        $region57: #{neubtf_forward.1} parent=55 // pred_check
          %p5429 = pneg %p197
        $region58: #{neubtf_forward.1} parent=55 // pred_check_branch
          %5431 = sbr.rel (%p5429) target = $region60
        $region59: #{neubtf_forward.1} parent=55 // pred_region
          %s5432 = sand.u32 %s182, 1
          %s5433 = scalar_lea.sflag [#allocation4], %s5432
          %s5434 = sand.u32 %s182, 1
          %s5435 = smul.addr %s5434, 64
          %s5436 = scalar_lea.vmem [#allocation3], %s5435
          %5437 = dma.done %s5433, 1024
        $region60: #{neubtf_forward.1} parent=55 // pred_fallthru
          _
      $region56: #{neubtf_forward.1} parent=5 // pred_fallthru
        _
    $region6: #{neubtf_forward.1} parent=1 // loop_footer
      %s20 = sadd.s32 1, %s16
    $region7: #{neubtf_forward.1} parent=1 // loop_footer_branch
      %15 = sbr.rel target = $region3
    $region8: #{neubtf_forward.1} parent=1 // loop_exit
      _
    %5438 = vsyncpa [#allocation4], 1
    %s5439 = scalar_lea.sflag [#allocation4], 1
    %5440 = vsyncpa %s5439, 1

</llo_original>
